<compile_context>
chip_gen: v7x
topology: tpu7x:2x2x1
jax: 0.10.0
libtpu: 0.0.40
codegen_flags: <defaults>
</compile_context>

<pallas_src>
import functools

import jax
import jax.numpy as jnp
from jax.experimental import pallas as pl
from jax.experimental.pallas import tpu as pltpu


def _padded_bytes(shape, itemsize=4):
    """f32 bytes of `shape` after TPU layout padding (sublane->8, lane->128)."""
    shape = tuple(int(d) for d in shape)
    if len(shape) == 0:
        shape = (1, 1)
    elif len(shape) == 1:
        shape = (1,) + shape
    lead = 1
    for d in shape[:-2]:
        lead *= d
    sub = -(-shape[-2] // 8) * 8
    lane = -(-shape[-1] // 128) * 128
    return itemsize * lead * sub * lane


def _fused_seq_kernel(x_ref, w1_ref, w2_ref, o_ref, *, k1, k2):
    """conv(k1, C0->C1)+ReLU+conv(k2, C1->C2)+ReLU for a block of Nb images.

    x_ref : (Nb, H, W, C0)         VMEM
    w1_ref: (k1*k1*C0 + 1, C1)     VMEM, resident (constant index_map); last row = bias
    w2_ref: (k2*k2*C1 + 1, C2)     VMEM, resident; last row = bias
    o_ref : (Nb*OH2*OW2, C2)       VMEM (lane-flat output slab)
    """
    Nb, H, W, C0 = x_ref.shape
    K1 = k1 * k1 * C0
    C1 = w1_ref.shape[1]
    K2 = k2 * k2 * C1
    C2 = w2_ref.shape[1]
    OH1, OW1 = H - k1 + 1, W - k1 + 1
    OH2, OW2 = OH1 - k2 + 1, OW1 - k2 + 1
    M1 = Nb * OH1 * OW1
    M2 = Nb * OH2 * OW2

    x = x_ref[...]                                             # (Nb, H, W, C0)
    w1 = w1_ref[...]                                           # (K1+1, C1)
    w2 = w2_ref[...]                                           # (K2+1, C2)

    # ---- layer 1: single 2-D matmul, K1 = k1*k1*C0 = 25 (fits one lane tile) ----
    p1 = jnp.concatenate(
        [x[:, i:i + OH1, j:j + OW1, :] for i in range(k1) for j in range(k1)],
        axis=-1).reshape(M1, K1)                               # (M1, K1) im2col
    h1 = jnp.dot(p1, w1[:K1, :], preferred_element_type=jnp.float32)   # (M1, C1)
    h1 = jnp.maximum(h1 + w1[K1:K1 + 1, :], 0.0)               # fused bias + ReLU
    h1 = h1.reshape(Nb, OH1, OW1, C1)

    # ---- layer 2: incremental im2col grouped by kernel row (k2 dots of K = k2*C1) ----
    # Caps vreg pressure vs. a single 25-way concat and keeps each dot a clean 2-D
    # (M2, k2*C1) x (k2*C1, C2) matmul.  Bias row seeds the accumulator.
    acc = jnp.broadcast_to(w2[K2:K2 + 1, :], (M2, C2)).astype(jnp.float32)
    for kh in range(k2):                                       # short, unrolled
        p2 = jnp.concatenate(
            [h1[:, kh:kh + OH2, kw:kw + OW2, :] for kw in range(k2)],
            axis=-1).reshape(M2, k2 * C1)
        acc = acc + jnp.dot(p2, w2[kh * k2 * C1:(kh + 1) * k2 * C1, :],
                            preferred_element_type=jnp.float32)
    o_ref[...] = jnp.maximum(acc, 0.0).astype(o_ref.dtype)


def sequential_forward_pallas(x_nhwc, params):
    """Fused conv1+relu+conv2+relu. x_nhwc: (N,H,W,C0); params: [(w,b), (w,b)]."""
    (w1, b1), (w2, b2) = params                  # w: (KH, KW, Cin, Cout)
    N, H, W, C0 = x_nhwc.shape
    k1, _, _, C1 = w1.shape
    k2, _, _, C2 = w2.shape
    OH1, OW1 = H - k1 + 1, W - k1 + 1
    OH2, OW2 = OH1 - k2 + 1, OW1 - k2 + 1
    K1 = k1 * k1 * C0
    K2 = k2 * k2 * C1

    # Weight slabs with the bias folded in as an extra row (row order kh, kw, cin —
    # matches the in-kernel im2col lane-concat order).  The extra row is free: the
    # slab pads to a multiple of 8 sublanes anyway.
    w1_packed = jnp.concatenate([w1.reshape(K1, C1), b1.reshape(1, C1)], axis=0)
    w2_packed = jnp.concatenate([w2.reshape(K2, C2), b2.reshape(1, C2)], axis=0)

    # ---- generation-aware, padding-aware VMEM budget ----
    try:
        physical_vmem = int(pltpu.get_tpu_info().vmem_capacity_bytes)
    except Exception:
        physical_vmem = 64 * 1024 * 1024          # v7x has the smallest per-core VMEM
    budget = int(0.45 * physical_vmem)

    def block_vmem_bytes(nb):
        m1 = nb * OH1 * OW1
        m2 = nb * OH2 * OW2
        est = 0
        est += 2 * _padded_bytes((nb, H, W, C0))          # input block  (x2 dbl-buffer)
        est += 2 * _padded_bytes((m2, C2))                # output block (x2 dbl-buffer)
        est += 2 * _padded_bytes(w1_packed.shape)         # resident weights (conservative)
        est += 2 * _padded_bytes(w2_packed.shape)
        est += _padded_bytes((m1, K1))                    # p1
        est += _padded_bytes((nb, OH1, OW1, C1))          # h1
        est += 2 * _padded_bytes((m2, k2 * C1))           # p2 group (headroom)
        est += 2 * _padded_bytes((m2, C2))                # accumulator
        return est

    # ---- grid choice: fold batch into blocks, keep >=2 steps for v7x's 2 TCs ----
    divisors = [d for d in range(1, N + 1) if N % d == 0]
    preferred = [d for d in divisors if d >= 2] or divisors
    num_steps = None
    for d in preferred:
        if block_vmem_bytes(N // d) <= budget:
            num_steps = d
            break
    if num_steps is None:
        num_steps = N
        # TODO(synk): halo-row tiling for images too large for whole-image blocks.
        assert block_vmem_bytes(1) <= budget, "image too large for per-image blocks"
    Nb = N // num_steps
    need = block_vmem_bytes(Nb)

    compiler_kwargs = dict(dimension_semantics=("parallel",))
    if need > 12 * 1024 * 1024:          # beyond the smallest scoped default (v5e 16 MiB)
        compiler_kwargs["vmem_limit_bytes"] = int(min(budget, need * 3 // 2))

    flops = 2 * N * (OH1 * OW1 * K1 * C1 + OH2 * OW2 * K2 * C2)
    bytes_accessed = 4 * (x_nhwc.size + w1_packed.size + w2_packed.size
                          + N * OH2 * OW2 * C2)

    kernel = functools.partial(_fused_seq_kernel, k1=k1, k2=k2)

    out_flat = pl.pallas_call(
        kernel,
        out_shape=jax.ShapeDtypeStruct((N * OH2 * OW2, C2), x_nhwc.dtype),
        grid=(num_steps,),
        in_specs=[
            pl.BlockSpec((Nb, H, W, C0), lambda n: (n, 0, 0, 0)),
            pl.BlockSpec(w1_packed.shape, lambda n: (0, 0)),   # resident weights+bias
            pl.BlockSpec(w2_packed.shape, lambda n: (0, 0)),   # resident weights+bias
        ],
        out_specs=pl.BlockSpec((Nb * OH2 * OW2, C2), lambda n: (n, 0)),
        compiler_params=pltpu.CompilerParams(**compiler_kwargs),
        cost_estimate=pl.CostEstimate(
            flops=flops, transcendentals=0, bytes_accessed=bytes_accessed),
    )(x_nhwc, w1_packed, w2_packed)

    return out_flat.reshape(N, OH2, OW2, C2)


def init_params(key):
    """Deterministic init mirroring PyTorch Conv2d default (uniform ±1/sqrt(fan_in))."""
    params = []
    layer_defs = [  # (Cin, Cout, K) for each Conv2d in the Sequential
        (1, 20, 5),
        (20, 64, 5),
    ]
    for i, (cin, cout, k) in enumerate(layer_defs):
        kw_key, kb_key = jax.random.split(jax.random.fold_in(key, i))
        bound = 1.0 / (cin * k * k) ** 0.5
        # PyTorch weight layout (Cout, Cin, KH, KW) -> (KH, KW, Cin, Cout)
        w_oihw = jax.random.uniform(kw_key, (cout, cin, k, k),
                                    jnp.float32, -bound, bound)
        w = jnp.transpose(w_oihw, (2, 3, 1, 0))
        b = jax.random.uniform(kb_key, (cout,), jnp.float32, -bound, bound)
        params.append((w, b))
    return params


@jax.jit
def sequential_forward(x_nchw, params):
    """Sequential.forward: conv1 -> relu -> conv2 -> relu (single fused Pallas kernel)."""
    # NCHW <-> NHWC plumbing; with C0=1 the input transpose is a free reshape and the
    # output transpose is tiny.  For large inputs, accept NHWC directly (see TODO above).
    x = jnp.transpose(x_nchw, (0, 2, 3, 1))          # NCHW -> NHWC
    y = sequential_forward_pallas(x, params)         # fused Pallas kernel
    return jnp.transpose(y, (0, 3, 1, 2))            # NHWC -> NCHW


def reference_forward(x_nchw, params):
    """Pure-JAX reference (lax conv) for correctness check."""
    x = x_nchw
    for (w, b) in params:
        w_oihw = jnp.transpose(w, (3, 2, 0, 1))
        x = jax.lax.conv_general_dilated(
            x, w_oihw, window_strides=(1, 1), padding="VALID",
            dimension_numbers=("NCHW", "OIHW", "NCHW"))
        x = jnp.maximum(x + b[None, :, None, None], 0.0)
    return x


if __name__ == "__main__":
    key = jax.random.PRNGKey(0)
    # N=4 exercises batch folding: grid=(2,) with Nb=2 images per block.
    x = jax.random.normal(jax.random.fold_in(key, 100), (4, 1, 16, 16), jnp.float32)
    params = init_params(key)

    out = sequential_forward(x, params)
    out = jax.block_until_ready(out)

    ref = reference_forward(x, params)
    assert out.shape == (4, 64, 8, 8), out.shape
    assert jnp.allclose(out, ref, rtol=1e-4, atol=1e-4), "mismatch vs reference"

    print("KERNEL_OK")
</pallas_src>

<mosaic_0001>
module attributes {stable_mosaic.version = 11 : i64} {
  func.func @_fused_seq_kernel(%arg0: i32, %arg1: memref<2x16x16x1xf32, #tpu.memory_space<vmem>>, %arg2: memref<26x20xf32, #tpu.memory_space<vmem>>, %arg3: memref<501x64xf32, #tpu.memory_space<vmem>>, %arg4: memref<128x64xf32, #tpu.memory_space<vmem>>) attributes {dimension_semantics = [#tpu.dimension_semantics<parallel>], iteration_bounds = array<i64: 2>, scalar_prefetch = 0 : i64, scratch_operands = 0 : i64, tpu.core_type = #tpu.core_type<tc>, window_params = [{transform_indices = @transform_0, window_bounds = array<i64: 2, 16, 16, 1>}, {pipeline_mode = #tpu.pipeline_mode<synchronous>, transform_indices = @transform_1, window_bounds = array<i64: 26, 20>}, {pipeline_mode = #tpu.pipeline_mode<synchronous>, transform_indices = @transform_2, window_bounds = array<i64: 501, 64>}, {transform_indices = @transform_3, window_bounds = array<i64: 128, 64>}]} {
    %c0 = arith.constant 0 : index
    %c0_0 = arith.constant 0 : index
    %c0_1 = arith.constant 0 : index
    %c0_2 = arith.constant 0 : index
    %0 = vector.load %arg1[%c0, %c0_0, %c0_1, %c0_2] : memref<2x16x16x1xf32, #tpu.memory_space<vmem>>, vector<2x16x16x1xf32>
    %c0_3 = arith.constant 0 : index
    %c0_4 = arith.constant 0 : index
    %1 = vector.load %arg2[%c0_3, %c0_4] : memref<26x20xf32, #tpu.memory_space<vmem>>, vector<26x20xf32>
    %c0_5 = arith.constant 0 : index
    %c0_6 = arith.constant 0 : index
    %2 = vector.load %arg3[%c0_5, %c0_6] : memref<501x64xf32, #tpu.memory_space<vmem>>, vector<501x64xf32>
    %3 = vector.extract_strided_slice %0 {offsets = [0, 0, 0, 0], sizes = [2, 12, 12, 1], strides = [1, 1, 1, 1]} : vector<2x16x16x1xf32> to vector<2x12x12x1xf32>
    %4 = vector.extract_strided_slice %0 {offsets = [0, 0, 1, 0], sizes = [2, 12, 12, 1], strides = [1, 1, 1, 1]} : vector<2x16x16x1xf32> to vector<2x12x12x1xf32>
    %5 = vector.extract_strided_slice %0 {offsets = [0, 0, 2, 0], sizes = [2, 12, 12, 1], strides = [1, 1, 1, 1]} : vector<2x16x16x1xf32> to vector<2x12x12x1xf32>
    %6 = vector.extract_strided_slice %0 {offsets = [0, 0, 3, 0], sizes = [2, 12, 12, 1], strides = [1, 1, 1, 1]} : vector<2x16x16x1xf32> to vector<2x12x12x1xf32>
    %7 = vector.extract_strided_slice %0 {offsets = [0, 0, 4, 0], sizes = [2, 12, 12, 1], strides = [1, 1, 1, 1]} : vector<2x16x16x1xf32> to vector<2x12x12x1xf32>
    %8 = vector.extract_strided_slice %0 {offsets = [0, 1, 0, 0], sizes = [2, 12, 12, 1], strides = [1, 1, 1, 1]} : vector<2x16x16x1xf32> to vector<2x12x12x1xf32>
    %9 = vector.extract_strided_slice %0 {offsets = [0, 1, 1, 0], sizes = [2, 12, 12, 1], strides = [1, 1, 1, 1]} : vector<2x16x16x1xf32> to vector<2x12x12x1xf32>
    %10 = vector.extract_strided_slice %0 {offsets = [0, 1, 2, 0], sizes = [2, 12, 12, 1], strides = [1, 1, 1, 1]} : vector<2x16x16x1xf32> to vector<2x12x12x1xf32>
    %11 = vector.extract_strided_slice %0 {offsets = [0, 1, 3, 0], sizes = [2, 12, 12, 1], strides = [1, 1, 1, 1]} : vector<2x16x16x1xf32> to vector<2x12x12x1xf32>
    %12 = vector.extract_strided_slice %0 {offsets = [0, 1, 4, 0], sizes = [2, 12, 12, 1], strides = [1, 1, 1, 1]} : vector<2x16x16x1xf32> to vector<2x12x12x1xf32>
    %13 = vector.extract_strided_slice %0 {offsets = [0, 2, 0, 0], sizes = [2, 12, 12, 1], strides = [1, 1, 1, 1]} : vector<2x16x16x1xf32> to vector<2x12x12x1xf32>
    %14 = vector.extract_strided_slice %0 {offsets = [0, 2, 1, 0], sizes = [2, 12, 12, 1], strides = [1, 1, 1, 1]} : vector<2x16x16x1xf32> to vector<2x12x12x1xf32>
    %15 = vector.extract_strided_slice %0 {offsets = [0, 2, 2, 0], sizes = [2, 12, 12, 1], strides = [1, 1, 1, 1]} : vector<2x16x16x1xf32> to vector<2x12x12x1xf32>
    %16 = vector.extract_strided_slice %0 {offsets = [0, 2, 3, 0], sizes = [2, 12, 12, 1], strides = [1, 1, 1, 1]} : vector<2x16x16x1xf32> to vector<2x12x12x1xf32>
    %17 = vector.extract_strided_slice %0 {offsets = [0, 2, 4, 0], sizes = [2, 12, 12, 1], strides = [1, 1, 1, 1]} : vector<2x16x16x1xf32> to vector<2x12x12x1xf32>
    %18 = vector.extract_strided_slice %0 {offsets = [0, 3, 0, 0], sizes = [2, 12, 12, 1], strides = [1, 1, 1, 1]} : vector<2x16x16x1xf32> to vector<2x12x12x1xf32>
    %19 = vector.extract_strided_slice %0 {offsets = [0, 3, 1, 0], sizes = [2, 12, 12, 1], strides = [1, 1, 1, 1]} : vector<2x16x16x1xf32> to vector<2x12x12x1xf32>
    %20 = vector.extract_strided_slice %0 {offsets = [0, 3, 2, 0], sizes = [2, 12, 12, 1], strides = [1, 1, 1, 1]} : vector<2x16x16x1xf32> to vector<2x12x12x1xf32>
    %21 = vector.extract_strided_slice %0 {offsets = [0, 3, 3, 0], sizes = [2, 12, 12, 1], strides = [1, 1, 1, 1]} : vector<2x16x16x1xf32> to vector<2x12x12x1xf32>
    %22 = vector.extract_strided_slice %0 {offsets = [0, 3, 4, 0], sizes = [2, 12, 12, 1], strides = [1, 1, 1, 1]} : vector<2x16x16x1xf32> to vector<2x12x12x1xf32>
    %23 = vector.extract_strided_slice %0 {offsets = [0, 4, 0, 0], sizes = [2, 12, 12, 1], strides = [1, 1, 1, 1]} : vector<2x16x16x1xf32> to vector<2x12x12x1xf32>
    %24 = vector.extract_strided_slice %0 {offsets = [0, 4, 1, 0], sizes = [2, 12, 12, 1], strides = [1, 1, 1, 1]} : vector<2x16x16x1xf32> to vector<2x12x12x1xf32>
    %25 = vector.extract_strided_slice %0 {offsets = [0, 4, 2, 0], sizes = [2, 12, 12, 1], strides = [1, 1, 1, 1]} : vector<2x16x16x1xf32> to vector<2x12x12x1xf32>
    %26 = vector.extract_strided_slice %0 {offsets = [0, 4, 3, 0], sizes = [2, 12, 12, 1], strides = [1, 1, 1, 1]} : vector<2x16x16x1xf32> to vector<2x12x12x1xf32>
    %27 = vector.extract_strided_slice %0 {offsets = [0, 4, 4, 0], sizes = [2, 12, 12, 1], strides = [1, 1, 1, 1]} : vector<2x16x16x1xf32> to vector<2x12x12x1xf32>
    %28 = tpu.concatenate %3, %4, %5, %6, %7, %8, %9, %10, %11, %12, %13, %14, %15, %16, %17, %18 in 3 : vector<2x12x12x1xf32>, vector<2x12x12x1xf32>, vector<2x12x12x1xf32>, vector<2x12x12x1xf32>, vector<2x12x12x1xf32>, vector<2x12x12x1xf32>, vector<2x12x12x1xf32>, vector<2x12x12x1xf32>, vector<2x12x12x1xf32>, vector<2x12x12x1xf32>, vector<2x12x12x1xf32>, vector<2x12x12x1xf32>, vector<2x12x12x1xf32>, vector<2x12x12x1xf32>, vector<2x12x12x1xf32>, vector<2x12x12x1xf32> -> vector<2x12x12x16xf32>
    %29 = tpu.concatenate %19, %20, %21, %22, %23, %24, %25, %26, %27 in 3 : vector<2x12x12x1xf32>, vector<2x12x12x1xf32>, vector<2x12x12x1xf32>, vector<2x12x12x1xf32>, vector<2x12x12x1xf32>, vector<2x12x12x1xf32>, vector<2x12x12x1xf32>, vector<2x12x12x1xf32>, vector<2x12x12x1xf32> -> vector<2x12x12x9xf32>
    %30 = tpu.concatenate %28, %29 in 3 : vector<2x12x12x16xf32>, vector<2x12x12x9xf32> -> vector<2x12x12x25xf32>
    %31 = vector.shape_cast %30 : vector<2x12x12x25xf32> to vector<288x25xf32>
    %32 = vector.extract_strided_slice %1 {offsets = [0, 0], sizes = [25, 20], strides = [1, 1]} : vector<26x20xf32> to vector<25x20xf32>
    %cst = arith.constant dense<0.000000e+00> : vector<288x20xf32>
    %33 = tpu.matmul %31, %32, %cst {dimension_numbers = #tpu.dot_dimension_numbers<[1], [0], [0], [1], [0, 0, 1, 1], [], []>} : vector<288x25xf32>, vector<25x20xf32>, vector<288x20xf32> -> vector<288x20xf32>
    %34 = vector.extract_strided_slice %1 {offsets = [25, 0], sizes = [1, 20], strides = [1, 1]} : vector<26x20xf32> to vector<1x20xf32>
    %35 = vector.broadcast %34 : vector<1x20xf32> to vector<288x20xf32>
    %36 = arith.addf %33, %35 : vector<288x20xf32>
    %cst_7 = arith.constant 0.000000e+00 : f32
    %37 = vector.broadcast %cst_7 : f32 to vector<288x20xf32>
    %38 = arith.maximumf %36, %37 : vector<288x20xf32>
    %39 = vector.shape_cast %38 : vector<288x20xf32> to vector<2x12x12x20xf32>
    %40 = vector.extract_strided_slice %2 {offsets = [500, 0], sizes = [1, 64], strides = [1, 1]} : vector<501x64xf32> to vector<1x64xf32>
    %41 = vector.shape_cast %40 : vector<1x64xf32> to vector<1x64xf32>
    %42 = vector.broadcast %41 : vector<1x64xf32> to vector<128x64xf32>
    %43 = vector.extract_strided_slice %39 {offsets = [0, 0, 0, 0], sizes = [2, 8, 8, 20], strides = [1, 1, 1, 1]} : vector<2x12x12x20xf32> to vector<2x8x8x20xf32>
    %44 = vector.extract_strided_slice %39 {offsets = [0, 0, 1, 0], sizes = [2, 8, 8, 20], strides = [1, 1, 1, 1]} : vector<2x12x12x20xf32> to vector<2x8x8x20xf32>
    %45 = vector.extract_strided_slice %39 {offsets = [0, 0, 2, 0], sizes = [2, 8, 8, 20], strides = [1, 1, 1, 1]} : vector<2x12x12x20xf32> to vector<2x8x8x20xf32>
    %46 = vector.extract_strided_slice %39 {offsets = [0, 0, 3, 0], sizes = [2, 8, 8, 20], strides = [1, 1, 1, 1]} : vector<2x12x12x20xf32> to vector<2x8x8x20xf32>
    %47 = vector.extract_strided_slice %39 {offsets = [0, 0, 4, 0], sizes = [2, 8, 8, 20], strides = [1, 1, 1, 1]} : vector<2x12x12x20xf32> to vector<2x8x8x20xf32>
    %48 = tpu.concatenate %43, %44, %45, %46, %47 in 3 : vector<2x8x8x20xf32>, vector<2x8x8x20xf32>, vector<2x8x8x20xf32>, vector<2x8x8x20xf32>, vector<2x8x8x20xf32> -> vector<2x8x8x100xf32>
    %49 = vector.shape_cast %48 : vector<2x8x8x100xf32> to vector<128x100xf32>
    %50 = vector.extract_strided_slice %2 {offsets = [0, 0], sizes = [100, 64], strides = [1, 1]} : vector<501x64xf32> to vector<100x64xf32>
    %cst_8 = arith.constant dense<0.000000e+00> : vector<128x64xf32>
    %51 = tpu.matmul %49, %50, %cst_8 {dimension_numbers = #tpu.dot_dimension_numbers<[1], [0], [0], [1], [0, 0, 1, 1], [], []>} : vector<128x100xf32>, vector<100x64xf32>, vector<128x64xf32> -> vector<128x64xf32>
    %52 = arith.addf %42, %51 : vector<128x64xf32>
    %53 = vector.extract_strided_slice %39 {offsets = [0, 1, 0, 0], sizes = [2, 8, 8, 20], strides = [1, 1, 1, 1]} : vector<2x12x12x20xf32> to vector<2x8x8x20xf32>
    %54 = vector.extract_strided_slice %39 {offsets = [0, 1, 1, 0], sizes = [2, 8, 8, 20], strides = [1, 1, 1, 1]} : vector<2x12x12x20xf32> to vector<2x8x8x20xf32>
    %55 = vector.extract_strided_slice %39 {offsets = [0, 1, 2, 0], sizes = [2, 8, 8, 20], strides = [1, 1, 1, 1]} : vector<2x12x12x20xf32> to vector<2x8x8x20xf32>
    %56 = vector.extract_strided_slice %39 {offsets = [0, 1, 3, 0], sizes = [2, 8, 8, 20], strides = [1, 1, 1, 1]} : vector<2x12x12x20xf32> to vector<2x8x8x20xf32>
    %57 = vector.extract_strided_slice %39 {offsets = [0, 1, 4, 0], sizes = [2, 8, 8, 20], strides = [1, 1, 1, 1]} : vector<2x12x12x20xf32> to vector<2x8x8x20xf32>
    %58 = tpu.concatenate %53, %54, %55, %56, %57 in 3 : vector<2x8x8x20xf32>, vector<2x8x8x20xf32>, vector<2x8x8x20xf32>, vector<2x8x8x20xf32>, vector<2x8x8x20xf32> -> vector<2x8x8x100xf32>
    %59 = vector.shape_cast %58 : vector<2x8x8x100xf32> to vector<128x100xf32>
    %60 = vector.extract_strided_slice %2 {offsets = [100, 0], sizes = [100, 64], strides = [1, 1]} : vector<501x64xf32> to vector<100x64xf32>
    %cst_9 = arith.constant dense<0.000000e+00> : vector<128x64xf32>
    %61 = tpu.matmul %59, %60, %cst_9 {dimension_numbers = #tpu.dot_dimension_numbers<[1], [0], [0], [1], [0, 0, 1, 1], [], []>} : vector<128x100xf32>, vector<100x64xf32>, vector<128x64xf32> -> vector<128x64xf32>
    %62 = arith.addf %52, %61 : vector<128x64xf32>
    %63 = vector.extract_strided_slice %39 {offsets = [0, 2, 0, 0], sizes = [2, 8, 8, 20], strides = [1, 1, 1, 1]} : vector<2x12x12x20xf32> to vector<2x8x8x20xf32>
    %64 = vector.extract_strided_slice %39 {offsets = [0, 2, 1, 0], sizes = [2, 8, 8, 20], strides = [1, 1, 1, 1]} : vector<2x12x12x20xf32> to vector<2x8x8x20xf32>
    %65 = vector.extract_strided_slice %39 {offsets = [0, 2, 2, 0], sizes = [2, 8, 8, 20], strides = [1, 1, 1, 1]} : vector<2x12x12x20xf32> to vector<2x8x8x20xf32>
    %66 = vector.extract_strided_slice %39 {offsets = [0, 2, 3, 0], sizes = [2, 8, 8, 20], strides = [1, 1, 1, 1]} : vector<2x12x12x20xf32> to vector<2x8x8x20xf32>
    %67 = vector.extract_strided_slice %39 {offsets = [0, 2, 4, 0], sizes = [2, 8, 8, 20], strides = [1, 1, 1, 1]} : vector<2x12x12x20xf32> to vector<2x8x8x20xf32>
    %68 = tpu.concatenate %63, %64, %65, %66, %67 in 3 : vector<2x8x8x20xf32>, vector<2x8x8x20xf32>, vector<2x8x8x20xf32>, vector<2x8x8x20xf32>, vector<2x8x8x20xf32> -> vector<2x8x8x100xf32>
    %69 = vector.shape_cast %68 : vector<2x8x8x100xf32> to vector<128x100xf32>
    %70 = vector.extract_strided_slice %2 {offsets = [200, 0], sizes = [100, 64], strides = [1, 1]} : vector<501x64xf32> to vector<100x64xf32>
    %cst_10 = arith.constant dense<0.000000e+00> : vector<128x64xf32>
    %71 = tpu.matmul %69, %70, %cst_10 {dimension_numbers = #tpu.dot_dimension_numbers<[1], [0], [0], [1], [0, 0, 1, 1], [], []>} : vector<128x100xf32>, vector<100x64xf32>, vector<128x64xf32> -> vector<128x64xf32>
    %72 = arith.addf %62, %71 : vector<128x64xf32>
    %73 = vector.extract_strided_slice %39 {offsets = [0, 3, 0, 0], sizes = [2, 8, 8, 20], strides = [1, 1, 1, 1]} : vector<2x12x12x20xf32> to vector<2x8x8x20xf32>
    %74 = vector.extract_strided_slice %39 {offsets = [0, 3, 1, 0], sizes = [2, 8, 8, 20], strides = [1, 1, 1, 1]} : vector<2x12x12x20xf32> to vector<2x8x8x20xf32>
    %75 = vector.extract_strided_slice %39 {offsets = [0, 3, 2, 0], sizes = [2, 8, 8, 20], strides = [1, 1, 1, 1]} : vector<2x12x12x20xf32> to vector<2x8x8x20xf32>
    %76 = vector.extract_strided_slice %39 {offsets = [0, 3, 3, 0], sizes = [2, 8, 8, 20], strides = [1, 1, 1, 1]} : vector<2x12x12x20xf32> to vector<2x8x8x20xf32>
    %77 = vector.extract_strided_slice %39 {offsets = [0, 3, 4, 0], sizes = [2, 8, 8, 20], strides = [1, 1, 1, 1]} : vector<2x12x12x20xf32> to vector<2x8x8x20xf32>
    %78 = tpu.concatenate %73, %74, %75, %76, %77 in 3 : vector<2x8x8x20xf32>, vector<2x8x8x20xf32>, vector<2x8x8x20xf32>, vector<2x8x8x20xf32>, vector<2x8x8x20xf32> -> vector<2x8x8x100xf32>
    %79 = vector.shape_cast %78 : vector<2x8x8x100xf32> to vector<128x100xf32>
    %80 = vector.extract_strided_slice %2 {offsets = [300, 0], sizes = [100, 64], strides = [1, 1]} : vector<501x64xf32> to vector<100x64xf32>
    %cst_11 = arith.constant dense<0.000000e+00> : vector<128x64xf32>
    %81 = tpu.matmul %79, %80, %cst_11 {dimension_numbers = #tpu.dot_dimension_numbers<[1], [0], [0], [1], [0, 0, 1, 1], [], []>} : vector<128x100xf32>, vector<100x64xf32>, vector<128x64xf32> -> vector<128x64xf32>
    %82 = arith.addf %72, %81 : vector<128x64xf32>
    %83 = vector.extract_strided_slice %39 {offsets = [0, 4, 0, 0], sizes = [2, 8, 8, 20], strides = [1, 1, 1, 1]} : vector<2x12x12x20xf32> to vector<2x8x8x20xf32>
    %84 = vector.extract_strided_slice %39 {offsets = [0, 4, 1, 0], sizes = [2, 8, 8, 20], strides = [1, 1, 1, 1]} : vector<2x12x12x20xf32> to vector<2x8x8x20xf32>
    %85 = vector.extract_strided_slice %39 {offsets = [0, 4, 2, 0], sizes = [2, 8, 8, 20], strides = [1, 1, 1, 1]} : vector<2x12x12x20xf32> to vector<2x8x8x20xf32>
    %86 = vector.extract_strided_slice %39 {offsets = [0, 4, 3, 0], sizes = [2, 8, 8, 20], strides = [1, 1, 1, 1]} : vector<2x12x12x20xf32> to vector<2x8x8x20xf32>
    %87 = vector.extract_strided_slice %39 {offsets = [0, 4, 4, 0], sizes = [2, 8, 8, 20], strides = [1, 1, 1, 1]} : vector<2x12x12x20xf32> to vector<2x8x8x20xf32>
    %88 = tpu.concatenate %83, %84, %85, %86, %87 in 3 : vector<2x8x8x20xf32>, vector<2x8x8x20xf32>, vector<2x8x8x20xf32>, vector<2x8x8x20xf32>, vector<2x8x8x20xf32> -> vector<2x8x8x100xf32>
    %89 = vector.shape_cast %88 : vector<2x8x8x100xf32> to vector<128x100xf32>
    %90 = vector.extract_strided_slice %2 {offsets = [400, 0], sizes = [100, 64], strides = [1, 1]} : vector<501x64xf32> to vector<100x64xf32>
    %cst_12 = arith.constant dense<0.000000e+00> : vector<128x64xf32>
    %91 = tpu.matmul %89, %90, %cst_12 {dimension_numbers = #tpu.dot_dimension_numbers<[1], [0], [0], [1], [0, 0, 1, 1], [], []>} : vector<128x100xf32>, vector<100x64xf32>, vector<128x64xf32> -> vector<128x64xf32>
    %92 = arith.addf %82, %91 : vector<128x64xf32>
    %cst_13 = arith.constant 0.000000e+00 : f32
    %93 = vector.broadcast %cst_13 : f32 to vector<128x64xf32>
    %94 = arith.maximumf %92, %93 : vector<128x64xf32>
    %c0_14 = arith.constant 0 : index
    %c0_15 = arith.constant 0 : index
    %95 = vector.load %arg4[%c0_14, %c0_15] : memref<128x64xf32, #tpu.memory_space<vmem>>, vector<128x64xf32>
    tpu.vector_store %arg4[%c0_14, %c0_15], %94 {strides = array<i32>} : memref<128x64xf32, #tpu.memory_space<vmem>>, vector<128x64xf32>,
    return
  }
  func.func @transform_0(%arg0: i32) -> (i32, i32, i32, i32) {
    %c0_i32 = arith.constant 0 : i32
    %c0_i32_0 = arith.constant 0 : i32
    %c0_i32_1 = arith.constant 0 : i32
    %c0_i32_2 = arith.constant 0 : i32
    return %arg0, %c0_i32, %c0_i32_0, %c0_i32_1 : i32, i32, i32, i32
  }
  func.func @transform_1(%arg0: i32) -> (i32, i32) {
    %c0_i32 = arith.constant 0 : i32
    %c0_i32_0 = arith.constant 0 : i32
    %c0_i32_1 = arith.constant 0 : i32
    return %c0_i32, %c0_i32_0 : i32, i32
  }
  func.func @transform_2(%arg0: i32) -> (i32, i32) {
    %c0_i32 = arith.constant 0 : i32
    %c0_i32_0 = arith.constant 0 : i32
    %c0_i32_1 = arith.constant 0 : i32
    return %c0_i32, %c0_i32_0 : i32, i32
  }
  func.func @transform_3(%arg0: i32) -> (i32, i32) {
    %c0_i32 = arith.constant 0 : i32
    %c0_i32_0 = arith.constant 0 : i32
    return %arg0, %c0_i32 : i32, i32
  }
}

</mosaic_0001>

<llo_original>
// kernel: sequential_forward.1
$region0: #{sequential_forward.1}
  #allocation0 [shape = 'u32[]', space=smem, size = 0x4, offset = 0x4, fixed_abs, tag = 'smem constant byte address 0x4 - core index']
  #allocation1 [shape = 'u32[144,128]{1,0:T(1,128)}', space=vmem, size = 0x12000, scoped, tag = 'internal scratch']
  %s0 = inlined_call_operand.vmem [shape: f32[4,16,16,1], index: 0, kind: input, shape index: {}]
  %s1 = inlined_call_operand.vmem [shape: f32[26,20], index: 1, kind: input, shape index: {}]
  %s2 = inlined_call_operand.vmem [shape: f32[501,64], index: 2, kind: input, shape index: {}]
  %s3 = inlined_call_operand.hbm [shape: f32[256,64], index: 3, kind: output, shape index: {}]
  %s4 = sld [smem:[#allocation0]]
  $region45: #{sequential_forward.1} parent=0
    _
  %s6 = ssub.s32 1, %s4
  %s7 = scalar_select 0, %s6, %s4
  $region1: #{sequential_forward.1} parent=0
    #allocation2 [shape = 'u8[131072]{0}', space=vmem, size = 0x20000, scoped, tag = 'output window, operand 0']
    #allocation3 [shape = 's32[2]{0}', space=sflag, size = 0x8, scoped, tag = 'scoped memory for sequential_forward.1']
    %8 = vsyncpa [#allocation3], 0
    %s9 = scalar_lea.sflag [#allocation3], 1
    %10 = vsyncpa %s9, 0
    loop: start=0, step=1, limit=4
    $region2: #{sequential_forward.1} parent=1 // loop_pre_header
      _
    $region3: #{sequential_forward.1} parent=1 // loop_header
      %s12 = sphi 0, %s16
      %p13 = scmp.ge.s32.totalorder %s12, 4
      %s22 = sphi 0, %s24
      %s25 = sphi 0, %s22
      %s26 = sphi 0, %s25
      %s42 = sphi 0, %s26
      %s46 = sphi 0, %s46
      %s48 = sphi 0, %s46
      %s49 = sphi 0, %s48
      %s63 = sphi 0, %s49
      %s67 = sphi 0, %s67
      %s69 = sphi 0, %s67
      %s70 = sphi 0, %s69
      %s84 = sphi 0, %s70
      %s90 = sphi 0, %s92
      %s93 = sphi 0, %s90
      %s94 = sphi 0, %s93
      %s110 = sphi 0, %s94
    $region4: #{sequential_forward.1} parent=1 // loop_header_branch
      %15 = sbr.rel (%p13) target = $region8
    $region5: #{sequential_forward.1} parent=1 // loop_body
      %s17 = ssub.s32 %s12, 1
      %s18 = ssub.s32 %s12, 2
      %s19 = sadd.s32 %s12, 1
      %s20 = ssub.s32 %s12, %s19
      %p21 = scmp.eq.s32.totalorder %s20, 0
      %s23 = sadd.s32 %s22, 1
      %s24 = scalar_select %p21, %s22, %s23
      %p27 = pneg %p21
      %p28 = scmp.eq.s32.totalorder %s12, 1
      %p29 = por %p27, %p28
      %p30 = scmp.ne.s32.totalorder %s22, %s25
      %p31 = scmp.eq.s32.totalorder %s12, 0
      %p32 = por %p30, %p31
      %p33 = scmp.ne.s32.totalorder %s22, %s25
      %p34 = scmp.eq.s32.totalorder %s17, 1
      %p35 = por %p33, %p34
      %p36 = scmp.ne.s32.totalorder %s25, %s26
      %p37 = scmp.eq.s32.totalorder %s17, 0
      %p38 = por %p36, %p37
      %p39 = scmp.ne.s32.totalorder %s25, %s26
      %p40 = scmp.eq.s32.totalorder %s18, 1
      %p41 = por %p39, %p40
      %p43 = scmp.ne.s32.totalorder %s26, %s42
      %p44 = scmp.eq.s32.totalorder %s18, 0
      %p45 = por %p43, %p44
      %s47 = sadd.s32 %s46, 1
      %p50 = scmp.eq.s32.totalorder %s12, 1
      %p51 = scmp.ne.s32.totalorder %s46, %s48
      %p52 = scmp.eq.s32.totalorder %s12, 0
      %p53 = por %p51, %p52
      %p54 = scmp.ne.s32.totalorder %s46, %s48
      %p55 = scmp.eq.s32.totalorder %s17, 1
      %p56 = por %p54, %p55
      %p57 = scmp.ne.s32.totalorder %s48, %s49
      %p58 = scmp.eq.s32.totalorder %s17, 0
      %p59 = por %p57, %p58
      %p60 = scmp.ne.s32.totalorder %s48, %s49
      %p61 = scmp.eq.s32.totalorder %s18, 1
      %p62 = por %p60, %p61
      %p64 = scmp.ne.s32.totalorder %s49, %s63
      %p65 = scmp.eq.s32.totalorder %s18, 0
      %p66 = por %p64, %p65
      %s68 = sadd.s32 %s67, 1
      %p71 = scmp.eq.s32.totalorder %s12, 1
      %p72 = scmp.ne.s32.totalorder %s67, %s69
      %p73 = scmp.eq.s32.totalorder %s12, 0
      %p74 = por %p72, %p73
      %p75 = scmp.ne.s32.totalorder %s67, %s69
      %p76 = scmp.eq.s32.totalorder %s17, 1
      %p77 = por %p75, %p76
      %p78 = scmp.ne.s32.totalorder %s69, %s70
      %p79 = scmp.eq.s32.totalorder %s17, 0
      %p80 = por %p78, %p79
      %p81 = scmp.ne.s32.totalorder %s69, %s70
      %p82 = scmp.eq.s32.totalorder %s18, 1
      %p83 = por %p81, %p82
      %p85 = scmp.ne.s32.totalorder %s70, %s84
      %p86 = scmp.eq.s32.totalorder %s18, 0
      %p87 = por %p85, %p86
      %s88 = ssub.s32 %s12, %s19
      %p89 = scmp.eq.s32.totalorder %s88, 0
      %s91 = sadd.s32 %s90, 1
      %s92 = scalar_select %p89, %s90, %s91
      %p95 = pneg %p89
      %p96 = scmp.eq.s32.totalorder %s12, 1
      %p97 = por %p95, %p96
      %p98 = scmp.ne.s32.totalorder %s90, %s93
      %p99 = scmp.eq.s32.totalorder %s12, 0
      %p100 = por %p98, %p99
      %p101 = scmp.ne.s32.totalorder %s90, %s93
      %p102 = scmp.eq.s32.totalorder %s17, 1
      %p103 = por %p101, %p102
      %p104 = scmp.ne.s32.totalorder %s93, %s94
      %p105 = scmp.eq.s32.totalorder %s17, 0
      %p106 = por %p104, %p105
      %p107 = scmp.ne.s32.totalorder %s93, %s94
      %p108 = scmp.eq.s32.totalorder %s18, 1
      %p109 = por %p107, %p108
      %p111 = scmp.ne.s32.totalorder %s94, %s110
      %p112 = scmp.eq.s32.totalorder %s18, 0
      %p113 = por %p111, %p112
      %p114 = scmp.le.s32.totalorder 1, %s12
      %p115 = scmp.lt.s32.totalorder %s12, 3
      %p116 = pnand %p114, %p115
      %p117 = pneg %p116
      // Predicated region
      $region9: #{sequential_forward.1} parent=5 // pred_check
        _
      $region10: #{sequential_forward.1} parent=5 // pred_check_branch
        %119 = sbr.rel (%p116) target = $region12
      $region11: #{sequential_forward.1} parent=5 // pred_region
        %s120 = ssub.s32 %s12, 1
        // Predicated region
        $region13: #{sequential_forward.1} parent=11 // pred_check
          %p121 = pneg %p59
        $region14: #{sequential_forward.1} parent=11 // pred_check_branch
          %123 = sbr.rel (%p121) target = $region16
        $region15: #{sequential_forward.1} parent=11 // pred_region
          _
        $region16: #{sequential_forward.1} parent=11 // pred_fallthru
          _
        // Predicated region
        $region17: #{sequential_forward.1} parent=11 // pred_check
          %p124 = pneg %p80
        $region18: #{sequential_forward.1} parent=11 // pred_check_branch
          %126 = sbr.rel (%p124) target = $region20
        $region19: #{sequential_forward.1} parent=11 // pred_region
          _
        $region20: #{sequential_forward.1} parent=11 // pred_fallthru
          _
      $region12: #{sequential_forward.1} parent=5 // pred_fallthru
        _
      %p127 = scmp.lt.s32.totalorder %s12, 2
      // Predicated region
      $region21: #{sequential_forward.1} parent=5 // pred_check
        %p128 = pneg %p127
      $region22: #{sequential_forward.1} parent=5 // pred_check_branch
        %130 = sbr.rel (%p128) target = $region24
      $region23: #{sequential_forward.1} parent=5 // pred_region
        // Predicated region
        $region25: #{sequential_forward.1} parent=23 // pred_check
          %p131 = pneg %p32
        $region26: #{sequential_forward.1} parent=23 // pred_check_branch
          %133 = sbr.rel (%p131) target = $region28
        $region27: #{sequential_forward.1} parent=23 // pred_region
          %s134 = smul.u32 2, %s12
          %p135 = scmp.lt.s32.totalorder %s134, 3
          %s136 = scalar_select %p135, %s134, 3
          %s137 = smul.addr %s136, 32
          %s138 = smul.addr %s137, 8
          %s139 = scalar_lea.vmem %s0, %s138
          %s140 = smul.u32 2, %s12
        $region28: #{sequential_forward.1} parent=23 // pred_fallthru
          _
      $region24: #{sequential_forward.1} parent=5 // pred_fallthru
        _
      %p141 = scmp.le.s32.totalorder 1, %s12
      %p142 = scmp.lt.s32.totalorder %s12, 3
      %p143 = pnand %p141, %p142
      %p144 = pneg %p143
      // Predicated region
      $region29: #{sequential_forward.1} parent=5 // pred_check
        _
      $region30: #{sequential_forward.1} parent=5 // pred_check_branch
        %146 = sbr.rel (%p143) target = $region32
      $region31: #{sequential_forward.1} parent=5 // pred_region
        %s147 = ssub.s32 %s12, 1
        %s148 = smul.u32 2, %s17
        %p149 = scmp.lt.s32.totalorder %s148, 3
        %s150 = scalar_select %p149, %s148, 3
        %s151 = smul.addr %s150, 32
        %s152 = smul.addr %s151, 8
        %s153 = scalar_lea.vmem %s0, %s152
        %p154 = pneg %p38
        %p155 = pneg %p35
        %p156 = pneg %p59
        %p157 = pneg %p56
        %p158 = pneg %p80
        %p159 = pneg %p77
        %p160 = pneg %p106
        %p161 = pneg %p103
        %s162 = sand.u32 %s93, 1
        %s163 = scalar_lea.sflag [#allocation3], %s162
        %s164 = sand.u32 %s93, 1
        %s165 = smul.addr %s164, 128
        %s166 = scalar_lea.vmem [#allocation2], %s165
        %s167 = smul.u32 2, %s17
        %p168 = scmp.lt.s32.totalorder %s167, 3
        %s169 = scalar_select %p168, %s167, 3
        %s170 = smul.addr %s169, 32
        %s171 = smul.addr %s170, 8
        %s172 = scalar_lea.vmem %s0, %s171
        %s173 = smul.u32 2, %s17
        %s174 = smul.u32 16, %s17
        %v175 = vld [vmem:[%s172] sm:$0xff]
        %v176 = vld [vmem:[%s172 + $0x8] sm:$0xff]
        %v177 = vld [vmem:[%s172 + $0x10] sm:$0xff]
        %v178 = vld [vmem:[%s172 + $0x18] sm:$0xff]
        %v179 = vld [vmem:[%s172 + $0x20] sm:$0xff]
        %v180 = vld [vmem:[%s172 + $0x28] sm:$0xff]
        %v181 = vld [vmem:[%s172 + $0x30] sm:$0xff]
        %v182 = vld [vmem:[%s172 + $0x38] sm:$0xff]
        %v183 = vld [vmem:[%s172 + $0x40] sm:$0xff]
        %v184 = vld [vmem:[%s172 + $0x48] sm:$0xff]
        %v185 = vld [vmem:[%s172 + $0x50] sm:$0xff]
        %v186 = vld [vmem:[%s172 + $0x58] sm:$0xff]
        %v187 = vld [vmem:[%s172 + $0x60] sm:$0xff]
        %v188 = vld [vmem:[%s172 + $0x68] sm:$0xff]
        %v189 = vld [vmem:[%s172 + $0x70] sm:$0xff]
        %v190 = vld [vmem:[%s172 + $0x78] sm:$0xff]
        %v191 = vld [vmem:[%s172 + $0x80] sm:$0xff]
        %v192 = vld [vmem:[%s172 + $0x88] sm:$0xff]
        %v193 = vld [vmem:[%s172 + $0x90] sm:$0xff]
        %v194 = vld [vmem:[%s172 + $0x98] sm:$0xff]
        %v195 = vld [vmem:[%s172 + $0xa0] sm:$0xff]
        %v196 = vld [vmem:[%s172 + $0xa8] sm:$0xff]
        %v197 = vld [vmem:[%s172 + $0xb0] sm:$0xff]
        %v198 = vld [vmem:[%s172 + $0xb8] sm:$0xff]
        %v199 = vld [vmem:[%s172 + $0xc0] sm:$0xff]
        %v200 = vld [vmem:[%s172 + $0xc8] sm:$0xff]
        %v201 = vld [vmem:[%s172 + $0xd0] sm:$0xff]
        %v202 = vld [vmem:[%s172 + $0xd8] sm:$0xff]
        %v203 = vld [vmem:[%s172 + $0xe0] sm:$0xff]
        %v204 = vld [vmem:[%s172 + $0xe8] sm:$0xff]
        %v205 = vld [vmem:[%s172 + $0xf0] sm:$0xff]
        %v206 = vld [vmem:[%s172 + $0xf8] sm:$0xff]
        %v207 = vld [vmem:[%s172 + $0x100] sm:$0xff]
        %v208 = vld [vmem:[%s172 + $0x108] sm:$0xff]
        %v209 = vld [vmem:[%s172 + $0x110] sm:$0xff]
        %v210 = vld [vmem:[%s172 + $0x118] sm:$0xff]
        %v211 = vld [vmem:[%s172 + $0x120] sm:$0xff]
        %v212 = vld [vmem:[%s172 + $0x128] sm:$0xff]
        %v213 = vld [vmem:[%s172 + $0x130] sm:$0xff]
        %v214 = vld [vmem:[%s172 + $0x138] sm:$0xff]
        %v215 = vld [vmem:[%s172 + $0x140] sm:$0xff]
        %v216 = vld [vmem:[%s172 + $0x148] sm:$0xff]
        %v217 = vld [vmem:[%s172 + $0x150] sm:$0xff]
        %v218 = vld [vmem:[%s172 + $0x158] sm:$0xff]
        %v219 = vld [vmem:[%s172 + $0x160] sm:$0xff]
        %v220 = vld [vmem:[%s172 + $0x168] sm:$0xff]
        %v221 = vld [vmem:[%s172 + $0x170] sm:$0xff]
        %v222 = vld [vmem:[%s172 + $0x178] sm:$0xff]
        %v223 = vld [vmem:[%s172 + $0x180] sm:$0xff]
        %v224 = vld [vmem:[%s172 + $0x188] sm:$0xff]
        %v225 = vld [vmem:[%s172 + $0x190] sm:$0xff]
        %v226 = vld [vmem:[%s172 + $0x198] sm:$0xff]
        %v227 = vld [vmem:[%s172 + $0x1a0] sm:$0xff]
        %v228 = vld [vmem:[%s172 + $0x1a8] sm:$0xff]
        %v229 = vld [vmem:[%s172 + $0x1b0] sm:$0xff]
        %v230 = vld [vmem:[%s172 + $0x1b8] sm:$0xff]
        %v231 = vld [vmem:[%s172 + $0x1c0] sm:$0xff]
        %v232 = vld [vmem:[%s172 + $0x1c8] sm:$0xff]
        %v233 = vld [vmem:[%s172 + $0x1d0] sm:$0xff]
        %v234 = vld [vmem:[%s172 + $0x1d8] sm:$0xff]
        %v235 = vld [vmem:[%s172 + $0x1e0] sm:$0xff]
        %v236 = vld [vmem:[%s172 + $0x1e8] sm:$0xff]
        %v237 = vld [vmem:[%s172 + $0x1f0] sm:$0xff]
        %v238 = vld [vmem:[%s172 + $0x1f8] sm:$0xff]
        %v239 = vld [vmem:[%s1] sm:$0xff]
        %v240 = vld [vmem:[%s1 + $0x8] sm:$0xff]
        %v241 = vld [vmem:[%s1 + $0x10] sm:$0xff]
        %v242 = vld [vmem:[%s1 + $0x18] sm:$0x3]
        %v243 = vld [vmem:[%s2] sm:$0xff]
        %v244 = vld [vmem:[%s2 + $0x8] sm:$0xff]
        %v245 = vld [vmem:[%s2 + $0x10] sm:$0xff]
        %v246 = vld [vmem:[%s2 + $0x18] sm:$0xff]
        %v247 = vld [vmem:[%s2 + $0x20] sm:$0xff]
        %v248 = vld [vmem:[%s2 + $0x28] sm:$0xff]
        %v249 = vld [vmem:[%s2 + $0x30] sm:$0xff]
        %v250 = vld [vmem:[%s2 + $0x38] sm:$0xff]
        %v251 = vld [vmem:[%s2 + $0x40] sm:$0xff]
        %v252 = vld [vmem:[%s2 + $0x48] sm:$0xff]
        %v253 = vld [vmem:[%s2 + $0x50] sm:$0xff]
        %v254 = vld [vmem:[%s2 + $0x58] sm:$0xff]
        %v255 = vld [vmem:[%s2 + $0x60] sm:$0xff]
        %v256 = vld [vmem:[%s2 + $0x68] sm:$0xff]
        %v257 = vld [vmem:[%s2 + $0x70] sm:$0xff]
        %v258 = vld [vmem:[%s2 + $0x78] sm:$0xff]
        %v259 = vld [vmem:[%s2 + $0x80] sm:$0xff]
        %v260 = vld [vmem:[%s2 + $0x88] sm:$0xff]
        %v261 = vld [vmem:[%s2 + $0x90] sm:$0xff]
        %v262 = vld [vmem:[%s2 + $0x98] sm:$0xff]
        %v263 = vld [vmem:[%s2 + $0xa0] sm:$0xff]
        %v264 = vld [vmem:[%s2 + $0xa8] sm:$0xff]
        %v265 = vld [vmem:[%s2 + $0xb0] sm:$0xff]
        %v266 = vld [vmem:[%s2 + $0xb8] sm:$0xff]
        %v267 = vld [vmem:[%s2 + $0xc0] sm:$0xff]
        %v268 = vld [vmem:[%s2 + $0xc8] sm:$0xff]
        %v269 = vld [vmem:[%s2 + $0xd0] sm:$0xff]
        %v270 = vld [vmem:[%s2 + $0xd8] sm:$0xff]
        %v271 = vld [vmem:[%s2 + $0xe0] sm:$0xff]
        %v272 = vld [vmem:[%s2 + $0xe8] sm:$0xff]
        %v273 = vld [vmem:[%s2 + $0xf0] sm:$0xff]
        %v274 = vld [vmem:[%s2 + $0xf8] sm:$0xff]
        %v275 = vld [vmem:[%s2 + $0x100] sm:$0xff]
        %v276 = vld [vmem:[%s2 + $0x108] sm:$0xff]
        %v277 = vld [vmem:[%s2 + $0x110] sm:$0xff]
        %v278 = vld [vmem:[%s2 + $0x118] sm:$0xff]
        %v279 = vld [vmem:[%s2 + $0x120] sm:$0xff]
        %v280 = vld [vmem:[%s2 + $0x128] sm:$0xff]
        %v281 = vld [vmem:[%s2 + $0x130] sm:$0xff]
        %v282 = vld [vmem:[%s2 + $0x138] sm:$0xff]
        %v283 = vld [vmem:[%s2 + $0x140] sm:$0xff]
        %v284 = vld [vmem:[%s2 + $0x148] sm:$0xff]
        %v285 = vld [vmem:[%s2 + $0x150] sm:$0xff]
        %v286 = vld [vmem:[%s2 + $0x158] sm:$0xff]
        %v287 = vld [vmem:[%s2 + $0x160] sm:$0xff]
        %v288 = vld [vmem:[%s2 + $0x168] sm:$0xff]
        %v289 = vld [vmem:[%s2 + $0x170] sm:$0xff]
        %v290 = vld [vmem:[%s2 + $0x178] sm:$0xff]
        %v291 = vld [vmem:[%s2 + $0x180] sm:$0xff]
        %v292 = vld [vmem:[%s2 + $0x188] sm:$0xff]
        %v293 = vld [vmem:[%s2 + $0x190] sm:$0xff]
        %v294 = vld [vmem:[%s2 + $0x198] sm:$0xff]
        %v295 = vld [vmem:[%s2 + $0x1a0] sm:$0xff]
        %v296 = vld [vmem:[%s2 + $0x1a8] sm:$0xff]
        %v297 = vld [vmem:[%s2 + $0x1b0] sm:$0xff]
        %v298 = vld [vmem:[%s2 + $0x1b8] sm:$0xff]
        %v299 = vld [vmem:[%s2 + $0x1c0] sm:$0xff]
        %v300 = vld [vmem:[%s2 + $0x1c8] sm:$0xff]
        %v301 = vld [vmem:[%s2 + $0x1d0] sm:$0xff]
        %v302 = vld [vmem:[%s2 + $0x1d8] sm:$0xff]
        %v303 = vld [vmem:[%s2 + $0x1e0] sm:$0xff]
        %v304 = vld [vmem:[%s2 + $0x1e8] sm:$0xff]
        %v305 = vld [vmem:[%s2 + $0x1f0] sm:$0x1f]
        %vm354 = vcmask 1046528
        %v355 = vrot.slane %v175, 1
        %v356 = vrot.slane %v176, 1
        %v357 = vsel %vm354, %v355, %v356
        %v358 = vrot.slane %v177, 1
        %v359 = vrot.slane %v178, 1
        %v360 = vsel %vm354, %v358, %v359
        %v361 = vrot.slane %v179, 1
        %v362 = vrot.slane %v180, 1
        %v363 = vsel %vm354, %v361, %v362
        %v364 = vrot.slane %v181, 1
        %v365 = vrot.slane %v182, 1
        %v366 = vsel %vm354, %v364, %v365
        %v367 = vrot.slane %v183, 1
        %v368 = vrot.slane %v184, 1
        %v369 = vsel %vm354, %v367, %v368
        %v370 = vrot.slane %v185, 1
        %v371 = vrot.slane %v186, 1
        %v372 = vsel %vm354, %v370, %v371
        %v373 = vrot.slane %v187, 1
        %v374 = vrot.slane %v188, 1
        %v375 = vsel %vm354, %v373, %v374
        %v376 = vrot.slane %v189, 1
        %v377 = vrot.slane %v190, 1
        %v378 = vsel %vm354, %v376, %v377
        %v379 = vrot.slane %v191, 1
        %v380 = vrot.slane %v192, 1
        %v381 = vsel %vm354, %v379, %v380
        %v382 = vrot.slane %v193, 1
        %v383 = vrot.slane %v194, 1
        %v384 = vsel %vm354, %v382, %v383
        %v385 = vrot.slane %v195, 1
        %v386 = vrot.slane %v196, 1
        %v387 = vsel %vm354, %v385, %v386
        %v388 = vrot.slane %v197, 1
        %v389 = vrot.slane %v198, 1
        %v390 = vsel %vm354, %v388, %v389
        %v391 = vrot.slane %v207, 1
        %v392 = vrot.slane %v208, 1
        %v393 = vsel %vm354, %v391, %v392
        %v394 = vrot.slane %v209, 1
        %v395 = vrot.slane %v210, 1
        %v396 = vsel %vm354, %v394, %v395
        %v397 = vrot.slane %v211, 1
        %v398 = vrot.slane %v212, 1
        %v399 = vsel %vm354, %v397, %v398
        %v400 = vrot.slane %v213, 1
        %v401 = vrot.slane %v214, 1
        %v402 = vsel %vm354, %v400, %v401
        %v403 = vrot.slane %v215, 1
        %v404 = vrot.slane %v216, 1
        %v405 = vsel %vm354, %v403, %v404
        %v406 = vrot.slane %v217, 1
        %v407 = vrot.slane %v218, 1
        %v408 = vsel %vm354, %v406, %v407
        %v409 = vrot.slane %v219, 1
        %v410 = vrot.slane %v220, 1
        %v411 = vsel %vm354, %v409, %v410
        %v412 = vrot.slane %v221, 1
        %v413 = vrot.slane %v222, 1
        %v414 = vsel %vm354, %v412, %v413
        %v415 = vrot.slane %v223, 1
        %v416 = vrot.slane %v224, 1
        %v417 = vsel %vm354, %v415, %v416
        %v418 = vrot.slane %v225, 1
        %v419 = vrot.slane %v226, 1
        %v420 = vsel %vm354, %v418, %v419
        %v421 = vrot.slane %v227, 1
        %v422 = vrot.slane %v228, 1
        %v423 = vsel %vm354, %v421, %v422
        %v424 = vrot.slane %v229, 1
        %v425 = vrot.slane %v230, 1
        %v426 = vsel %vm354, %v424, %v425
        %427 = vrot.lane.b32.xlu0 %v357, 1
        %v428 = vpop.permute.xlu0 %427
        %429 = vrot.lane.b32.xlu0 %v356, 1
        %v430 = vpop.permute.xlu0 %429
        %431 = vrot.lane.b32.xlu0 %v360, 1
        %v432 = vpop.permute.xlu0 %431
        %433 = vrot.lane.b32.xlu0 %v359, 1
        %v434 = vpop.permute.xlu0 %433
        %435 = vrot.lane.b32.xlu0 %v363, 1
        %v436 = vpop.permute.xlu0 %435
        %437 = vrot.lane.b32.xlu0 %v362, 1
        %v438 = vpop.permute.xlu0 %437
        %439 = vrot.lane.b32.xlu0 %v366, 1
        %v440 = vpop.permute.xlu0 %439
        %441 = vrot.lane.b32.xlu0 %v365, 1
        %v442 = vpop.permute.xlu0 %441
        %443 = vrot.lane.b32.xlu0 %v369, 1
        %v444 = vpop.permute.xlu0 %443
        %445 = vrot.lane.b32.xlu0 %v368, 1
        %v446 = vpop.permute.xlu0 %445
        %447 = vrot.lane.b32.xlu0 %v372, 1
        %v448 = vpop.permute.xlu0 %447
        %449 = vrot.lane.b32.xlu0 %v371, 1
        %v450 = vpop.permute.xlu0 %449
        %451 = vrot.lane.b32.xlu0 %v375, 1
        %v452 = vpop.permute.xlu0 %451
        %453 = vrot.lane.b32.xlu0 %v374, 1
        %v454 = vpop.permute.xlu0 %453
        %455 = vrot.lane.b32.xlu0 %v378, 1
        %v456 = vpop.permute.xlu0 %455
        %457 = vrot.lane.b32.xlu0 %v377, 1
        %v458 = vpop.permute.xlu0 %457
        %459 = vrot.lane.b32.xlu0 %v381, 1
        %v460 = vpop.permute.xlu0 %459
        %461 = vrot.lane.b32.xlu0 %v380, 1
        %v462 = vpop.permute.xlu0 %461
        %463 = vrot.lane.b32.xlu0 %v384, 1
        %v464 = vpop.permute.xlu0 %463
        %465 = vrot.lane.b32.xlu0 %v383, 1
        %v466 = vpop.permute.xlu0 %465
        %467 = vrot.lane.b32.xlu0 %v387, 1
        %v468 = vpop.permute.xlu0 %467
        %469 = vrot.lane.b32.xlu0 %v386, 1
        %v470 = vpop.permute.xlu0 %469
        %471 = vrot.lane.b32.xlu0 %v390, 1
        %v472 = vpop.permute.xlu0 %471
        %473 = vrot.lane.b32.xlu0 %v389, 1
        %v474 = vpop.permute.xlu0 %473
        %475 = vrot.lane.b32.xlu0 %v393, 1
        %v476 = vpop.permute.xlu0 %475
        %477 = vrot.lane.b32.xlu0 %v392, 1
        %v478 = vpop.permute.xlu0 %477
        %479 = vrot.lane.b32.xlu0 %v396, 1
        %v480 = vpop.permute.xlu0 %479
        %481 = vrot.lane.b32.xlu0 %v395, 1
        %v482 = vpop.permute.xlu0 %481
        %483 = vrot.lane.b32.xlu0 %v399, 1
        %v484 = vpop.permute.xlu0 %483
        %485 = vrot.lane.b32.xlu0 %v398, 1
        %v486 = vpop.permute.xlu0 %485
        %487 = vrot.lane.b32.xlu0 %v402, 1
        %v488 = vpop.permute.xlu0 %487
        %489 = vrot.lane.b32.xlu0 %v401, 1
        %v490 = vpop.permute.xlu0 %489
        %491 = vrot.lane.b32.xlu0 %v405, 1
        %v492 = vpop.permute.xlu0 %491
        %493 = vrot.lane.b32.xlu0 %v404, 1
        %v494 = vpop.permute.xlu0 %493
        %495 = vrot.lane.b32.xlu0 %v408, 1
        %v496 = vpop.permute.xlu0 %495
        %497 = vrot.lane.b32.xlu0 %v407, 1
        %v498 = vpop.permute.xlu0 %497
        %499 = vrot.lane.b32.xlu0 %v411, 1
        %v500 = vpop.permute.xlu0 %499
        %501 = vrot.lane.b32.xlu0 %v410, 1
        %v502 = vpop.permute.xlu0 %501
        %503 = vrot.lane.b32.xlu0 %v414, 1
        %v504 = vpop.permute.xlu0 %503
        %505 = vrot.lane.b32.xlu0 %v413, 1
        %v506 = vpop.permute.xlu0 %505
        %507 = vrot.lane.b32.xlu0 %v417, 1
        %v508 = vpop.permute.xlu0 %507
        %509 = vrot.lane.b32.xlu0 %v416, 1
        %v510 = vpop.permute.xlu0 %509
        %511 = vrot.lane.b32.xlu0 %v420, 1
        %v512 = vpop.permute.xlu0 %511
        %513 = vrot.lane.b32.xlu0 %v419, 1
        %v514 = vpop.permute.xlu0 %513
        %515 = vrot.lane.b32.xlu0 %v423, 1
        %v516 = vpop.permute.xlu0 %515
        %517 = vrot.lane.b32.xlu0 %v422, 1
        %v518 = vpop.permute.xlu0 %517
        %519 = vrot.lane.b32.xlu0 %v426, 1
        %v520 = vpop.permute.xlu0 %519
        %521 = vrot.lane.b32.xlu0 %v425, 1
        %v522 = vpop.permute.xlu0 %521
        %vm571 = vcmask 1045504
        %v572 = vrot.slane %v175, 2
        %v573 = vrot.slane %v176, 2
        %v574 = vsel %vm571, %v572, %v573
        %v575 = vrot.slane %v177, 2
        %v576 = vrot.slane %v178, 2
        %v577 = vsel %vm571, %v575, %v576
        %v578 = vrot.slane %v179, 2
        %v579 = vrot.slane %v180, 2
        %v580 = vsel %vm571, %v578, %v579
        %v581 = vrot.slane %v181, 2
        %v582 = vrot.slane %v182, 2
        %v583 = vsel %vm571, %v581, %v582
        %v584 = vrot.slane %v183, 2
        %v585 = vrot.slane %v184, 2
        %v586 = vsel %vm571, %v584, %v585
        %v587 = vrot.slane %v185, 2
        %v588 = vrot.slane %v186, 2
        %v589 = vsel %vm571, %v587, %v588
        %v590 = vrot.slane %v187, 2
        %v591 = vrot.slane %v188, 2
        %v592 = vsel %vm571, %v590, %v591
        %v593 = vrot.slane %v189, 2
        %v594 = vrot.slane %v190, 2
        %v595 = vsel %vm571, %v593, %v594
        %v596 = vrot.slane %v191, 2
        %v597 = vrot.slane %v192, 2
        %v598 = vsel %vm571, %v596, %v597
        %v599 = vrot.slane %v193, 2
        %v600 = vrot.slane %v194, 2
        %v601 = vsel %vm571, %v599, %v600
        %v602 = vrot.slane %v195, 2
        %v603 = vrot.slane %v196, 2
        %v604 = vsel %vm571, %v602, %v603
        %v605 = vrot.slane %v197, 2
        %v606 = vrot.slane %v198, 2
        %v607 = vsel %vm571, %v605, %v606
        %v608 = vrot.slane %v207, 2
        %v609 = vrot.slane %v208, 2
        %v610 = vsel %vm571, %v608, %v609
        %v611 = vrot.slane %v209, 2
        %v612 = vrot.slane %v210, 2
        %v613 = vsel %vm571, %v611, %v612
        %v614 = vrot.slane %v211, 2
        %v615 = vrot.slane %v212, 2
        %v616 = vsel %vm571, %v614, %v615
        %v617 = vrot.slane %v213, 2
        %v618 = vrot.slane %v214, 2
        %v619 = vsel %vm571, %v617, %v618
        %v620 = vrot.slane %v215, 2
        %v621 = vrot.slane %v216, 2
        %v622 = vsel %vm571, %v620, %v621
        %v623 = vrot.slane %v217, 2
        %v624 = vrot.slane %v218, 2
        %v625 = vsel %vm571, %v623, %v624
        %v626 = vrot.slane %v219, 2
        %v627 = vrot.slane %v220, 2
        %v628 = vsel %vm571, %v626, %v627
        %v629 = vrot.slane %v221, 2
        %v630 = vrot.slane %v222, 2
        %v631 = vsel %vm571, %v629, %v630
        %v632 = vrot.slane %v223, 2
        %v633 = vrot.slane %v224, 2
        %v634 = vsel %vm571, %v632, %v633
        %v635 = vrot.slane %v225, 2
        %v636 = vrot.slane %v226, 2
        %v637 = vsel %vm571, %v635, %v636
        %v638 = vrot.slane %v227, 2
        %v639 = vrot.slane %v228, 2
        %v640 = vsel %vm571, %v638, %v639
        %v641 = vrot.slane %v229, 2
        %v642 = vrot.slane %v230, 2
        %v643 = vsel %vm571, %v641, %v642
        %644 = vrot.lane.b32.xlu0 %v574, 2
        %v645 = vpop.permute.xlu0 %644
        %646 = vrot.lane.b32.xlu0 %v573, 2
        %v647 = vpop.permute.xlu0 %646
        %648 = vrot.lane.b32.xlu0 %v577, 2
        %v649 = vpop.permute.xlu0 %648
        %650 = vrot.lane.b32.xlu0 %v576, 2
        %v651 = vpop.permute.xlu0 %650
        %652 = vrot.lane.b32.xlu0 %v580, 2
        %v653 = vpop.permute.xlu0 %652
        %654 = vrot.lane.b32.xlu0 %v579, 2
        %v655 = vpop.permute.xlu0 %654
        %656 = vrot.lane.b32.xlu0 %v583, 2
        %v657 = vpop.permute.xlu0 %656
        %658 = vrot.lane.b32.xlu0 %v582, 2
        %v659 = vpop.permute.xlu0 %658
        %660 = vrot.lane.b32.xlu0 %v586, 2
        %v661 = vpop.permute.xlu0 %660
        %662 = vrot.lane.b32.xlu0 %v585, 2
        %v663 = vpop.permute.xlu0 %662
        %664 = vrot.lane.b32.xlu0 %v589, 2
        %v665 = vpop.permute.xlu0 %664
        %666 = vrot.lane.b32.xlu0 %v588, 2
        %v667 = vpop.permute.xlu0 %666
        %668 = vrot.lane.b32.xlu0 %v592, 2
        %v669 = vpop.permute.xlu0 %668
        %670 = vrot.lane.b32.xlu0 %v591, 2
        %v671 = vpop.permute.xlu0 %670
        %672 = vrot.lane.b32.xlu0 %v595, 2
        %v673 = vpop.permute.xlu0 %672
        %674 = vrot.lane.b32.xlu0 %v594, 2
        %v675 = vpop.permute.xlu0 %674
        %676 = vrot.lane.b32.xlu0 %v598, 2
        %v677 = vpop.permute.xlu0 %676
        %678 = vrot.lane.b32.xlu0 %v597, 2
        %v679 = vpop.permute.xlu0 %678
        %680 = vrot.lane.b32.xlu0 %v601, 2
        %v681 = vpop.permute.xlu0 %680
        %682 = vrot.lane.b32.xlu0 %v600, 2
        %v683 = vpop.permute.xlu0 %682
        %684 = vrot.lane.b32.xlu0 %v604, 2
        %v685 = vpop.permute.xlu0 %684
        %686 = vrot.lane.b32.xlu0 %v603, 2
        %v687 = vpop.permute.xlu0 %686
        %688 = vrot.lane.b32.xlu0 %v607, 2
        %v689 = vpop.permute.xlu0 %688
        %690 = vrot.lane.b32.xlu0 %v606, 2
        %v691 = vpop.permute.xlu0 %690
        %692 = vrot.lane.b32.xlu0 %v610, 2
        %v693 = vpop.permute.xlu0 %692
        %694 = vrot.lane.b32.xlu0 %v609, 2
        %v695 = vpop.permute.xlu0 %694
        %696 = vrot.lane.b32.xlu0 %v613, 2
        %v697 = vpop.permute.xlu0 %696
        %698 = vrot.lane.b32.xlu0 %v612, 2
        %v699 = vpop.permute.xlu0 %698
        %700 = vrot.lane.b32.xlu0 %v616, 2
        %v701 = vpop.permute.xlu0 %700
        %702 = vrot.lane.b32.xlu0 %v615, 2
        %v703 = vpop.permute.xlu0 %702
        %704 = vrot.lane.b32.xlu0 %v619, 2
        %v705 = vpop.permute.xlu0 %704
        %706 = vrot.lane.b32.xlu0 %v618, 2
        %v707 = vpop.permute.xlu0 %706
        %708 = vrot.lane.b32.xlu0 %v622, 2
        %v709 = vpop.permute.xlu0 %708
        %710 = vrot.lane.b32.xlu0 %v621, 2
        %v711 = vpop.permute.xlu0 %710
        %712 = vrot.lane.b32.xlu0 %v625, 2
        %v713 = vpop.permute.xlu0 %712
        %714 = vrot.lane.b32.xlu0 %v624, 2
        %v715 = vpop.permute.xlu0 %714
        %716 = vrot.lane.b32.xlu0 %v628, 2
        %v717 = vpop.permute.xlu0 %716
        %718 = vrot.lane.b32.xlu0 %v627, 2
        %v719 = vpop.permute.xlu0 %718
        %720 = vrot.lane.b32.xlu0 %v631, 2
        %v721 = vpop.permute.xlu0 %720
        %722 = vrot.lane.b32.xlu0 %v630, 2
        %v723 = vpop.permute.xlu0 %722
        %724 = vrot.lane.b32.xlu0 %v634, 2
        %v725 = vpop.permute.xlu0 %724
        %726 = vrot.lane.b32.xlu0 %v633, 2
        %v727 = vpop.permute.xlu0 %726
        %728 = vrot.lane.b32.xlu0 %v637, 2
        %v729 = vpop.permute.xlu0 %728
        %730 = vrot.lane.b32.xlu0 %v636, 2
        %v731 = vpop.permute.xlu0 %730
        %732 = vrot.lane.b32.xlu0 %v640, 2
        %v733 = vpop.permute.xlu0 %732
        %734 = vrot.lane.b32.xlu0 %v639, 2
        %v735 = vpop.permute.xlu0 %734
        %736 = vrot.lane.b32.xlu0 %v643, 2
        %v737 = vpop.permute.xlu0 %736
        %738 = vrot.lane.b32.xlu0 %v642, 2
        %v739 = vpop.permute.xlu0 %738
        %vm788 = vcmask 1044480
        %v789 = vrot.slane %v175, 3
        %v790 = vrot.slane %v176, 3
        %v791 = vsel %vm788, %v789, %v790
        %v792 = vrot.slane %v177, 3
        %v793 = vrot.slane %v178, 3
        %v794 = vsel %vm788, %v792, %v793
        %v795 = vrot.slane %v179, 3
        %v796 = vrot.slane %v180, 3
        %v797 = vsel %vm788, %v795, %v796
        %v798 = vrot.slane %v181, 3
        %v799 = vrot.slane %v182, 3
        %v800 = vsel %vm788, %v798, %v799
        %v801 = vrot.slane %v183, 3
        %v802 = vrot.slane %v184, 3
        %v803 = vsel %vm788, %v801, %v802
        %v804 = vrot.slane %v185, 3
        %v805 = vrot.slane %v186, 3
        %v806 = vsel %vm788, %v804, %v805
        %v807 = vrot.slane %v187, 3
        %v808 = vrot.slane %v188, 3
        %v809 = vsel %vm788, %v807, %v808
        %v810 = vrot.slane %v189, 3
        %v811 = vrot.slane %v190, 3
        %v812 = vsel %vm788, %v810, %v811
        %v813 = vrot.slane %v191, 3
        %v814 = vrot.slane %v192, 3
        %v815 = vsel %vm788, %v813, %v814
        %v816 = vrot.slane %v193, 3
        %v817 = vrot.slane %v194, 3
        %v818 = vsel %vm788, %v816, %v817
        %v819 = vrot.slane %v195, 3
        %v820 = vrot.slane %v196, 3
        %v821 = vsel %vm788, %v819, %v820
        %v822 = vrot.slane %v197, 3
        %v823 = vrot.slane %v198, 3
        %v824 = vsel %vm788, %v822, %v823
        %v825 = vrot.slane %v207, 3
        %v826 = vrot.slane %v208, 3
        %v827 = vsel %vm788, %v825, %v826
        %v828 = vrot.slane %v209, 3
        %v829 = vrot.slane %v210, 3
        %v830 = vsel %vm788, %v828, %v829
        %v831 = vrot.slane %v211, 3
        %v832 = vrot.slane %v212, 3
        %v833 = vsel %vm788, %v831, %v832
        %v834 = vrot.slane %v213, 3
        %v835 = vrot.slane %v214, 3
        %v836 = vsel %vm788, %v834, %v835
        %v837 = vrot.slane %v215, 3
        %v838 = vrot.slane %v216, 3
        %v839 = vsel %vm788, %v837, %v838
        %v840 = vrot.slane %v217, 3
        %v841 = vrot.slane %v218, 3
        %v842 = vsel %vm788, %v840, %v841
        %v843 = vrot.slane %v219, 3
        %v844 = vrot.slane %v220, 3
        %v845 = vsel %vm788, %v843, %v844
        %v846 = vrot.slane %v221, 3
        %v847 = vrot.slane %v222, 3
        %v848 = vsel %vm788, %v846, %v847
        %v849 = vrot.slane %v223, 3
        %v850 = vrot.slane %v224, 3
        %v851 = vsel %vm788, %v849, %v850
        %v852 = vrot.slane %v225, 3
        %v853 = vrot.slane %v226, 3
        %v854 = vsel %vm788, %v852, %v853
        %v855 = vrot.slane %v227, 3
        %v856 = vrot.slane %v228, 3
        %v857 = vsel %vm788, %v855, %v856
        %v858 = vrot.slane %v229, 3
        %v859 = vrot.slane %v230, 3
        %v860 = vsel %vm788, %v858, %v859
        %861 = vrot.lane.b32.xlu0 %v791, 3
        %v862 = vpop.permute.xlu0 %861
        %863 = vrot.lane.b32.xlu0 %v790, 3
        %v864 = vpop.permute.xlu0 %863
        %865 = vrot.lane.b32.xlu0 %v794, 3
        %v866 = vpop.permute.xlu0 %865
        %867 = vrot.lane.b32.xlu0 %v793, 3
        %v868 = vpop.permute.xlu0 %867
        %869 = vrot.lane.b32.xlu0 %v797, 3
        %v870 = vpop.permute.xlu0 %869
        %871 = vrot.lane.b32.xlu0 %v796, 3
        %v872 = vpop.permute.xlu0 %871
        %873 = vrot.lane.b32.xlu0 %v800, 3
        %v874 = vpop.permute.xlu0 %873
        %875 = vrot.lane.b32.xlu0 %v799, 3
        %v876 = vpop.permute.xlu0 %875
        %877 = vrot.lane.b32.xlu0 %v803, 3
        %v878 = vpop.permute.xlu0 %877
        %879 = vrot.lane.b32.xlu0 %v802, 3
        %v880 = vpop.permute.xlu0 %879
        %881 = vrot.lane.b32.xlu0 %v806, 3
        %v882 = vpop.permute.xlu0 %881
        %883 = vrot.lane.b32.xlu0 %v805, 3
        %v884 = vpop.permute.xlu0 %883
        %885 = vrot.lane.b32.xlu0 %v809, 3
        %v886 = vpop.permute.xlu0 %885
        %887 = vrot.lane.b32.xlu0 %v808, 3
        %v888 = vpop.permute.xlu0 %887
        %889 = vrot.lane.b32.xlu0 %v812, 3
        %v890 = vpop.permute.xlu0 %889
        %891 = vrot.lane.b32.xlu0 %v811, 3
        %v892 = vpop.permute.xlu0 %891
        %893 = vrot.lane.b32.xlu0 %v815, 3
        %v894 = vpop.permute.xlu0 %893
        %895 = vrot.lane.b32.xlu0 %v814, 3
        %v896 = vpop.permute.xlu0 %895
        %897 = vrot.lane.b32.xlu0 %v818, 3
        %v898 = vpop.permute.xlu0 %897
        %899 = vrot.lane.b32.xlu0 %v817, 3
        %v900 = vpop.permute.xlu0 %899
        %901 = vrot.lane.b32.xlu0 %v821, 3
        %v902 = vpop.permute.xlu0 %901
        %903 = vrot.lane.b32.xlu0 %v820, 3
        %v904 = vpop.permute.xlu0 %903
        %905 = vrot.lane.b32.xlu0 %v824, 3
        %v906 = vpop.permute.xlu0 %905
        %907 = vrot.lane.b32.xlu0 %v823, 3
        %v908 = vpop.permute.xlu0 %907
        %909 = vrot.lane.b32.xlu0 %v827, 3
        %v910 = vpop.permute.xlu0 %909
        %911 = vrot.lane.b32.xlu0 %v826, 3
        %v912 = vpop.permute.xlu0 %911
        %913 = vrot.lane.b32.xlu0 %v830, 3
        %v914 = vpop.permute.xlu0 %913
        %915 = vrot.lane.b32.xlu0 %v829, 3
        %v916 = vpop.permute.xlu0 %915
        %917 = vrot.lane.b32.xlu0 %v833, 3
        %v918 = vpop.permute.xlu0 %917
        %919 = vrot.lane.b32.xlu0 %v832, 3
        %v920 = vpop.permute.xlu0 %919
        %921 = vrot.lane.b32.xlu0 %v836, 3
        %v922 = vpop.permute.xlu0 %921
        %923 = vrot.lane.b32.xlu0 %v835, 3
        %v924 = vpop.permute.xlu0 %923
        %925 = vrot.lane.b32.xlu0 %v839, 3
        %v926 = vpop.permute.xlu0 %925
        %927 = vrot.lane.b32.xlu0 %v838, 3
        %v928 = vpop.permute.xlu0 %927
        %929 = vrot.lane.b32.xlu0 %v842, 3
        %v930 = vpop.permute.xlu0 %929
        %931 = vrot.lane.b32.xlu0 %v841, 3
        %v932 = vpop.permute.xlu0 %931
        %933 = vrot.lane.b32.xlu0 %v845, 3
        %v934 = vpop.permute.xlu0 %933
        %935 = vrot.lane.b32.xlu0 %v844, 3
        %v936 = vpop.permute.xlu0 %935
        %937 = vrot.lane.b32.xlu0 %v848, 3
        %v938 = vpop.permute.xlu0 %937
        %939 = vrot.lane.b32.xlu0 %v847, 3
        %v940 = vpop.permute.xlu0 %939
        %941 = vrot.lane.b32.xlu0 %v851, 3
        %v942 = vpop.permute.xlu0 %941
        %943 = vrot.lane.b32.xlu0 %v850, 3
        %v944 = vpop.permute.xlu0 %943
        %945 = vrot.lane.b32.xlu0 %v854, 3
        %v946 = vpop.permute.xlu0 %945
        %947 = vrot.lane.b32.xlu0 %v853, 3
        %v948 = vpop.permute.xlu0 %947
        %949 = vrot.lane.b32.xlu0 %v857, 3
        %v950 = vpop.permute.xlu0 %949
        %951 = vrot.lane.b32.xlu0 %v856, 3
        %v952 = vpop.permute.xlu0 %951
        %953 = vrot.lane.b32.xlu0 %v860, 3
        %v954 = vpop.permute.xlu0 %953
        %955 = vrot.lane.b32.xlu0 %v859, 3
        %v956 = vpop.permute.xlu0 %955
        %vm1005 = vcmask 1043456
        %v1006 = vrot.slane %v175, 4
        %v1007 = vrot.slane %v176, 4
        %v1008 = vsel %vm1005, %v1006, %v1007
        %v1009 = vrot.slane %v177, 4
        %v1010 = vrot.slane %v178, 4
        %v1011 = vsel %vm1005, %v1009, %v1010
        %v1012 = vrot.slane %v179, 4
        %v1013 = vrot.slane %v180, 4
        %v1014 = vsel %vm1005, %v1012, %v1013
        %v1015 = vrot.slane %v181, 4
        %v1016 = vrot.slane %v182, 4
        %v1017 = vsel %vm1005, %v1015, %v1016
        %v1018 = vrot.slane %v183, 4
        %v1019 = vrot.slane %v184, 4
        %v1020 = vsel %vm1005, %v1018, %v1019
        %v1021 = vrot.slane %v185, 4
        %v1022 = vrot.slane %v186, 4
        %v1023 = vsel %vm1005, %v1021, %v1022
        %v1024 = vrot.slane %v187, 4
        %v1025 = vrot.slane %v188, 4
        %v1026 = vsel %vm1005, %v1024, %v1025
        %v1027 = vrot.slane %v189, 4
        %v1028 = vrot.slane %v190, 4
        %v1029 = vsel %vm1005, %v1027, %v1028
        %v1030 = vrot.slane %v191, 4
        %v1031 = vrot.slane %v192, 4
        %v1032 = vsel %vm1005, %v1030, %v1031
        %v1033 = vrot.slane %v193, 4
        %v1034 = vrot.slane %v194, 4
        %v1035 = vsel %vm1005, %v1033, %v1034
        %v1036 = vrot.slane %v195, 4
        %v1037 = vrot.slane %v196, 4
        %v1038 = vsel %vm1005, %v1036, %v1037
        %v1039 = vrot.slane %v197, 4
        %v1040 = vrot.slane %v198, 4
        %v1041 = vsel %vm1005, %v1039, %v1040
        %v1042 = vrot.slane %v207, 4
        %v1043 = vrot.slane %v208, 4
        %v1044 = vsel %vm1005, %v1042, %v1043
        %v1045 = vrot.slane %v209, 4
        %v1046 = vrot.slane %v210, 4
        %v1047 = vsel %vm1005, %v1045, %v1046
        %v1048 = vrot.slane %v211, 4
        %v1049 = vrot.slane %v212, 4
        %v1050 = vsel %vm1005, %v1048, %v1049
        %v1051 = vrot.slane %v213, 4
        %v1052 = vrot.slane %v214, 4
        %v1053 = vsel %vm1005, %v1051, %v1052
        %v1054 = vrot.slane %v215, 4
        %v1055 = vrot.slane %v216, 4
        %v1056 = vsel %vm1005, %v1054, %v1055
        %v1057 = vrot.slane %v217, 4
        %v1058 = vrot.slane %v218, 4
        %v1059 = vsel %vm1005, %v1057, %v1058
        %v1060 = vrot.slane %v219, 4
        %v1061 = vrot.slane %v220, 4
        %v1062 = vsel %vm1005, %v1060, %v1061
        %v1063 = vrot.slane %v221, 4
        %v1064 = vrot.slane %v222, 4
        %v1065 = vsel %vm1005, %v1063, %v1064
        %v1066 = vrot.slane %v223, 4
        %v1067 = vrot.slane %v224, 4
        %v1068 = vsel %vm1005, %v1066, %v1067
        %v1069 = vrot.slane %v225, 4
        %v1070 = vrot.slane %v226, 4
        %v1071 = vsel %vm1005, %v1069, %v1070
        %v1072 = vrot.slane %v227, 4
        %v1073 = vrot.slane %v228, 4
        %v1074 = vsel %vm1005, %v1072, %v1073
        %v1075 = vrot.slane %v229, 4
        %v1076 = vrot.slane %v230, 4
        %v1077 = vsel %vm1005, %v1075, %v1076
        %1078 = vrot.lane.b32.xlu0 %v1008, 4
        %v1079 = vpop.permute.xlu0 %1078
        %1080 = vrot.lane.b32.xlu0 %v1007, 4
        %v1081 = vpop.permute.xlu0 %1080
        %1082 = vrot.lane.b32.xlu0 %v1011, 4
        %v1083 = vpop.permute.xlu0 %1082
        %1084 = vrot.lane.b32.xlu0 %v1010, 4
        %v1085 = vpop.permute.xlu0 %1084
        %1086 = vrot.lane.b32.xlu0 %v1014, 4
        %v1087 = vpop.permute.xlu0 %1086
        %1088 = vrot.lane.b32.xlu0 %v1013, 4
        %v1089 = vpop.permute.xlu0 %1088
        %1090 = vrot.lane.b32.xlu0 %v1017, 4
        %v1091 = vpop.permute.xlu0 %1090
        %1092 = vrot.lane.b32.xlu0 %v1016, 4
        %v1093 = vpop.permute.xlu0 %1092
        %1094 = vrot.lane.b32.xlu0 %v1020, 4
        %v1095 = vpop.permute.xlu0 %1094
        %1096 = vrot.lane.b32.xlu0 %v1019, 4
        %v1097 = vpop.permute.xlu0 %1096
        %1098 = vrot.lane.b32.xlu0 %v1023, 4
        %v1099 = vpop.permute.xlu0 %1098
        %1100 = vrot.lane.b32.xlu0 %v1022, 4
        %v1101 = vpop.permute.xlu0 %1100
        %1102 = vrot.lane.b32.xlu0 %v1026, 4
        %v1103 = vpop.permute.xlu0 %1102
        %1104 = vrot.lane.b32.xlu0 %v1025, 4
        %v1105 = vpop.permute.xlu0 %1104
        %1106 = vrot.lane.b32.xlu0 %v1029, 4
        %v1107 = vpop.permute.xlu0 %1106
        %1108 = vrot.lane.b32.xlu0 %v1028, 4
        %v1109 = vpop.permute.xlu0 %1108
        %1110 = vrot.lane.b32.xlu0 %v1032, 4
        %v1111 = vpop.permute.xlu0 %1110
        %1112 = vrot.lane.b32.xlu0 %v1031, 4
        %v1113 = vpop.permute.xlu0 %1112
        %1114 = vrot.lane.b32.xlu0 %v1035, 4
        %v1115 = vpop.permute.xlu0 %1114
        %1116 = vrot.lane.b32.xlu0 %v1034, 4
        %v1117 = vpop.permute.xlu0 %1116
        %1118 = vrot.lane.b32.xlu0 %v1038, 4
        %v1119 = vpop.permute.xlu0 %1118
        %1120 = vrot.lane.b32.xlu0 %v1037, 4
        %v1121 = vpop.permute.xlu0 %1120
        %1122 = vrot.lane.b32.xlu0 %v1041, 4
        %v1123 = vpop.permute.xlu0 %1122
        %1124 = vrot.lane.b32.xlu0 %v1040, 4
        %v1125 = vpop.permute.xlu0 %1124
        %1126 = vrot.lane.b32.xlu0 %v1044, 4
        %v1127 = vpop.permute.xlu0 %1126
        %1128 = vrot.lane.b32.xlu0 %v1043, 4
        %v1129 = vpop.permute.xlu0 %1128
        %1130 = vrot.lane.b32.xlu0 %v1047, 4
        %v1131 = vpop.permute.xlu0 %1130
        %1132 = vrot.lane.b32.xlu0 %v1046, 4
        %v1133 = vpop.permute.xlu0 %1132
        %1134 = vrot.lane.b32.xlu0 %v1050, 4
        %v1135 = vpop.permute.xlu0 %1134
        %1136 = vrot.lane.b32.xlu0 %v1049, 4
        %v1137 = vpop.permute.xlu0 %1136
        %1138 = vrot.lane.b32.xlu0 %v1053, 4
        %v1139 = vpop.permute.xlu0 %1138
        %1140 = vrot.lane.b32.xlu0 %v1052, 4
        %v1141 = vpop.permute.xlu0 %1140
        %1142 = vrot.lane.b32.xlu0 %v1056, 4
        %v1143 = vpop.permute.xlu0 %1142
        %1144 = vrot.lane.b32.xlu0 %v1055, 4
        %v1145 = vpop.permute.xlu0 %1144
        %1146 = vrot.lane.b32.xlu0 %v1059, 4
        %v1147 = vpop.permute.xlu0 %1146
        %1148 = vrot.lane.b32.xlu0 %v1058, 4
        %v1149 = vpop.permute.xlu0 %1148
        %1150 = vrot.lane.b32.xlu0 %v1062, 4
        %v1151 = vpop.permute.xlu0 %1150
        %1152 = vrot.lane.b32.xlu0 %v1061, 4
        %v1153 = vpop.permute.xlu0 %1152
        %1154 = vrot.lane.b32.xlu0 %v1065, 4
        %v1155 = vpop.permute.xlu0 %1154
        %1156 = vrot.lane.b32.xlu0 %v1064, 4
        %v1157 = vpop.permute.xlu0 %1156
        %1158 = vrot.lane.b32.xlu0 %v1068, 4
        %v1159 = vpop.permute.xlu0 %1158
        %1160 = vrot.lane.b32.xlu0 %v1067, 4
        %v1161 = vpop.permute.xlu0 %1160
        %1162 = vrot.lane.b32.xlu0 %v1071, 4
        %v1163 = vpop.permute.xlu0 %1162
        %1164 = vrot.lane.b32.xlu0 %v1070, 4
        %v1165 = vpop.permute.xlu0 %1164
        %1166 = vrot.lane.b32.xlu0 %v1074, 4
        %v1167 = vpop.permute.xlu0 %1166
        %1168 = vrot.lane.b32.xlu0 %v1073, 4
        %v1169 = vpop.permute.xlu0 %1168
        %1170 = vrot.lane.b32.xlu0 %v1077, 4
        %v1171 = vpop.permute.xlu0 %1170
        %1172 = vrot.lane.b32.xlu0 %v1076, 4
        %v1173 = vpop.permute.xlu0 %1172
        %1226 = vrot.lane.b32.xlu0 %v177, 5
        %v1227 = vpop.permute.xlu0 %1226
        %1228 = vrot.lane.b32.xlu0 %v178, 5
        %v1229 = vpop.permute.xlu0 %1228
        %1230 = vrot.lane.b32.xlu0 %v179, 5
        %v1231 = vpop.permute.xlu0 %1230
        %1232 = vrot.lane.b32.xlu0 %v180, 5
        %v1233 = vpop.permute.xlu0 %1232
        %1234 = vrot.lane.b32.xlu0 %v181, 5
        %v1235 = vpop.permute.xlu0 %1234
        %1236 = vrot.lane.b32.xlu0 %v182, 5
        %v1237 = vpop.permute.xlu0 %1236
        %1238 = vrot.lane.b32.xlu0 %v183, 5
        %v1239 = vpop.permute.xlu0 %1238
        %1240 = vrot.lane.b32.xlu0 %v184, 5
        %v1241 = vpop.permute.xlu0 %1240
        %1242 = vrot.lane.b32.xlu0 %v185, 5
        %v1243 = vpop.permute.xlu0 %1242
        %1244 = vrot.lane.b32.xlu0 %v186, 5
        %v1245 = vpop.permute.xlu0 %1244
        %1246 = vrot.lane.b32.xlu0 %v187, 5
        %v1247 = vpop.permute.xlu0 %1246
        %1248 = vrot.lane.b32.xlu0 %v188, 5
        %v1249 = vpop.permute.xlu0 %1248
        %1250 = vrot.lane.b32.xlu0 %v189, 5
        %v1251 = vpop.permute.xlu0 %1250
        %1252 = vrot.lane.b32.xlu0 %v190, 5
        %v1253 = vpop.permute.xlu0 %1252
        %1254 = vrot.lane.b32.xlu0 %v191, 5
        %v1255 = vpop.permute.xlu0 %1254
        %1256 = vrot.lane.b32.xlu0 %v192, 5
        %v1257 = vpop.permute.xlu0 %1256
        %1258 = vrot.lane.b32.xlu0 %v193, 5
        %v1259 = vpop.permute.xlu0 %1258
        %1260 = vrot.lane.b32.xlu0 %v194, 5
        %v1261 = vpop.permute.xlu0 %1260
        %1262 = vrot.lane.b32.xlu0 %v195, 5
        %v1263 = vpop.permute.xlu0 %1262
        %1264 = vrot.lane.b32.xlu0 %v196, 5
        %v1265 = vpop.permute.xlu0 %1264
        %1266 = vrot.lane.b32.xlu0 %v197, 5
        %v1267 = vpop.permute.xlu0 %1266
        %1268 = vrot.lane.b32.xlu0 %v198, 5
        %v1269 = vpop.permute.xlu0 %1268
        %1270 = vrot.lane.b32.xlu0 %v199, 5
        %v1271 = vpop.permute.xlu0 %1270
        %1272 = vrot.lane.b32.xlu0 %v200, 5
        %v1273 = vpop.permute.xlu0 %1272
        %1274 = vrot.lane.b32.xlu0 %v209, 5
        %v1275 = vpop.permute.xlu0 %1274
        %1276 = vrot.lane.b32.xlu0 %v210, 5
        %v1277 = vpop.permute.xlu0 %1276
        %1278 = vrot.lane.b32.xlu0 %v211, 5
        %v1279 = vpop.permute.xlu0 %1278
        %1280 = vrot.lane.b32.xlu0 %v212, 5
        %v1281 = vpop.permute.xlu0 %1280
        %1282 = vrot.lane.b32.xlu0 %v213, 5
        %v1283 = vpop.permute.xlu0 %1282
        %1284 = vrot.lane.b32.xlu0 %v214, 5
        %v1285 = vpop.permute.xlu0 %1284
        %1286 = vrot.lane.b32.xlu0 %v215, 5
        %v1287 = vpop.permute.xlu0 %1286
        %1288 = vrot.lane.b32.xlu0 %v216, 5
        %v1289 = vpop.permute.xlu0 %1288
        %1290 = vrot.lane.b32.xlu0 %v217, 5
        %v1291 = vpop.permute.xlu0 %1290
        %1292 = vrot.lane.b32.xlu0 %v218, 5
        %v1293 = vpop.permute.xlu0 %1292
        %1294 = vrot.lane.b32.xlu0 %v219, 5
        %v1295 = vpop.permute.xlu0 %1294
        %1296 = vrot.lane.b32.xlu0 %v220, 5
        %v1297 = vpop.permute.xlu0 %1296
        %1298 = vrot.lane.b32.xlu0 %v221, 5
        %v1299 = vpop.permute.xlu0 %1298
        %1300 = vrot.lane.b32.xlu0 %v222, 5
        %v1301 = vpop.permute.xlu0 %1300
        %1302 = vrot.lane.b32.xlu0 %v223, 5
        %v1303 = vpop.permute.xlu0 %1302
        %1304 = vrot.lane.b32.xlu0 %v224, 5
        %v1305 = vpop.permute.xlu0 %1304
        %1306 = vrot.lane.b32.xlu0 %v225, 5
        %v1307 = vpop.permute.xlu0 %1306
        %1308 = vrot.lane.b32.xlu0 %v226, 5
        %v1309 = vpop.permute.xlu0 %1308
        %1310 = vrot.lane.b32.xlu0 %v227, 5
        %v1311 = vpop.permute.xlu0 %1310
        %1312 = vrot.lane.b32.xlu0 %v228, 5
        %v1313 = vpop.permute.xlu0 %1312
        %1314 = vrot.lane.b32.xlu0 %v229, 5
        %v1315 = vpop.permute.xlu0 %1314
        %1316 = vrot.lane.b32.xlu0 %v230, 5
        %v1317 = vpop.permute.xlu0 %1316
        %1318 = vrot.lane.b32.xlu0 %v231, 5
        %v1319 = vpop.permute.xlu0 %1318
        %1320 = vrot.lane.b32.xlu0 %v232, 5
        %v1321 = vpop.permute.xlu0 %1320
        %v1370 = vrot.slane %v199, 1
        %v1371 = vrot.slane %v200, 1
        %v1372 = vsel %vm354, %v1370, %v1371
        %v1373 = vrot.slane %v231, 1
        %v1374 = vrot.slane %v232, 1
        %v1375 = vsel %vm354, %v1373, %v1374
        %1376 = vrot.lane.b32.xlu0 %v360, 6
        %v1377 = vpop.permute.xlu0 %1376
        %1378 = vrot.lane.b32.xlu0 %v359, 6
        %v1379 = vpop.permute.xlu0 %1378
        %1380 = vrot.lane.b32.xlu0 %v363, 6
        %v1381 = vpop.permute.xlu0 %1380
        %1382 = vrot.lane.b32.xlu0 %v362, 6
        %v1383 = vpop.permute.xlu0 %1382
        %1384 = vrot.lane.b32.xlu0 %v366, 6
        %v1385 = vpop.permute.xlu0 %1384
        %1386 = vrot.lane.b32.xlu0 %v365, 6
        %v1387 = vpop.permute.xlu0 %1386
        %1388 = vrot.lane.b32.xlu0 %v369, 6
        %v1389 = vpop.permute.xlu0 %1388
        %1390 = vrot.lane.b32.xlu0 %v368, 6
        %v1391 = vpop.permute.xlu0 %1390
        %1392 = vrot.lane.b32.xlu0 %v372, 6
        %v1393 = vpop.permute.xlu0 %1392
        %1394 = vrot.lane.b32.xlu0 %v371, 6
        %v1395 = vpop.permute.xlu0 %1394
        %1396 = vrot.lane.b32.xlu0 %v375, 6
        %v1397 = vpop.permute.xlu0 %1396
        %1398 = vrot.lane.b32.xlu0 %v374, 6
        %v1399 = vpop.permute.xlu0 %1398
        %1400 = vrot.lane.b32.xlu0 %v378, 6
        %v1401 = vpop.permute.xlu0 %1400
        %1402 = vrot.lane.b32.xlu0 %v377, 6
        %v1403 = vpop.permute.xlu0 %1402
        %1404 = vrot.lane.b32.xlu0 %v381, 6
        %v1405 = vpop.permute.xlu0 %1404
        %1406 = vrot.lane.b32.xlu0 %v380, 6
        %v1407 = vpop.permute.xlu0 %1406
        %1408 = vrot.lane.b32.xlu0 %v384, 6
        %v1409 = vpop.permute.xlu0 %1408
        %1410 = vrot.lane.b32.xlu0 %v383, 6
        %v1411 = vpop.permute.xlu0 %1410
        %1412 = vrot.lane.b32.xlu0 %v387, 6
        %v1413 = vpop.permute.xlu0 %1412
        %1414 = vrot.lane.b32.xlu0 %v386, 6
        %v1415 = vpop.permute.xlu0 %1414
        %1416 = vrot.lane.b32.xlu0 %v390, 6
        %v1417 = vpop.permute.xlu0 %1416
        %1418 = vrot.lane.b32.xlu0 %v389, 6
        %v1419 = vpop.permute.xlu0 %1418
        %1420 = vrot.lane.b32.xlu0 %v1372, 6
        %v1421 = vpop.permute.xlu0 %1420
        %1422 = vrot.lane.b32.xlu0 %v1371, 6
        %v1423 = vpop.permute.xlu0 %1422
        %1424 = vrot.lane.b32.xlu0 %v396, 6
        %v1425 = vpop.permute.xlu0 %1424
        %1426 = vrot.lane.b32.xlu0 %v395, 6
        %v1427 = vpop.permute.xlu0 %1426
        %1428 = vrot.lane.b32.xlu0 %v399, 6
        %v1429 = vpop.permute.xlu0 %1428
        %1430 = vrot.lane.b32.xlu0 %v398, 6
        %v1431 = vpop.permute.xlu0 %1430
        %1432 = vrot.lane.b32.xlu0 %v402, 6
        %v1433 = vpop.permute.xlu0 %1432
        %1434 = vrot.lane.b32.xlu0 %v401, 6
        %v1435 = vpop.permute.xlu0 %1434
        %1436 = vrot.lane.b32.xlu0 %v405, 6
        %v1437 = vpop.permute.xlu0 %1436
        %1438 = vrot.lane.b32.xlu0 %v404, 6
        %v1439 = vpop.permute.xlu0 %1438
        %1440 = vrot.lane.b32.xlu0 %v408, 6
        %v1441 = vpop.permute.xlu0 %1440
        %1442 = vrot.lane.b32.xlu0 %v407, 6
        %v1443 = vpop.permute.xlu0 %1442
        %1444 = vrot.lane.b32.xlu0 %v411, 6
        %v1445 = vpop.permute.xlu0 %1444
        %1446 = vrot.lane.b32.xlu0 %v410, 6
        %v1447 = vpop.permute.xlu0 %1446
        %1448 = vrot.lane.b32.xlu0 %v414, 6
        %v1449 = vpop.permute.xlu0 %1448
        %1450 = vrot.lane.b32.xlu0 %v413, 6
        %v1451 = vpop.permute.xlu0 %1450
        %1452 = vrot.lane.b32.xlu0 %v417, 6
        %v1453 = vpop.permute.xlu0 %1452
        %1454 = vrot.lane.b32.xlu0 %v416, 6
        %v1455 = vpop.permute.xlu0 %1454
        %1456 = vrot.lane.b32.xlu0 %v420, 6
        %v1457 = vpop.permute.xlu0 %1456
        %1458 = vrot.lane.b32.xlu0 %v419, 6
        %v1459 = vpop.permute.xlu0 %1458
        %1460 = vrot.lane.b32.xlu0 %v423, 6
        %v1461 = vpop.permute.xlu0 %1460
        %1462 = vrot.lane.b32.xlu0 %v422, 6
        %v1463 = vpop.permute.xlu0 %1462
        %1464 = vrot.lane.b32.xlu0 %v426, 6
        %v1465 = vpop.permute.xlu0 %1464
        %1466 = vrot.lane.b32.xlu0 %v425, 6
        %v1467 = vpop.permute.xlu0 %1466
        %1468 = vrot.lane.b32.xlu0 %v1375, 6
        %v1469 = vpop.permute.xlu0 %1468
        %1470 = vrot.lane.b32.xlu0 %v1374, 6
        %v1471 = vpop.permute.xlu0 %1470
        %v1520 = vrot.slane %v199, 2
        %v1521 = vrot.slane %v200, 2
        %v1522 = vsel %vm571, %v1520, %v1521
        %v1523 = vrot.slane %v231, 2
        %v1524 = vrot.slane %v232, 2
        %v1525 = vsel %vm571, %v1523, %v1524
        %1526 = vrot.lane.b32.xlu0 %v577, 7
        %v1527 = vpop.permute.xlu0 %1526
        %1528 = vrot.lane.b32.xlu0 %v576, 7
        %v1529 = vpop.permute.xlu0 %1528
        %1530 = vrot.lane.b32.xlu0 %v580, 7
        %v1531 = vpop.permute.xlu0 %1530
        %1532 = vrot.lane.b32.xlu0 %v579, 7
        %v1533 = vpop.permute.xlu0 %1532
        %1534 = vrot.lane.b32.xlu0 %v583, 7
        %v1535 = vpop.permute.xlu0 %1534
        %1536 = vrot.lane.b32.xlu0 %v582, 7
        %v1537 = vpop.permute.xlu0 %1536
        %1538 = vrot.lane.b32.xlu0 %v586, 7
        %v1539 = vpop.permute.xlu0 %1538
        %1540 = vrot.lane.b32.xlu0 %v585, 7
        %v1541 = vpop.permute.xlu0 %1540
        %1542 = vrot.lane.b32.xlu0 %v589, 7
        %v1543 = vpop.permute.xlu0 %1542
        %1544 = vrot.lane.b32.xlu0 %v588, 7
        %v1545 = vpop.permute.xlu0 %1544
        %1546 = vrot.lane.b32.xlu0 %v592, 7
        %v1547 = vpop.permute.xlu0 %1546
        %1548 = vrot.lane.b32.xlu0 %v591, 7
        %v1549 = vpop.permute.xlu0 %1548
        %1550 = vrot.lane.b32.xlu0 %v595, 7
        %v1551 = vpop.permute.xlu0 %1550
        %1552 = vrot.lane.b32.xlu0 %v594, 7
        %v1553 = vpop.permute.xlu0 %1552
        %1554 = vrot.lane.b32.xlu0 %v598, 7
        %v1555 = vpop.permute.xlu0 %1554
        %1556 = vrot.lane.b32.xlu0 %v597, 7
        %v1557 = vpop.permute.xlu0 %1556
        %1558 = vrot.lane.b32.xlu0 %v601, 7
        %v1559 = vpop.permute.xlu0 %1558
        %1560 = vrot.lane.b32.xlu0 %v600, 7
        %v1561 = vpop.permute.xlu0 %1560
        %1562 = vrot.lane.b32.xlu0 %v604, 7
        %v1563 = vpop.permute.xlu0 %1562
        %1564 = vrot.lane.b32.xlu0 %v603, 7
        %v1565 = vpop.permute.xlu0 %1564
        %1566 = vrot.lane.b32.xlu0 %v607, 7
        %v1567 = vpop.permute.xlu0 %1566
        %1568 = vrot.lane.b32.xlu0 %v606, 7
        %v1569 = vpop.permute.xlu0 %1568
        %1570 = vrot.lane.b32.xlu0 %v1522, 7
        %v1571 = vpop.permute.xlu0 %1570
        %1572 = vrot.lane.b32.xlu0 %v1521, 7
        %v1573 = vpop.permute.xlu0 %1572
        %1574 = vrot.lane.b32.xlu0 %v613, 7
        %v1575 = vpop.permute.xlu0 %1574
        %1576 = vrot.lane.b32.xlu0 %v612, 7
        %v1577 = vpop.permute.xlu0 %1576
        %1578 = vrot.lane.b32.xlu0 %v616, 7
        %v1579 = vpop.permute.xlu0 %1578
        %1580 = vrot.lane.b32.xlu0 %v615, 7
        %v1581 = vpop.permute.xlu0 %1580
        %1582 = vrot.lane.b32.xlu0 %v619, 7
        %v1583 = vpop.permute.xlu0 %1582
        %1584 = vrot.lane.b32.xlu0 %v618, 7
        %v1585 = vpop.permute.xlu0 %1584
        %1586 = vrot.lane.b32.xlu0 %v622, 7
        %v1587 = vpop.permute.xlu0 %1586
        %1588 = vrot.lane.b32.xlu0 %v621, 7
        %v1589 = vpop.permute.xlu0 %1588
        %1590 = vrot.lane.b32.xlu0 %v625, 7
        %v1591 = vpop.permute.xlu0 %1590
        %1592 = vrot.lane.b32.xlu0 %v624, 7
        %v1593 = vpop.permute.xlu0 %1592
        %1594 = vrot.lane.b32.xlu0 %v628, 7
        %v1595 = vpop.permute.xlu0 %1594
        %1596 = vrot.lane.b32.xlu0 %v627, 7
        %v1597 = vpop.permute.xlu0 %1596
        %1598 = vrot.lane.b32.xlu0 %v631, 7
        %v1599 = vpop.permute.xlu0 %1598
        %1600 = vrot.lane.b32.xlu0 %v630, 7
        %v1601 = vpop.permute.xlu0 %1600
        %1602 = vrot.lane.b32.xlu0 %v634, 7
        %v1603 = vpop.permute.xlu0 %1602
        %1604 = vrot.lane.b32.xlu0 %v633, 7
        %v1605 = vpop.permute.xlu0 %1604
        %1606 = vrot.lane.b32.xlu0 %v637, 7
        %v1607 = vpop.permute.xlu0 %1606
        %1608 = vrot.lane.b32.xlu0 %v636, 7
        %v1609 = vpop.permute.xlu0 %1608
        %1610 = vrot.lane.b32.xlu0 %v640, 7
        %v1611 = vpop.permute.xlu0 %1610
        %1612 = vrot.lane.b32.xlu0 %v639, 7
        %v1613 = vpop.permute.xlu0 %1612
        %1614 = vrot.lane.b32.xlu0 %v643, 7
        %v1615 = vpop.permute.xlu0 %1614
        %1616 = vrot.lane.b32.xlu0 %v642, 7
        %v1617 = vpop.permute.xlu0 %1616
        %1618 = vrot.lane.b32.xlu0 %v1525, 7
        %v1619 = vpop.permute.xlu0 %1618
        %1620 = vrot.lane.b32.xlu0 %v1524, 7
        %v1621 = vpop.permute.xlu0 %1620
        %v1670 = vrot.slane %v199, 3
        %v1671 = vrot.slane %v200, 3
        %v1672 = vsel %vm788, %v1670, %v1671
        %v1673 = vrot.slane %v231, 3
        %v1674 = vrot.slane %v232, 3
        %v1675 = vsel %vm788, %v1673, %v1674
        %1676 = vrot.lane.b32.xlu0 %v794, 8
        %v1677 = vpop.permute.xlu0 %1676
        %1678 = vrot.lane.b32.xlu0 %v793, 8
        %v1679 = vpop.permute.xlu0 %1678
        %1680 = vrot.lane.b32.xlu0 %v797, 8
        %v1681 = vpop.permute.xlu0 %1680
        %1682 = vrot.lane.b32.xlu0 %v796, 8
        %v1683 = vpop.permute.xlu0 %1682
        %1684 = vrot.lane.b32.xlu0 %v800, 8
        %v1685 = vpop.permute.xlu0 %1684
        %1686 = vrot.lane.b32.xlu0 %v799, 8
        %v1687 = vpop.permute.xlu0 %1686
        %1688 = vrot.lane.b32.xlu0 %v803, 8
        %v1689 = vpop.permute.xlu0 %1688
        %1690 = vrot.lane.b32.xlu0 %v802, 8
        %v1691 = vpop.permute.xlu0 %1690
        %1692 = vrot.lane.b32.xlu0 %v806, 8
        %v1693 = vpop.permute.xlu0 %1692
        %1694 = vrot.lane.b32.xlu0 %v805, 8
        %v1695 = vpop.permute.xlu0 %1694
        %1696 = vrot.lane.b32.xlu0 %v809, 8
        %v1697 = vpop.permute.xlu0 %1696
        %1698 = vrot.lane.b32.xlu0 %v808, 8
        %v1699 = vpop.permute.xlu0 %1698
        %1700 = vrot.lane.b32.xlu0 %v812, 8
        %v1701 = vpop.permute.xlu0 %1700
        %1702 = vrot.lane.b32.xlu0 %v811, 8
        %v1703 = vpop.permute.xlu0 %1702
        %1704 = vrot.lane.b32.xlu0 %v815, 8
        %v1705 = vpop.permute.xlu0 %1704
        %1706 = vrot.lane.b32.xlu0 %v814, 8
        %v1707 = vpop.permute.xlu0 %1706
        %1708 = vrot.lane.b32.xlu0 %v818, 8
        %v1709 = vpop.permute.xlu0 %1708
        %1710 = vrot.lane.b32.xlu0 %v817, 8
        %v1711 = vpop.permute.xlu0 %1710
        %1712 = vrot.lane.b32.xlu0 %v821, 8
        %v1713 = vpop.permute.xlu0 %1712
        %1714 = vrot.lane.b32.xlu0 %v820, 8
        %v1715 = vpop.permute.xlu0 %1714
        %1716 = vrot.lane.b32.xlu0 %v824, 8
        %v1717 = vpop.permute.xlu0 %1716
        %1718 = vrot.lane.b32.xlu0 %v823, 8
        %v1719 = vpop.permute.xlu0 %1718
        %1720 = vrot.lane.b32.xlu0 %v1672, 8
        %v1721 = vpop.permute.xlu0 %1720
        %1722 = vrot.lane.b32.xlu0 %v1671, 8
        %v1723 = vpop.permute.xlu0 %1722
        %1724 = vrot.lane.b32.xlu0 %v830, 8
        %v1725 = vpop.permute.xlu0 %1724
        %1726 = vrot.lane.b32.xlu0 %v829, 8
        %v1727 = vpop.permute.xlu0 %1726
        %1728 = vrot.lane.b32.xlu0 %v833, 8
        %v1729 = vpop.permute.xlu0 %1728
        %1730 = vrot.lane.b32.xlu0 %v832, 8
        %v1731 = vpop.permute.xlu0 %1730
        %1732 = vrot.lane.b32.xlu0 %v836, 8
        %v1733 = vpop.permute.xlu0 %1732
        %1734 = vrot.lane.b32.xlu0 %v835, 8
        %v1735 = vpop.permute.xlu0 %1734
        %1736 = vrot.lane.b32.xlu0 %v839, 8
        %v1737 = vpop.permute.xlu0 %1736
        %1738 = vrot.lane.b32.xlu0 %v838, 8
        %v1739 = vpop.permute.xlu0 %1738
        %1740 = vrot.lane.b32.xlu0 %v842, 8
        %v1741 = vpop.permute.xlu0 %1740
        %1742 = vrot.lane.b32.xlu0 %v841, 8
        %v1743 = vpop.permute.xlu0 %1742
        %1744 = vrot.lane.b32.xlu0 %v845, 8
        %v1745 = vpop.permute.xlu0 %1744
        %1746 = vrot.lane.b32.xlu0 %v844, 8
        %v1747 = vpop.permute.xlu0 %1746
        %1748 = vrot.lane.b32.xlu0 %v848, 8
        %v1749 = vpop.permute.xlu0 %1748
        %1750 = vrot.lane.b32.xlu0 %v847, 8
        %v1751 = vpop.permute.xlu0 %1750
        %1752 = vrot.lane.b32.xlu0 %v851, 8
        %v1753 = vpop.permute.xlu0 %1752
        %1754 = vrot.lane.b32.xlu0 %v850, 8
        %v1755 = vpop.permute.xlu0 %1754
        %1756 = vrot.lane.b32.xlu0 %v854, 8
        %v1757 = vpop.permute.xlu0 %1756
        %1758 = vrot.lane.b32.xlu0 %v853, 8
        %v1759 = vpop.permute.xlu0 %1758
        %1760 = vrot.lane.b32.xlu0 %v857, 8
        %v1761 = vpop.permute.xlu0 %1760
        %1762 = vrot.lane.b32.xlu0 %v856, 8
        %v1763 = vpop.permute.xlu0 %1762
        %1764 = vrot.lane.b32.xlu0 %v860, 8
        %v1765 = vpop.permute.xlu0 %1764
        %1766 = vrot.lane.b32.xlu0 %v859, 8
        %v1767 = vpop.permute.xlu0 %1766
        %1768 = vrot.lane.b32.xlu0 %v1675, 8
        %v1769 = vpop.permute.xlu0 %1768
        %1770 = vrot.lane.b32.xlu0 %v1674, 8
        %v1771 = vpop.permute.xlu0 %1770
        %v1820 = vrot.slane %v199, 4
        %v1821 = vrot.slane %v200, 4
        %v1822 = vsel %vm1005, %v1820, %v1821
        %v1823 = vrot.slane %v231, 4
        %v1824 = vrot.slane %v232, 4
        %v1825 = vsel %vm1005, %v1823, %v1824
        %1826 = vrot.lane.b32.xlu0 %v1011, 9
        %v1827 = vpop.permute.xlu0 %1826
        %1828 = vrot.lane.b32.xlu0 %v1010, 9
        %v1829 = vpop.permute.xlu0 %1828
        %1830 = vrot.lane.b32.xlu0 %v1014, 9
        %v1831 = vpop.permute.xlu0 %1830
        %1832 = vrot.lane.b32.xlu0 %v1013, 9
        %v1833 = vpop.permute.xlu0 %1832
        %1834 = vrot.lane.b32.xlu0 %v1017, 9
        %v1835 = vpop.permute.xlu0 %1834
        %1836 = vrot.lane.b32.xlu0 %v1016, 9
        %v1837 = vpop.permute.xlu0 %1836
        %1838 = vrot.lane.b32.xlu0 %v1020, 9
        %v1839 = vpop.permute.xlu0 %1838
        %1840 = vrot.lane.b32.xlu0 %v1019, 9
        %v1841 = vpop.permute.xlu0 %1840
        %1842 = vrot.lane.b32.xlu0 %v1023, 9
        %v1843 = vpop.permute.xlu0 %1842
        %1844 = vrot.lane.b32.xlu0 %v1022, 9
        %v1845 = vpop.permute.xlu0 %1844
        %1846 = vrot.lane.b32.xlu0 %v1026, 9
        %v1847 = vpop.permute.xlu0 %1846
        %1848 = vrot.lane.b32.xlu0 %v1025, 9
        %v1849 = vpop.permute.xlu0 %1848
        %1850 = vrot.lane.b32.xlu0 %v1029, 9
        %v1851 = vpop.permute.xlu0 %1850
        %1852 = vrot.lane.b32.xlu0 %v1028, 9
        %v1853 = vpop.permute.xlu0 %1852
        %1854 = vrot.lane.b32.xlu0 %v1032, 9
        %v1855 = vpop.permute.xlu0 %1854
        %1856 = vrot.lane.b32.xlu0 %v1031, 9
        %v1857 = vpop.permute.xlu0 %1856
        %1858 = vrot.lane.b32.xlu0 %v1035, 9
        %v1859 = vpop.permute.xlu0 %1858
        %1860 = vrot.lane.b32.xlu0 %v1034, 9
        %v1861 = vpop.permute.xlu0 %1860
        %1862 = vrot.lane.b32.xlu0 %v1038, 9
        %v1863 = vpop.permute.xlu0 %1862
        %1864 = vrot.lane.b32.xlu0 %v1037, 9
        %v1865 = vpop.permute.xlu0 %1864
        %1866 = vrot.lane.b32.xlu0 %v1041, 9
        %v1867 = vpop.permute.xlu0 %1866
        %1868 = vrot.lane.b32.xlu0 %v1040, 9
        %v1869 = vpop.permute.xlu0 %1868
        %1870 = vrot.lane.b32.xlu0 %v1822, 9
        %v1871 = vpop.permute.xlu0 %1870
        %1872 = vrot.lane.b32.xlu0 %v1821, 9
        %v1873 = vpop.permute.xlu0 %1872
        %1874 = vrot.lane.b32.xlu0 %v1047, 9
        %v1875 = vpop.permute.xlu0 %1874
        %1876 = vrot.lane.b32.xlu0 %v1046, 9
        %v1877 = vpop.permute.xlu0 %1876
        %1878 = vrot.lane.b32.xlu0 %v1050, 9
        %v1879 = vpop.permute.xlu0 %1878
        %1880 = vrot.lane.b32.xlu0 %v1049, 9
        %v1881 = vpop.permute.xlu0 %1880
        %1882 = vrot.lane.b32.xlu0 %v1053, 9
        %v1883 = vpop.permute.xlu0 %1882
        %1884 = vrot.lane.b32.xlu0 %v1052, 9
        %v1885 = vpop.permute.xlu0 %1884
        %1886 = vrot.lane.b32.xlu0 %v1056, 9
        %v1887 = vpop.permute.xlu0 %1886
        %1888 = vrot.lane.b32.xlu0 %v1055, 9
        %v1889 = vpop.permute.xlu0 %1888
        %1890 = vrot.lane.b32.xlu0 %v1059, 9
        %v1891 = vpop.permute.xlu0 %1890
        %1892 = vrot.lane.b32.xlu0 %v1058, 9
        %v1893 = vpop.permute.xlu0 %1892
        %1894 = vrot.lane.b32.xlu0 %v1062, 9
        %v1895 = vpop.permute.xlu0 %1894
        %1896 = vrot.lane.b32.xlu0 %v1061, 9
        %v1897 = vpop.permute.xlu0 %1896
        %1898 = vrot.lane.b32.xlu0 %v1065, 9
        %v1899 = vpop.permute.xlu0 %1898
        %1900 = vrot.lane.b32.xlu0 %v1064, 9
        %v1901 = vpop.permute.xlu0 %1900
        %1902 = vrot.lane.b32.xlu0 %v1068, 9
        %v1903 = vpop.permute.xlu0 %1902
        %1904 = vrot.lane.b32.xlu0 %v1067, 9
        %v1905 = vpop.permute.xlu0 %1904
        %1906 = vrot.lane.b32.xlu0 %v1071, 9
        %v1907 = vpop.permute.xlu0 %1906
        %1908 = vrot.lane.b32.xlu0 %v1070, 9
        %v1909 = vpop.permute.xlu0 %1908
        %1910 = vrot.lane.b32.xlu0 %v1074, 9
        %v1911 = vpop.permute.xlu0 %1910
        %1912 = vrot.lane.b32.xlu0 %v1073, 9
        %v1913 = vpop.permute.xlu0 %1912
        %1914 = vrot.lane.b32.xlu0 %v1077, 9
        %v1915 = vpop.permute.xlu0 %1914
        %1916 = vrot.lane.b32.xlu0 %v1076, 9
        %v1917 = vpop.permute.xlu0 %1916
        %1918 = vrot.lane.b32.xlu0 %v1825, 9
        %v1919 = vpop.permute.xlu0 %1918
        %1920 = vrot.lane.b32.xlu0 %v1824, 9
        %v1921 = vpop.permute.xlu0 %1920
        %1974 = vrot.lane.b32.xlu0 %v179, 10
        %v1975 = vpop.permute.xlu0 %1974
        %1976 = vrot.lane.b32.xlu0 %v180, 10
        %v1977 = vpop.permute.xlu0 %1976
        %1978 = vrot.lane.b32.xlu0 %v181, 10
        %v1979 = vpop.permute.xlu0 %1978
        %1980 = vrot.lane.b32.xlu0 %v182, 10
        %v1981 = vpop.permute.xlu0 %1980
        %1982 = vrot.lane.b32.xlu0 %v183, 10
        %v1983 = vpop.permute.xlu0 %1982
        %1984 = vrot.lane.b32.xlu0 %v184, 10
        %v1985 = vpop.permute.xlu0 %1984
        %1986 = vrot.lane.b32.xlu0 %v185, 10
        %v1987 = vpop.permute.xlu0 %1986
        %1988 = vrot.lane.b32.xlu0 %v186, 10
        %v1989 = vpop.permute.xlu0 %1988
        %1990 = vrot.lane.b32.xlu0 %v187, 10
        %v1991 = vpop.permute.xlu0 %1990
        %1992 = vrot.lane.b32.xlu0 %v188, 10
        %v1993 = vpop.permute.xlu0 %1992
        %1994 = vrot.lane.b32.xlu0 %v189, 10
        %v1995 = vpop.permute.xlu0 %1994
        %1996 = vrot.lane.b32.xlu0 %v190, 10
        %v1997 = vpop.permute.xlu0 %1996
        %1998 = vrot.lane.b32.xlu0 %v191, 10
        %v1999 = vpop.permute.xlu0 %1998
        %2000 = vrot.lane.b32.xlu0 %v192, 10
        %v2001 = vpop.permute.xlu0 %2000
        %2002 = vrot.lane.b32.xlu0 %v193, 10
        %v2003 = vpop.permute.xlu0 %2002
        %2004 = vrot.lane.b32.xlu0 %v194, 10
        %v2005 = vpop.permute.xlu0 %2004
        %2006 = vrot.lane.b32.xlu0 %v195, 10
        %v2007 = vpop.permute.xlu0 %2006
        %2008 = vrot.lane.b32.xlu0 %v196, 10
        %v2009 = vpop.permute.xlu0 %2008
        %2010 = vrot.lane.b32.xlu0 %v197, 10
        %v2011 = vpop.permute.xlu0 %2010
        %2012 = vrot.lane.b32.xlu0 %v198, 10
        %v2013 = vpop.permute.xlu0 %2012
        %2014 = vrot.lane.b32.xlu0 %v199, 10
        %v2015 = vpop.permute.xlu0 %2014
        %2016 = vrot.lane.b32.xlu0 %v200, 10
        %v2017 = vpop.permute.xlu0 %2016
        %2018 = vrot.lane.b32.xlu0 %v201, 10
        %v2019 = vpop.permute.xlu0 %2018
        %2020 = vrot.lane.b32.xlu0 %v202, 10
        %v2021 = vpop.permute.xlu0 %2020
        %2022 = vrot.lane.b32.xlu0 %v211, 10
        %v2023 = vpop.permute.xlu0 %2022
        %2024 = vrot.lane.b32.xlu0 %v212, 10
        %v2025 = vpop.permute.xlu0 %2024
        %2026 = vrot.lane.b32.xlu0 %v213, 10
        %v2027 = vpop.permute.xlu0 %2026
        %2028 = vrot.lane.b32.xlu0 %v214, 10
        %v2029 = vpop.permute.xlu0 %2028
        %2030 = vrot.lane.b32.xlu0 %v215, 10
        %v2031 = vpop.permute.xlu0 %2030
        %2032 = vrot.lane.b32.xlu0 %v216, 10
        %v2033 = vpop.permute.xlu0 %2032
        %2034 = vrot.lane.b32.xlu0 %v217, 10
        %v2035 = vpop.permute.xlu0 %2034
        %2036 = vrot.lane.b32.xlu0 %v218, 10
        %v2037 = vpop.permute.xlu0 %2036
        %2038 = vrot.lane.b32.xlu0 %v219, 10
        %v2039 = vpop.permute.xlu0 %2038
        %2040 = vrot.lane.b32.xlu0 %v220, 10
        %v2041 = vpop.permute.xlu0 %2040
        %2042 = vrot.lane.b32.xlu0 %v221, 10
        %v2043 = vpop.permute.xlu0 %2042
        %2044 = vrot.lane.b32.xlu0 %v222, 10
        %v2045 = vpop.permute.xlu0 %2044
        %2046 = vrot.lane.b32.xlu0 %v223, 10
        %v2047 = vpop.permute.xlu0 %2046
        %2048 = vrot.lane.b32.xlu0 %v224, 10
        %v2049 = vpop.permute.xlu0 %2048
        %2050 = vrot.lane.b32.xlu0 %v225, 10
        %v2051 = vpop.permute.xlu0 %2050
        %2052 = vrot.lane.b32.xlu0 %v226, 10
        %v2053 = vpop.permute.xlu0 %2052
        %2054 = vrot.lane.b32.xlu0 %v227, 10
        %v2055 = vpop.permute.xlu0 %2054
        %2056 = vrot.lane.b32.xlu0 %v228, 10
        %v2057 = vpop.permute.xlu0 %2056
        %2058 = vrot.lane.b32.xlu0 %v229, 10
        %v2059 = vpop.permute.xlu0 %2058
        %2060 = vrot.lane.b32.xlu0 %v230, 10
        %v2061 = vpop.permute.xlu0 %2060
        %2062 = vrot.lane.b32.xlu0 %v231, 10
        %v2063 = vpop.permute.xlu0 %2062
        %2064 = vrot.lane.b32.xlu0 %v232, 10
        %v2065 = vpop.permute.xlu0 %2064
        %2066 = vrot.lane.b32.xlu0 %v233, 10
        %v2067 = vpop.permute.xlu0 %2066
        %2068 = vrot.lane.b32.xlu0 %v234, 10
        %v2069 = vpop.permute.xlu0 %2068
        %v2118 = vrot.slane %v201, 1
        %v2119 = vrot.slane %v202, 1
        %v2120 = vsel %vm354, %v2118, %v2119
        %v2121 = vrot.slane %v233, 1
        %v2122 = vrot.slane %v234, 1
        %v2123 = vsel %vm354, %v2121, %v2122
        %2124 = vrot.lane.b32.xlu0 %v363, 11
        %v2125 = vpop.permute.xlu0 %2124
        %2126 = vrot.lane.b32.xlu0 %v362, 11
        %v2127 = vpop.permute.xlu0 %2126
        %2128 = vrot.lane.b32.xlu0 %v366, 11
        %v2129 = vpop.permute.xlu0 %2128
        %2130 = vrot.lane.b32.xlu0 %v365, 11
        %v2131 = vpop.permute.xlu0 %2130
        %2132 = vrot.lane.b32.xlu0 %v369, 11
        %v2133 = vpop.permute.xlu0 %2132
        %2134 = vrot.lane.b32.xlu0 %v368, 11
        %v2135 = vpop.permute.xlu0 %2134
        %2136 = vrot.lane.b32.xlu0 %v372, 11
        %v2137 = vpop.permute.xlu0 %2136
        %2138 = vrot.lane.b32.xlu0 %v371, 11
        %v2139 = vpop.permute.xlu0 %2138
        %2140 = vrot.lane.b32.xlu0 %v375, 11
        %v2141 = vpop.permute.xlu0 %2140
        %2142 = vrot.lane.b32.xlu0 %v374, 11
        %v2143 = vpop.permute.xlu0 %2142
        %2144 = vrot.lane.b32.xlu0 %v378, 11
        %v2145 = vpop.permute.xlu0 %2144
        %2146 = vrot.lane.b32.xlu0 %v377, 11
        %v2147 = vpop.permute.xlu0 %2146
        %2148 = vrot.lane.b32.xlu0 %v381, 11
        %v2149 = vpop.permute.xlu0 %2148
        %2150 = vrot.lane.b32.xlu0 %v380, 11
        %v2151 = vpop.permute.xlu0 %2150
        %2152 = vrot.lane.b32.xlu0 %v384, 11
        %v2153 = vpop.permute.xlu0 %2152
        %2154 = vrot.lane.b32.xlu0 %v383, 11
        %v2155 = vpop.permute.xlu0 %2154
        %2156 = vrot.lane.b32.xlu0 %v387, 11
        %v2157 = vpop.permute.xlu0 %2156
        %2158 = vrot.lane.b32.xlu0 %v386, 11
        %v2159 = vpop.permute.xlu0 %2158
        %2160 = vrot.lane.b32.xlu0 %v390, 11
        %v2161 = vpop.permute.xlu0 %2160
        %2162 = vrot.lane.b32.xlu0 %v389, 11
        %v2163 = vpop.permute.xlu0 %2162
        %2164 = vrot.lane.b32.xlu0 %v1372, 11
        %v2165 = vpop.permute.xlu0 %2164
        %2166 = vrot.lane.b32.xlu0 %v1371, 11
        %v2167 = vpop.permute.xlu0 %2166
        %2168 = vrot.lane.b32.xlu0 %v2120, 11
        %v2169 = vpop.permute.xlu0 %2168
        %2170 = vrot.lane.b32.xlu0 %v2119, 11
        %v2171 = vpop.permute.xlu0 %2170
        %2172 = vrot.lane.b32.xlu0 %v399, 11
        %v2173 = vpop.permute.xlu0 %2172
        %2174 = vrot.lane.b32.xlu0 %v398, 11
        %v2175 = vpop.permute.xlu0 %2174
        %2176 = vrot.lane.b32.xlu0 %v402, 11
        %v2177 = vpop.permute.xlu0 %2176
        %2178 = vrot.lane.b32.xlu0 %v401, 11
        %v2179 = vpop.permute.xlu0 %2178
        %2180 = vrot.lane.b32.xlu0 %v405, 11
        %v2181 = vpop.permute.xlu0 %2180
        %2182 = vrot.lane.b32.xlu0 %v404, 11
        %v2183 = vpop.permute.xlu0 %2182
        %2184 = vrot.lane.b32.xlu0 %v408, 11
        %v2185 = vpop.permute.xlu0 %2184
        %2186 = vrot.lane.b32.xlu0 %v407, 11
        %v2187 = vpop.permute.xlu0 %2186
        %2188 = vrot.lane.b32.xlu0 %v411, 11
        %v2189 = vpop.permute.xlu0 %2188
        %2190 = vrot.lane.b32.xlu0 %v410, 11
        %v2191 = vpop.permute.xlu0 %2190
        %2192 = vrot.lane.b32.xlu0 %v414, 11
        %v2193 = vpop.permute.xlu0 %2192
        %2194 = vrot.lane.b32.xlu0 %v413, 11
        %v2195 = vpop.permute.xlu0 %2194
        %2196 = vrot.lane.b32.xlu0 %v417, 11
        %v2197 = vpop.permute.xlu0 %2196
        %2198 = vrot.lane.b32.xlu0 %v416, 11
        %v2199 = vpop.permute.xlu0 %2198
        %2200 = vrot.lane.b32.xlu0 %v420, 11
        %v2201 = vpop.permute.xlu0 %2200
        %2202 = vrot.lane.b32.xlu0 %v419, 11
        %v2203 = vpop.permute.xlu0 %2202
        %2204 = vrot.lane.b32.xlu0 %v423, 11
        %v2205 = vpop.permute.xlu0 %2204
        %2206 = vrot.lane.b32.xlu0 %v422, 11
        %v2207 = vpop.permute.xlu0 %2206
        %2208 = vrot.lane.b32.xlu0 %v426, 11
        %v2209 = vpop.permute.xlu0 %2208
        %2210 = vrot.lane.b32.xlu0 %v425, 11
        %v2211 = vpop.permute.xlu0 %2210
        %2212 = vrot.lane.b32.xlu0 %v1375, 11
        %v2213 = vpop.permute.xlu0 %2212
        %2214 = vrot.lane.b32.xlu0 %v1374, 11
        %v2215 = vpop.permute.xlu0 %2214
        %2216 = vrot.lane.b32.xlu0 %v2123, 11
        %v2217 = vpop.permute.xlu0 %2216
        %2218 = vrot.lane.b32.xlu0 %v2122, 11
        %v2219 = vpop.permute.xlu0 %2218
        %v2268 = vrot.slane %v201, 2
        %v2269 = vrot.slane %v202, 2
        %v2270 = vsel %vm571, %v2268, %v2269
        %v2271 = vrot.slane %v233, 2
        %v2272 = vrot.slane %v234, 2
        %v2273 = vsel %vm571, %v2271, %v2272
        %2274 = vrot.lane.b32.xlu0 %v580, 12
        %v2275 = vpop.permute.xlu0 %2274
        %2276 = vrot.lane.b32.xlu0 %v579, 12
        %v2277 = vpop.permute.xlu0 %2276
        %2278 = vrot.lane.b32.xlu0 %v583, 12
        %v2279 = vpop.permute.xlu0 %2278
        %2280 = vrot.lane.b32.xlu0 %v582, 12
        %v2281 = vpop.permute.xlu0 %2280
        %2282 = vrot.lane.b32.xlu0 %v586, 12
        %v2283 = vpop.permute.xlu0 %2282
        %2284 = vrot.lane.b32.xlu0 %v585, 12
        %v2285 = vpop.permute.xlu0 %2284
        %2286 = vrot.lane.b32.xlu0 %v589, 12
        %v2287 = vpop.permute.xlu0 %2286
        %2288 = vrot.lane.b32.xlu0 %v588, 12
        %v2289 = vpop.permute.xlu0 %2288
        %2290 = vrot.lane.b32.xlu0 %v592, 12
        %v2291 = vpop.permute.xlu0 %2290
        %2292 = vrot.lane.b32.xlu0 %v591, 12
        %v2293 = vpop.permute.xlu0 %2292
        %2294 = vrot.lane.b32.xlu0 %v595, 12
        %v2295 = vpop.permute.xlu0 %2294
        %2296 = vrot.lane.b32.xlu0 %v594, 12
        %v2297 = vpop.permute.xlu0 %2296
        %2298 = vrot.lane.b32.xlu0 %v598, 12
        %v2299 = vpop.permute.xlu0 %2298
        %2300 = vrot.lane.b32.xlu0 %v597, 12
        %v2301 = vpop.permute.xlu0 %2300
        %2302 = vrot.lane.b32.xlu0 %v601, 12
        %v2303 = vpop.permute.xlu0 %2302
        %2304 = vrot.lane.b32.xlu0 %v600, 12
        %v2305 = vpop.permute.xlu0 %2304
        %2306 = vrot.lane.b32.xlu0 %v604, 12
        %v2307 = vpop.permute.xlu0 %2306
        %2308 = vrot.lane.b32.xlu0 %v603, 12
        %v2309 = vpop.permute.xlu0 %2308
        %2310 = vrot.lane.b32.xlu0 %v607, 12
        %v2311 = vpop.permute.xlu0 %2310
        %2312 = vrot.lane.b32.xlu0 %v606, 12
        %v2313 = vpop.permute.xlu0 %2312
        %2314 = vrot.lane.b32.xlu0 %v1522, 12
        %v2315 = vpop.permute.xlu0 %2314
        %2316 = vrot.lane.b32.xlu0 %v1521, 12
        %v2317 = vpop.permute.xlu0 %2316
        %2318 = vrot.lane.b32.xlu0 %v2270, 12
        %v2319 = vpop.permute.xlu0 %2318
        %2320 = vrot.lane.b32.xlu0 %v2269, 12
        %v2321 = vpop.permute.xlu0 %2320
        %2322 = vrot.lane.b32.xlu0 %v616, 12
        %v2323 = vpop.permute.xlu0 %2322
        %2324 = vrot.lane.b32.xlu0 %v615, 12
        %v2325 = vpop.permute.xlu0 %2324
        %2326 = vrot.lane.b32.xlu0 %v619, 12
        %v2327 = vpop.permute.xlu0 %2326
        %2328 = vrot.lane.b32.xlu0 %v618, 12
        %v2329 = vpop.permute.xlu0 %2328
        %2330 = vrot.lane.b32.xlu0 %v622, 12
        %v2331 = vpop.permute.xlu0 %2330
        %2332 = vrot.lane.b32.xlu0 %v621, 12
        %v2333 = vpop.permute.xlu0 %2332
        %2334 = vrot.lane.b32.xlu0 %v625, 12
        %v2335 = vpop.permute.xlu0 %2334
        %2336 = vrot.lane.b32.xlu0 %v624, 12
        %v2337 = vpop.permute.xlu0 %2336
        %2338 = vrot.lane.b32.xlu0 %v628, 12
        %v2339 = vpop.permute.xlu0 %2338
        %2340 = vrot.lane.b32.xlu0 %v627, 12
        %v2341 = vpop.permute.xlu0 %2340
        %2342 = vrot.lane.b32.xlu0 %v631, 12
        %v2343 = vpop.permute.xlu0 %2342
        %2344 = vrot.lane.b32.xlu0 %v630, 12
        %v2345 = vpop.permute.xlu0 %2344
        %2346 = vrot.lane.b32.xlu0 %v634, 12
        %v2347 = vpop.permute.xlu0 %2346
        %2348 = vrot.lane.b32.xlu0 %v633, 12
        %v2349 = vpop.permute.xlu0 %2348
        %2350 = vrot.lane.b32.xlu0 %v637, 12
        %v2351 = vpop.permute.xlu0 %2350
        %2352 = vrot.lane.b32.xlu0 %v636, 12
        %v2353 = vpop.permute.xlu0 %2352
        %2354 = vrot.lane.b32.xlu0 %v640, 12
        %v2355 = vpop.permute.xlu0 %2354
        %2356 = vrot.lane.b32.xlu0 %v639, 12
        %v2357 = vpop.permute.xlu0 %2356
        %2358 = vrot.lane.b32.xlu0 %v643, 12
        %v2359 = vpop.permute.xlu0 %2358
        %2360 = vrot.lane.b32.xlu0 %v642, 12
        %v2361 = vpop.permute.xlu0 %2360
        %2362 = vrot.lane.b32.xlu0 %v1525, 12
        %v2363 = vpop.permute.xlu0 %2362
        %2364 = vrot.lane.b32.xlu0 %v1524, 12
        %v2365 = vpop.permute.xlu0 %2364
        %2366 = vrot.lane.b32.xlu0 %v2273, 12
        %v2367 = vpop.permute.xlu0 %2366
        %2368 = vrot.lane.b32.xlu0 %v2272, 12
        %v2369 = vpop.permute.xlu0 %2368
        %v2418 = vrot.slane %v201, 3
        %v2419 = vrot.slane %v202, 3
        %v2420 = vsel %vm788, %v2418, %v2419
        %v2421 = vrot.slane %v233, 3
        %v2422 = vrot.slane %v234, 3
        %v2423 = vsel %vm788, %v2421, %v2422
        %2424 = vrot.lane.b32.xlu0 %v797, 13
        %v2425 = vpop.permute.xlu0 %2424
        %2426 = vrot.lane.b32.xlu0 %v796, 13
        %v2427 = vpop.permute.xlu0 %2426
        %2428 = vrot.lane.b32.xlu0 %v800, 13
        %v2429 = vpop.permute.xlu0 %2428
        %2430 = vrot.lane.b32.xlu0 %v799, 13
        %v2431 = vpop.permute.xlu0 %2430
        %2432 = vrot.lane.b32.xlu0 %v803, 13
        %v2433 = vpop.permute.xlu0 %2432
        %2434 = vrot.lane.b32.xlu0 %v802, 13
        %v2435 = vpop.permute.xlu0 %2434
        %2436 = vrot.lane.b32.xlu0 %v806, 13
        %v2437 = vpop.permute.xlu0 %2436
        %2438 = vrot.lane.b32.xlu0 %v805, 13
        %v2439 = vpop.permute.xlu0 %2438
        %2440 = vrot.lane.b32.xlu0 %v809, 13
        %v2441 = vpop.permute.xlu0 %2440
        %2442 = vrot.lane.b32.xlu0 %v808, 13
        %v2443 = vpop.permute.xlu0 %2442
        %2444 = vrot.lane.b32.xlu0 %v812, 13
        %v2445 = vpop.permute.xlu0 %2444
        %2446 = vrot.lane.b32.xlu0 %v811, 13
        %v2447 = vpop.permute.xlu0 %2446
        %2448 = vrot.lane.b32.xlu0 %v815, 13
        %v2449 = vpop.permute.xlu0 %2448
        %2450 = vrot.lane.b32.xlu0 %v814, 13
        %v2451 = vpop.permute.xlu0 %2450
        %2452 = vrot.lane.b32.xlu0 %v818, 13
        %v2453 = vpop.permute.xlu0 %2452
        %2454 = vrot.lane.b32.xlu0 %v817, 13
        %v2455 = vpop.permute.xlu0 %2454
        %2456 = vrot.lane.b32.xlu0 %v821, 13
        %v2457 = vpop.permute.xlu0 %2456
        %2458 = vrot.lane.b32.xlu0 %v820, 13
        %v2459 = vpop.permute.xlu0 %2458
        %2460 = vrot.lane.b32.xlu0 %v824, 13
        %v2461 = vpop.permute.xlu0 %2460
        %2462 = vrot.lane.b32.xlu0 %v823, 13
        %v2463 = vpop.permute.xlu0 %2462
        %2464 = vrot.lane.b32.xlu0 %v1672, 13
        %v2465 = vpop.permute.xlu0 %2464
        %2466 = vrot.lane.b32.xlu0 %v1671, 13
        %v2467 = vpop.permute.xlu0 %2466
        %2468 = vrot.lane.b32.xlu0 %v2420, 13
        %v2469 = vpop.permute.xlu0 %2468
        %2470 = vrot.lane.b32.xlu0 %v2419, 13
        %v2471 = vpop.permute.xlu0 %2470
        %2472 = vrot.lane.b32.xlu0 %v833, 13
        %v2473 = vpop.permute.xlu0 %2472
        %2474 = vrot.lane.b32.xlu0 %v832, 13
        %v2475 = vpop.permute.xlu0 %2474
        %2476 = vrot.lane.b32.xlu0 %v836, 13
        %v2477 = vpop.permute.xlu0 %2476
        %2478 = vrot.lane.b32.xlu0 %v835, 13
        %v2479 = vpop.permute.xlu0 %2478
        %2480 = vrot.lane.b32.xlu0 %v839, 13
        %v2481 = vpop.permute.xlu0 %2480
        %2482 = vrot.lane.b32.xlu0 %v838, 13
        %v2483 = vpop.permute.xlu0 %2482
        %2484 = vrot.lane.b32.xlu0 %v842, 13
        %v2485 = vpop.permute.xlu0 %2484
        %2486 = vrot.lane.b32.xlu0 %v841, 13
        %v2487 = vpop.permute.xlu0 %2486
        %2488 = vrot.lane.b32.xlu0 %v845, 13
        %v2489 = vpop.permute.xlu0 %2488
        %2490 = vrot.lane.b32.xlu0 %v844, 13
        %v2491 = vpop.permute.xlu0 %2490
        %2492 = vrot.lane.b32.xlu0 %v848, 13
        %v2493 = vpop.permute.xlu0 %2492
        %2494 = vrot.lane.b32.xlu0 %v847, 13
        %v2495 = vpop.permute.xlu0 %2494
        %2496 = vrot.lane.b32.xlu0 %v851, 13
        %v2497 = vpop.permute.xlu0 %2496
        %2498 = vrot.lane.b32.xlu0 %v850, 13
        %v2499 = vpop.permute.xlu0 %2498
        %2500 = vrot.lane.b32.xlu0 %v854, 13
        %v2501 = vpop.permute.xlu0 %2500
        %2502 = vrot.lane.b32.xlu0 %v853, 13
        %v2503 = vpop.permute.xlu0 %2502
        %2504 = vrot.lane.b32.xlu0 %v857, 13
        %v2505 = vpop.permute.xlu0 %2504
        %2506 = vrot.lane.b32.xlu0 %v856, 13
        %v2507 = vpop.permute.xlu0 %2506
        %2508 = vrot.lane.b32.xlu0 %v860, 13
        %v2509 = vpop.permute.xlu0 %2508
        %2510 = vrot.lane.b32.xlu0 %v859, 13
        %v2511 = vpop.permute.xlu0 %2510
        %2512 = vrot.lane.b32.xlu0 %v1675, 13
        %v2513 = vpop.permute.xlu0 %2512
        %2514 = vrot.lane.b32.xlu0 %v1674, 13
        %v2515 = vpop.permute.xlu0 %2514
        %2516 = vrot.lane.b32.xlu0 %v2423, 13
        %v2517 = vpop.permute.xlu0 %2516
        %2518 = vrot.lane.b32.xlu0 %v2422, 13
        %v2519 = vpop.permute.xlu0 %2518
        %v2568 = vrot.slane %v201, 4
        %v2569 = vrot.slane %v202, 4
        %v2570 = vsel %vm1005, %v2568, %v2569
        %v2571 = vrot.slane %v233, 4
        %v2572 = vrot.slane %v234, 4
        %v2573 = vsel %vm1005, %v2571, %v2572
        %2574 = vrot.lane.b32.xlu0 %v1014, 14
        %v2575 = vpop.permute.xlu0 %2574
        %2576 = vrot.lane.b32.xlu0 %v1013, 14
        %v2577 = vpop.permute.xlu0 %2576
        %2578 = vrot.lane.b32.xlu0 %v1017, 14
        %v2579 = vpop.permute.xlu0 %2578
        %2580 = vrot.lane.b32.xlu0 %v1016, 14
        %v2581 = vpop.permute.xlu0 %2580
        %2582 = vrot.lane.b32.xlu0 %v1020, 14
        %v2583 = vpop.permute.xlu0 %2582
        %2584 = vrot.lane.b32.xlu0 %v1019, 14
        %v2585 = vpop.permute.xlu0 %2584
        %2586 = vrot.lane.b32.xlu0 %v1023, 14
        %v2587 = vpop.permute.xlu0 %2586
        %2588 = vrot.lane.b32.xlu0 %v1022, 14
        %v2589 = vpop.permute.xlu0 %2588
        %2590 = vrot.lane.b32.xlu0 %v1026, 14
        %v2591 = vpop.permute.xlu0 %2590
        %2592 = vrot.lane.b32.xlu0 %v1025, 14
        %v2593 = vpop.permute.xlu0 %2592
        %2594 = vrot.lane.b32.xlu0 %v1029, 14
        %v2595 = vpop.permute.xlu0 %2594
        %2596 = vrot.lane.b32.xlu0 %v1028, 14
        %v2597 = vpop.permute.xlu0 %2596
        %2598 = vrot.lane.b32.xlu0 %v1032, 14
        %v2599 = vpop.permute.xlu0 %2598
        %2600 = vrot.lane.b32.xlu0 %v1031, 14
        %v2601 = vpop.permute.xlu0 %2600
        %2602 = vrot.lane.b32.xlu0 %v1035, 14
        %v2603 = vpop.permute.xlu0 %2602
        %2604 = vrot.lane.b32.xlu0 %v1034, 14
        %v2605 = vpop.permute.xlu0 %2604
        %2606 = vrot.lane.b32.xlu0 %v1038, 14
        %v2607 = vpop.permute.xlu0 %2606
        %2608 = vrot.lane.b32.xlu0 %v1037, 14
        %v2609 = vpop.permute.xlu0 %2608
        %2610 = vrot.lane.b32.xlu0 %v1041, 14
        %v2611 = vpop.permute.xlu0 %2610
        %2612 = vrot.lane.b32.xlu0 %v1040, 14
        %v2613 = vpop.permute.xlu0 %2612
        %2614 = vrot.lane.b32.xlu0 %v1822, 14
        %v2615 = vpop.permute.xlu0 %2614
        %2616 = vrot.lane.b32.xlu0 %v1821, 14
        %v2617 = vpop.permute.xlu0 %2616
        %2618 = vrot.lane.b32.xlu0 %v2570, 14
        %v2619 = vpop.permute.xlu0 %2618
        %2620 = vrot.lane.b32.xlu0 %v2569, 14
        %v2621 = vpop.permute.xlu0 %2620
        %2622 = vrot.lane.b32.xlu0 %v1050, 14
        %v2623 = vpop.permute.xlu0 %2622
        %2624 = vrot.lane.b32.xlu0 %v1049, 14
        %v2625 = vpop.permute.xlu0 %2624
        %2626 = vrot.lane.b32.xlu0 %v1053, 14
        %v2627 = vpop.permute.xlu0 %2626
        %2628 = vrot.lane.b32.xlu0 %v1052, 14
        %v2629 = vpop.permute.xlu0 %2628
        %2630 = vrot.lane.b32.xlu0 %v1056, 14
        %v2631 = vpop.permute.xlu0 %2630
        %2632 = vrot.lane.b32.xlu0 %v1055, 14
        %v2633 = vpop.permute.xlu0 %2632
        %2634 = vrot.lane.b32.xlu0 %v1059, 14
        %v2635 = vpop.permute.xlu0 %2634
        %2636 = vrot.lane.b32.xlu0 %v1058, 14
        %v2637 = vpop.permute.xlu0 %2636
        %2638 = vrot.lane.b32.xlu0 %v1062, 14
        %v2639 = vpop.permute.xlu0 %2638
        %2640 = vrot.lane.b32.xlu0 %v1061, 14
        %v2641 = vpop.permute.xlu0 %2640
        %2642 = vrot.lane.b32.xlu0 %v1065, 14
        %v2643 = vpop.permute.xlu0 %2642
        %2644 = vrot.lane.b32.xlu0 %v1064, 14
        %v2645 = vpop.permute.xlu0 %2644
        %2646 = vrot.lane.b32.xlu0 %v1068, 14
        %v2647 = vpop.permute.xlu0 %2646
        %2648 = vrot.lane.b32.xlu0 %v1067, 14
        %v2649 = vpop.permute.xlu0 %2648
        %2650 = vrot.lane.b32.xlu0 %v1071, 14
        %v2651 = vpop.permute.xlu0 %2650
        %2652 = vrot.lane.b32.xlu0 %v1070, 14
        %v2653 = vpop.permute.xlu0 %2652
        %2654 = vrot.lane.b32.xlu0 %v1074, 14
        %v2655 = vpop.permute.xlu0 %2654
        %2656 = vrot.lane.b32.xlu0 %v1073, 14
        %v2657 = vpop.permute.xlu0 %2656
        %2658 = vrot.lane.b32.xlu0 %v1077, 14
        %v2659 = vpop.permute.xlu0 %2658
        %2660 = vrot.lane.b32.xlu0 %v1076, 14
        %v2661 = vpop.permute.xlu0 %2660
        %2662 = vrot.lane.b32.xlu0 %v1825, 14
        %v2663 = vpop.permute.xlu0 %2662
        %2664 = vrot.lane.b32.xlu0 %v1824, 14
        %v2665 = vpop.permute.xlu0 %2664
        %2666 = vrot.lane.b32.xlu0 %v2573, 14
        %v2667 = vpop.permute.xlu0 %2666
        %2668 = vrot.lane.b32.xlu0 %v2572, 14
        %v2669 = vpop.permute.xlu0 %2668
        %2722 = vrot.lane.b32.xlu0 %v181, 15
        %v2723 = vpop.permute.xlu0 %2722
        %2724 = vrot.lane.b32.xlu0 %v182, 15
        %v2725 = vpop.permute.xlu0 %2724
        %2726 = vrot.lane.b32.xlu0 %v183, 15
        %v2727 = vpop.permute.xlu0 %2726
        %2728 = vrot.lane.b32.xlu0 %v184, 15
        %v2729 = vpop.permute.xlu0 %2728
        %2730 = vrot.lane.b32.xlu0 %v185, 15
        %v2731 = vpop.permute.xlu0 %2730
        %2732 = vrot.lane.b32.xlu0 %v186, 15
        %v2733 = vpop.permute.xlu0 %2732
        %2734 = vrot.lane.b32.xlu0 %v187, 15
        %v2735 = vpop.permute.xlu0 %2734
        %2736 = vrot.lane.b32.xlu0 %v188, 15
        %v2737 = vpop.permute.xlu0 %2736
        %2738 = vrot.lane.b32.xlu0 %v189, 15
        %v2739 = vpop.permute.xlu0 %2738
        %2740 = vrot.lane.b32.xlu0 %v190, 15
        %v2741 = vpop.permute.xlu0 %2740
        %2742 = vrot.lane.b32.xlu0 %v191, 15
        %v2743 = vpop.permute.xlu0 %2742
        %2744 = vrot.lane.b32.xlu0 %v192, 15
        %v2745 = vpop.permute.xlu0 %2744
        %2746 = vrot.lane.b32.xlu0 %v193, 15
        %v2747 = vpop.permute.xlu0 %2746
        %2748 = vrot.lane.b32.xlu0 %v194, 15
        %v2749 = vpop.permute.xlu0 %2748
        %2750 = vrot.lane.b32.xlu0 %v195, 15
        %v2751 = vpop.permute.xlu0 %2750
        %2752 = vrot.lane.b32.xlu0 %v196, 15
        %v2753 = vpop.permute.xlu0 %2752
        %2754 = vrot.lane.b32.xlu0 %v197, 15
        %v2755 = vpop.permute.xlu0 %2754
        %2756 = vrot.lane.b32.xlu0 %v198, 15
        %v2757 = vpop.permute.xlu0 %2756
        %2758 = vrot.lane.b32.xlu0 %v199, 15
        %v2759 = vpop.permute.xlu0 %2758
        %2760 = vrot.lane.b32.xlu0 %v200, 15
        %v2761 = vpop.permute.xlu0 %2760
        %2762 = vrot.lane.b32.xlu0 %v201, 15
        %v2763 = vpop.permute.xlu0 %2762
        %2764 = vrot.lane.b32.xlu0 %v202, 15
        %v2765 = vpop.permute.xlu0 %2764
        %2766 = vrot.lane.b32.xlu0 %v203, 15
        %v2767 = vpop.permute.xlu0 %2766
        %2768 = vrot.lane.b32.xlu0 %v204, 15
        %v2769 = vpop.permute.xlu0 %2768
        %2770 = vrot.lane.b32.xlu0 %v213, 15
        %v2771 = vpop.permute.xlu0 %2770
        %2772 = vrot.lane.b32.xlu0 %v214, 15
        %v2773 = vpop.permute.xlu0 %2772
        %2774 = vrot.lane.b32.xlu0 %v215, 15
        %v2775 = vpop.permute.xlu0 %2774
        %2776 = vrot.lane.b32.xlu0 %v216, 15
        %v2777 = vpop.permute.xlu0 %2776
        %2778 = vrot.lane.b32.xlu0 %v217, 15
        %v2779 = vpop.permute.xlu0 %2778
        %2780 = vrot.lane.b32.xlu0 %v218, 15
        %v2781 = vpop.permute.xlu0 %2780
        %2782 = vrot.lane.b32.xlu0 %v219, 15
        %v2783 = vpop.permute.xlu0 %2782
        %2784 = vrot.lane.b32.xlu0 %v220, 15
        %v2785 = vpop.permute.xlu0 %2784
        %2786 = vrot.lane.b32.xlu0 %v221, 15
        %v2787 = vpop.permute.xlu0 %2786
        %2788 = vrot.lane.b32.xlu0 %v222, 15
        %v2789 = vpop.permute.xlu0 %2788
        %2790 = vrot.lane.b32.xlu0 %v223, 15
        %v2791 = vpop.permute.xlu0 %2790
        %2792 = vrot.lane.b32.xlu0 %v224, 15
        %v2793 = vpop.permute.xlu0 %2792
        %2794 = vrot.lane.b32.xlu0 %v225, 15
        %v2795 = vpop.permute.xlu0 %2794
        %2796 = vrot.lane.b32.xlu0 %v226, 15
        %v2797 = vpop.permute.xlu0 %2796
        %2798 = vrot.lane.b32.xlu0 %v227, 15
        %v2799 = vpop.permute.xlu0 %2798
        %2800 = vrot.lane.b32.xlu0 %v228, 15
        %v2801 = vpop.permute.xlu0 %2800
        %2802 = vrot.lane.b32.xlu0 %v229, 15
        %v2803 = vpop.permute.xlu0 %2802
        %2804 = vrot.lane.b32.xlu0 %v230, 15
        %v2805 = vpop.permute.xlu0 %2804
        %2806 = vrot.lane.b32.xlu0 %v231, 15
        %v2807 = vpop.permute.xlu0 %2806
        %2808 = vrot.lane.b32.xlu0 %v232, 15
        %v2809 = vpop.permute.xlu0 %2808
        %2810 = vrot.lane.b32.xlu0 %v233, 15
        %v2811 = vpop.permute.xlu0 %2810
        %2812 = vrot.lane.b32.xlu0 %v234, 15
        %v2813 = vpop.permute.xlu0 %2812
        %2814 = vrot.lane.b32.xlu0 %v235, 15
        %v2815 = vpop.permute.xlu0 %2814
        %2816 = vrot.lane.b32.xlu0 %v236, 15
        %v2817 = vpop.permute.xlu0 %2816
        %vm2866 = vcmask 7168
        %v2867 = vsel %vm2866, %v175, %v428
        %v2868 = vsel %vm2866, %v176, %v430
        %v2869 = vsel %vm2866, %v177, %v432
        %v2870 = vsel %vm2866, %v178, %v434
        %v2871 = vsel %vm2866, %v179, %v436
        %v2872 = vsel %vm2866, %v180, %v438
        %v2873 = vsel %vm2866, %v181, %v440
        %v2874 = vsel %vm2866, %v182, %v442
        %v2875 = vsel %vm2866, %v183, %v444
        %v2876 = vsel %vm2866, %v184, %v446
        %v2877 = vsel %vm2866, %v185, %v448
        %v2878 = vsel %vm2866, %v186, %v450
        %v2879 = vsel %vm2866, %v187, %v452
        %v2880 = vsel %vm2866, %v188, %v454
        %v2881 = vsel %vm2866, %v189, %v456
        %v2882 = vsel %vm2866, %v190, %v458
        %v2883 = vsel %vm2866, %v191, %v460
        %v2884 = vsel %vm2866, %v192, %v462
        %v2885 = vsel %vm2866, %v193, %v464
        %v2886 = vsel %vm2866, %v194, %v466
        %v2887 = vsel %vm2866, %v195, %v468
        %v2888 = vsel %vm2866, %v196, %v470
        %v2889 = vsel %vm2866, %v197, %v472
        %v2890 = vsel %vm2866, %v198, %v474
        %v2891 = vsel %vm2866, %v207, %v476
        %v2892 = vsel %vm2866, %v208, %v478
        %v2893 = vsel %vm2866, %v209, %v480
        %v2894 = vsel %vm2866, %v210, %v482
        %v2895 = vsel %vm2866, %v211, %v484
        %v2896 = vsel %vm2866, %v212, %v486
        %v2897 = vsel %vm2866, %v213, %v488
        %v2898 = vsel %vm2866, %v214, %v490
        %v2899 = vsel %vm2866, %v215, %v492
        %v2900 = vsel %vm2866, %v216, %v494
        %v2901 = vsel %vm2866, %v217, %v496
        %v2902 = vsel %vm2866, %v218, %v498
        %v2903 = vsel %vm2866, %v219, %v500
        %v2904 = vsel %vm2866, %v220, %v502
        %v2905 = vsel %vm2866, %v221, %v504
        %v2906 = vsel %vm2866, %v222, %v506
        %v2907 = vsel %vm2866, %v223, %v508
        %v2908 = vsel %vm2866, %v224, %v510
        %v2909 = vsel %vm2866, %v225, %v512
        %v2910 = vsel %vm2866, %v226, %v514
        %v2911 = vsel %vm2866, %v227, %v516
        %v2912 = vsel %vm2866, %v228, %v518
        %v2913 = vsel %vm2866, %v229, %v520
        %v2914 = vsel %vm2866, %v230, %v522
        %vm2915 = vcmask 15360
        %v2916 = vsel %vm2915, %v2867, %v645
        %v2917 = vsel %vm2915, %v2868, %v647
        %v2918 = vsel %vm2915, %v2869, %v649
        %v2919 = vsel %vm2915, %v2870, %v651
        %v2920 = vsel %vm2915, %v2871, %v653
        %v2921 = vsel %vm2915, %v2872, %v655
        %v2922 = vsel %vm2915, %v2873, %v657
        %v2923 = vsel %vm2915, %v2874, %v659
        %v2924 = vsel %vm2915, %v2875, %v661
        %v2925 = vsel %vm2915, %v2876, %v663
        %v2926 = vsel %vm2915, %v2877, %v665
        %v2927 = vsel %vm2915, %v2878, %v667
        %v2928 = vsel %vm2915, %v2879, %v669
        %v2929 = vsel %vm2915, %v2880, %v671
        %v2930 = vsel %vm2915, %v2881, %v673
        %v2931 = vsel %vm2915, %v2882, %v675
        %v2932 = vsel %vm2915, %v2883, %v677
        %v2933 = vsel %vm2915, %v2884, %v679
        %v2934 = vsel %vm2915, %v2885, %v681
        %v2935 = vsel %vm2915, %v2886, %v683
        %v2936 = vsel %vm2915, %v2887, %v685
        %v2937 = vsel %vm2915, %v2888, %v687
        %v2938 = vsel %vm2915, %v2889, %v689
        %v2939 = vsel %vm2915, %v2890, %v691
        %v2940 = vsel %vm2915, %v2891, %v693
        %v2941 = vsel %vm2915, %v2892, %v695
        %v2942 = vsel %vm2915, %v2893, %v697
        %v2943 = vsel %vm2915, %v2894, %v699
        %v2944 = vsel %vm2915, %v2895, %v701
        %v2945 = vsel %vm2915, %v2896, %v703
        %v2946 = vsel %vm2915, %v2897, %v705
        %v2947 = vsel %vm2915, %v2898, %v707
        %v2948 = vsel %vm2915, %v2899, %v709
        %v2949 = vsel %vm2915, %v2900, %v711
        %v2950 = vsel %vm2915, %v2901, %v713
        %v2951 = vsel %vm2915, %v2902, %v715
        %v2952 = vsel %vm2915, %v2903, %v717
        %v2953 = vsel %vm2915, %v2904, %v719
        %v2954 = vsel %vm2915, %v2905, %v721
        %v2955 = vsel %vm2915, %v2906, %v723
        %v2956 = vsel %vm2915, %v2907, %v725
        %v2957 = vsel %vm2915, %v2908, %v727
        %v2958 = vsel %vm2915, %v2909, %v729
        %v2959 = vsel %vm2915, %v2910, %v731
        %v2960 = vsel %vm2915, %v2911, %v733
        %v2961 = vsel %vm2915, %v2912, %v735
        %v2962 = vsel %vm2915, %v2913, %v737
        %v2963 = vsel %vm2915, %v2914, %v739
        %vm2964 = vcmask 23552
        %v2965 = vsel %vm2964, %v2916, %v862
        %v2966 = vsel %vm2964, %v2917, %v864
        %v2967 = vsel %vm2964, %v2918, %v866
        %v2968 = vsel %vm2964, %v2919, %v868
        %v2969 = vsel %vm2964, %v2920, %v870
        %v2970 = vsel %vm2964, %v2921, %v872
        %v2971 = vsel %vm2964, %v2922, %v874
        %v2972 = vsel %vm2964, %v2923, %v876
        %v2973 = vsel %vm2964, %v2924, %v878
        %v2974 = vsel %vm2964, %v2925, %v880
        %v2975 = vsel %vm2964, %v2926, %v882
        %v2976 = vsel %vm2964, %v2927, %v884
        %v2977 = vsel %vm2964, %v2928, %v886
        %v2978 = vsel %vm2964, %v2929, %v888
        %v2979 = vsel %vm2964, %v2930, %v890
        %v2980 = vsel %vm2964, %v2931, %v892
        %v2981 = vsel %vm2964, %v2932, %v894
        %v2982 = vsel %vm2964, %v2933, %v896
        %v2983 = vsel %vm2964, %v2934, %v898
        %v2984 = vsel %vm2964, %v2935, %v900
        %v2985 = vsel %vm2964, %v2936, %v902
        %v2986 = vsel %vm2964, %v2937, %v904
        %v2987 = vsel %vm2964, %v2938, %v906
        %v2988 = vsel %vm2964, %v2939, %v908
        %v2989 = vsel %vm2964, %v2940, %v910
        %v2990 = vsel %vm2964, %v2941, %v912
        %v2991 = vsel %vm2964, %v2942, %v914
        %v2992 = vsel %vm2964, %v2943, %v916
        %v2993 = vsel %vm2964, %v2944, %v918
        %v2994 = vsel %vm2964, %v2945, %v920
        %v2995 = vsel %vm2964, %v2946, %v922
        %v2996 = vsel %vm2964, %v2947, %v924
        %v2997 = vsel %vm2964, %v2948, %v926
        %v2998 = vsel %vm2964, %v2949, %v928
        %v2999 = vsel %vm2964, %v2950, %v930
        %v3000 = vsel %vm2964, %v2951, %v932
        %v3001 = vsel %vm2964, %v2952, %v934
        %v3002 = vsel %vm2964, %v2953, %v936
        %v3003 = vsel %vm2964, %v2954, %v938
        %v3004 = vsel %vm2964, %v2955, %v940
        %v3005 = vsel %vm2964, %v2956, %v942
        %v3006 = vsel %vm2964, %v2957, %v944
        %v3007 = vsel %vm2964, %v2958, %v946
        %v3008 = vsel %vm2964, %v2959, %v948
        %v3009 = vsel %vm2964, %v2960, %v950
        %v3010 = vsel %vm2964, %v2961, %v952
        %v3011 = vsel %vm2964, %v2962, %v954
        %v3012 = vsel %vm2964, %v2963, %v956
        %vm3013 = vcmask 31744
        %v3014 = vsel %vm3013, %v2965, %v1079
        %v3015 = vsel %vm3013, %v2966, %v1081
        %v3016 = vsel %vm3013, %v2967, %v1083
        %v3017 = vsel %vm3013, %v2968, %v1085
        %v3018 = vsel %vm3013, %v2969, %v1087
        %v3019 = vsel %vm3013, %v2970, %v1089
        %v3020 = vsel %vm3013, %v2971, %v1091
        %v3021 = vsel %vm3013, %v2972, %v1093
        %v3022 = vsel %vm3013, %v2973, %v1095
        %v3023 = vsel %vm3013, %v2974, %v1097
        %v3024 = vsel %vm3013, %v2975, %v1099
        %v3025 = vsel %vm3013, %v2976, %v1101
        %v3026 = vsel %vm3013, %v2977, %v1103
        %v3027 = vsel %vm3013, %v2978, %v1105
        %v3028 = vsel %vm3013, %v2979, %v1107
        %v3029 = vsel %vm3013, %v2980, %v1109
        %v3030 = vsel %vm3013, %v2981, %v1111
        %v3031 = vsel %vm3013, %v2982, %v1113
        %v3032 = vsel %vm3013, %v2983, %v1115
        %v3033 = vsel %vm3013, %v2984, %v1117
        %v3034 = vsel %vm3013, %v2985, %v1119
        %v3035 = vsel %vm3013, %v2986, %v1121
        %v3036 = vsel %vm3013, %v2987, %v1123
        %v3037 = vsel %vm3013, %v2988, %v1125
        %v3038 = vsel %vm3013, %v2989, %v1127
        %v3039 = vsel %vm3013, %v2990, %v1129
        %v3040 = vsel %vm3013, %v2991, %v1131
        %v3041 = vsel %vm3013, %v2992, %v1133
        %v3042 = vsel %vm3013, %v2993, %v1135
        %v3043 = vsel %vm3013, %v2994, %v1137
        %v3044 = vsel %vm3013, %v2995, %v1139
        %v3045 = vsel %vm3013, %v2996, %v1141
        %v3046 = vsel %vm3013, %v2997, %v1143
        %v3047 = vsel %vm3013, %v2998, %v1145
        %v3048 = vsel %vm3013, %v2999, %v1147
        %v3049 = vsel %vm3013, %v3000, %v1149
        %v3050 = vsel %vm3013, %v3001, %v1151
        %v3051 = vsel %vm3013, %v3002, %v1153
        %v3052 = vsel %vm3013, %v3003, %v1155
        %v3053 = vsel %vm3013, %v3004, %v1157
        %v3054 = vsel %vm3013, %v3005, %v1159
        %v3055 = vsel %vm3013, %v3006, %v1161
        %v3056 = vsel %vm3013, %v3007, %v1163
        %v3057 = vsel %vm3013, %v3008, %v1165
        %v3058 = vsel %vm3013, %v3009, %v1167
        %v3059 = vsel %vm3013, %v3010, %v1169
        %v3060 = vsel %vm3013, %v3011, %v1171
        %v3061 = vsel %vm3013, %v3012, %v1173
        %vm3062 = vcmask 39936
        %v3063 = vsel %vm3062, %v3014, %v1227
        %v3064 = vsel %vm3062, %v3015, %v1229
        %v3065 = vsel %vm3062, %v3016, %v1231
        %v3066 = vsel %vm3062, %v3017, %v1233
        %v3067 = vsel %vm3062, %v3018, %v1235
        %v3068 = vsel %vm3062, %v3019, %v1237
        %v3069 = vsel %vm3062, %v3020, %v1239
        %v3070 = vsel %vm3062, %v3021, %v1241
        %v3071 = vsel %vm3062, %v3022, %v1243
        %v3072 = vsel %vm3062, %v3023, %v1245
        %v3073 = vsel %vm3062, %v3024, %v1247
        %v3074 = vsel %vm3062, %v3025, %v1249
        %v3075 = vsel %vm3062, %v3026, %v1251
        %v3076 = vsel %vm3062, %v3027, %v1253
        %v3077 = vsel %vm3062, %v3028, %v1255
        %v3078 = vsel %vm3062, %v3029, %v1257
        %v3079 = vsel %vm3062, %v3030, %v1259
        %v3080 = vsel %vm3062, %v3031, %v1261
        %v3081 = vsel %vm3062, %v3032, %v1263
        %v3082 = vsel %vm3062, %v3033, %v1265
        %v3083 = vsel %vm3062, %v3034, %v1267
        %v3084 = vsel %vm3062, %v3035, %v1269
        %v3085 = vsel %vm3062, %v3036, %v1271
        %v3086 = vsel %vm3062, %v3037, %v1273
        %v3087 = vsel %vm3062, %v3038, %v1275
        %v3088 = vsel %vm3062, %v3039, %v1277
        %v3089 = vsel %vm3062, %v3040, %v1279
        %v3090 = vsel %vm3062, %v3041, %v1281
        %v3091 = vsel %vm3062, %v3042, %v1283
        %v3092 = vsel %vm3062, %v3043, %v1285
        %v3093 = vsel %vm3062, %v3044, %v1287
        %v3094 = vsel %vm3062, %v3045, %v1289
        %v3095 = vsel %vm3062, %v3046, %v1291
        %v3096 = vsel %vm3062, %v3047, %v1293
        %v3097 = vsel %vm3062, %v3048, %v1295
        %v3098 = vsel %vm3062, %v3049, %v1297
        %v3099 = vsel %vm3062, %v3050, %v1299
        %v3100 = vsel %vm3062, %v3051, %v1301
        %v3101 = vsel %vm3062, %v3052, %v1303
        %v3102 = vsel %vm3062, %v3053, %v1305
        %v3103 = vsel %vm3062, %v3054, %v1307
        %v3104 = vsel %vm3062, %v3055, %v1309
        %v3105 = vsel %vm3062, %v3056, %v1311
        %v3106 = vsel %vm3062, %v3057, %v1313
        %v3107 = vsel %vm3062, %v3058, %v1315
        %v3108 = vsel %vm3062, %v3059, %v1317
        %v3109 = vsel %vm3062, %v3060, %v1319
        %v3110 = vsel %vm3062, %v3061, %v1321
        %vm3111 = vcmask 48128
        %v3112 = vsel %vm3111, %v3063, %v1377
        %v3113 = vsel %vm3111, %v3064, %v1379
        %v3114 = vsel %vm3111, %v3065, %v1381
        %v3115 = vsel %vm3111, %v3066, %v1383
        %v3116 = vsel %vm3111, %v3067, %v1385
        %v3117 = vsel %vm3111, %v3068, %v1387
        %v3118 = vsel %vm3111, %v3069, %v1389
        %v3119 = vsel %vm3111, %v3070, %v1391
        %v3120 = vsel %vm3111, %v3071, %v1393
        %v3121 = vsel %vm3111, %v3072, %v1395
        %v3122 = vsel %vm3111, %v3073, %v1397
        %v3123 = vsel %vm3111, %v3074, %v1399
        %v3124 = vsel %vm3111, %v3075, %v1401
        %v3125 = vsel %vm3111, %v3076, %v1403
        %v3126 = vsel %vm3111, %v3077, %v1405
        %v3127 = vsel %vm3111, %v3078, %v1407
        %v3128 = vsel %vm3111, %v3079, %v1409
        %v3129 = vsel %vm3111, %v3080, %v1411
        %v3130 = vsel %vm3111, %v3081, %v1413
        %v3131 = vsel %vm3111, %v3082, %v1415
        %v3132 = vsel %vm3111, %v3083, %v1417
        %v3133 = vsel %vm3111, %v3084, %v1419
        %v3134 = vsel %vm3111, %v3085, %v1421
        %v3135 = vsel %vm3111, %v3086, %v1423
        %v3136 = vsel %vm3111, %v3087, %v1425
        %v3137 = vsel %vm3111, %v3088, %v1427
        %v3138 = vsel %vm3111, %v3089, %v1429
        %v3139 = vsel %vm3111, %v3090, %v1431
        %v3140 = vsel %vm3111, %v3091, %v1433
        %v3141 = vsel %vm3111, %v3092, %v1435
        %v3142 = vsel %vm3111, %v3093, %v1437
        %v3143 = vsel %vm3111, %v3094, %v1439
        %v3144 = vsel %vm3111, %v3095, %v1441
        %v3145 = vsel %vm3111, %v3096, %v1443
        %v3146 = vsel %vm3111, %v3097, %v1445
        %v3147 = vsel %vm3111, %v3098, %v1447
        %v3148 = vsel %vm3111, %v3099, %v1449
        %v3149 = vsel %vm3111, %v3100, %v1451
        %v3150 = vsel %vm3111, %v3101, %v1453
        %v3151 = vsel %vm3111, %v3102, %v1455
        %v3152 = vsel %vm3111, %v3103, %v1457
        %v3153 = vsel %vm3111, %v3104, %v1459
        %v3154 = vsel %vm3111, %v3105, %v1461
        %v3155 = vsel %vm3111, %v3106, %v1463
        %v3156 = vsel %vm3111, %v3107, %v1465
        %v3157 = vsel %vm3111, %v3108, %v1467
        %v3158 = vsel %vm3111, %v3109, %v1469
        %v3159 = vsel %vm3111, %v3110, %v1471
        %vm3160 = vcmask 56320
        %v3161 = vsel %vm3160, %v3112, %v1527
        %v3162 = vsel %vm3160, %v3113, %v1529
        %v3163 = vsel %vm3160, %v3114, %v1531
        %v3164 = vsel %vm3160, %v3115, %v1533
        %v3165 = vsel %vm3160, %v3116, %v1535
        %v3166 = vsel %vm3160, %v3117, %v1537
        %v3167 = vsel %vm3160, %v3118, %v1539
        %v3168 = vsel %vm3160, %v3119, %v1541
        %v3169 = vsel %vm3160, %v3120, %v1543
        %v3170 = vsel %vm3160, %v3121, %v1545
        %v3171 = vsel %vm3160, %v3122, %v1547
        %v3172 = vsel %vm3160, %v3123, %v1549
        %v3173 = vsel %vm3160, %v3124, %v1551
        %v3174 = vsel %vm3160, %v3125, %v1553
        %v3175 = vsel %vm3160, %v3126, %v1555
        %v3176 = vsel %vm3160, %v3127, %v1557
        %v3177 = vsel %vm3160, %v3128, %v1559
        %v3178 = vsel %vm3160, %v3129, %v1561
        %v3179 = vsel %vm3160, %v3130, %v1563
        %v3180 = vsel %vm3160, %v3131, %v1565
        %v3181 = vsel %vm3160, %v3132, %v1567
        %v3182 = vsel %vm3160, %v3133, %v1569
        %v3183 = vsel %vm3160, %v3134, %v1571
        %v3184 = vsel %vm3160, %v3135, %v1573
        %v3185 = vsel %vm3160, %v3136, %v1575
        %v3186 = vsel %vm3160, %v3137, %v1577
        %v3187 = vsel %vm3160, %v3138, %v1579
        %v3188 = vsel %vm3160, %v3139, %v1581
        %v3189 = vsel %vm3160, %v3140, %v1583
        %v3190 = vsel %vm3160, %v3141, %v1585
        %v3191 = vsel %vm3160, %v3142, %v1587
        %v3192 = vsel %vm3160, %v3143, %v1589
        %v3193 = vsel %vm3160, %v3144, %v1591
        %v3194 = vsel %vm3160, %v3145, %v1593
        %v3195 = vsel %vm3160, %v3146, %v1595
        %v3196 = vsel %vm3160, %v3147, %v1597
        %v3197 = vsel %vm3160, %v3148, %v1599
        %v3198 = vsel %vm3160, %v3149, %v1601
        %v3199 = vsel %vm3160, %v3150, %v1603
        %v3200 = vsel %vm3160, %v3151, %v1605
        %v3201 = vsel %vm3160, %v3152, %v1607
        %v3202 = vsel %vm3160, %v3153, %v1609
        %v3203 = vsel %vm3160, %v3154, %v1611
        %v3204 = vsel %vm3160, %v3155, %v1613
        %v3205 = vsel %vm3160, %v3156, %v1615
        %v3206 = vsel %vm3160, %v3157, %v1617
        %v3207 = vsel %vm3160, %v3158, %v1619
        %v3208 = vsel %vm3160, %v3159, %v1621
        %vm3209 = vcmask 64512
        %v3210 = vsel %vm3209, %v3161, %v1677
        %v3211 = vsel %vm3209, %v3162, %v1679
        %v3212 = vsel %vm3209, %v3163, %v1681
        %v3213 = vsel %vm3209, %v3164, %v1683
        %v3214 = vsel %vm3209, %v3165, %v1685
        %v3215 = vsel %vm3209, %v3166, %v1687
        %v3216 = vsel %vm3209, %v3167, %v1689
        %v3217 = vsel %vm3209, %v3168, %v1691
        %v3218 = vsel %vm3209, %v3169, %v1693
        %v3219 = vsel %vm3209, %v3170, %v1695
        %v3220 = vsel %vm3209, %v3171, %v1697
        %v3221 = vsel %vm3209, %v3172, %v1699
        %v3222 = vsel %vm3209, %v3173, %v1701
        %v3223 = vsel %vm3209, %v3174, %v1703
        %v3224 = vsel %vm3209, %v3175, %v1705
        %v3225 = vsel %vm3209, %v3176, %v1707
        %v3226 = vsel %vm3209, %v3177, %v1709
        %v3227 = vsel %vm3209, %v3178, %v1711
        %v3228 = vsel %vm3209, %v3179, %v1713
        %v3229 = vsel %vm3209, %v3180, %v1715
        %v3230 = vsel %vm3209, %v3181, %v1717
        %v3231 = vsel %vm3209, %v3182, %v1719
        %v3232 = vsel %vm3209, %v3183, %v1721
        %v3233 = vsel %vm3209, %v3184, %v1723
        %v3234 = vsel %vm3209, %v3185, %v1725
        %v3235 = vsel %vm3209, %v3186, %v1727
        %v3236 = vsel %vm3209, %v3187, %v1729
        %v3237 = vsel %vm3209, %v3188, %v1731
        %v3238 = vsel %vm3209, %v3189, %v1733
        %v3239 = vsel %vm3209, %v3190, %v1735
        %v3240 = vsel %vm3209, %v3191, %v1737
        %v3241 = vsel %vm3209, %v3192, %v1739
        %v3242 = vsel %vm3209, %v3193, %v1741
        %v3243 = vsel %vm3209, %v3194, %v1743
        %v3244 = vsel %vm3209, %v3195, %v1745
        %v3245 = vsel %vm3209, %v3196, %v1747
        %v3246 = vsel %vm3209, %v3197, %v1749
        %v3247 = vsel %vm3209, %v3198, %v1751
        %v3248 = vsel %vm3209, %v3199, %v1753
        %v3249 = vsel %vm3209, %v3200, %v1755
        %v3250 = vsel %vm3209, %v3201, %v1757
        %v3251 = vsel %vm3209, %v3202, %v1759
        %v3252 = vsel %vm3209, %v3203, %v1761
        %v3253 = vsel %vm3209, %v3204, %v1763
        %v3254 = vsel %vm3209, %v3205, %v1765
        %v3255 = vsel %vm3209, %v3206, %v1767
        %v3256 = vsel %vm3209, %v3207, %v1769
        %v3257 = vsel %vm3209, %v3208, %v1771
        %vm3258 = vcmask 72704
        %v3259 = vsel %vm3258, %v3210, %v1827
        %v3260 = vsel %vm3258, %v3211, %v1829
        %v3261 = vsel %vm3258, %v3212, %v1831
        %v3262 = vsel %vm3258, %v3213, %v1833
        %v3263 = vsel %vm3258, %v3214, %v1835
        %v3264 = vsel %vm3258, %v3215, %v1837
        %v3265 = vsel %vm3258, %v3216, %v1839
        %v3266 = vsel %vm3258, %v3217, %v1841
        %v3267 = vsel %vm3258, %v3218, %v1843
        %v3268 = vsel %vm3258, %v3219, %v1845
        %v3269 = vsel %vm3258, %v3220, %v1847
        %v3270 = vsel %vm3258, %v3221, %v1849
        %v3271 = vsel %vm3258, %v3222, %v1851
        %v3272 = vsel %vm3258, %v3223, %v1853
        %v3273 = vsel %vm3258, %v3224, %v1855
        %v3274 = vsel %vm3258, %v3225, %v1857
        %v3275 = vsel %vm3258, %v3226, %v1859
        %v3276 = vsel %vm3258, %v3227, %v1861
        %v3277 = vsel %vm3258, %v3228, %v1863
        %v3278 = vsel %vm3258, %v3229, %v1865
        %v3279 = vsel %vm3258, %v3230, %v1867
        %v3280 = vsel %vm3258, %v3231, %v1869
        %v3281 = vsel %vm3258, %v3232, %v1871
        %v3282 = vsel %vm3258, %v3233, %v1873
        %v3283 = vsel %vm3258, %v3234, %v1875
        %v3284 = vsel %vm3258, %v3235, %v1877
        %v3285 = vsel %vm3258, %v3236, %v1879
        %v3286 = vsel %vm3258, %v3237, %v1881
        %v3287 = vsel %vm3258, %v3238, %v1883
        %v3288 = vsel %vm3258, %v3239, %v1885
        %v3289 = vsel %vm3258, %v3240, %v1887
        %v3290 = vsel %vm3258, %v3241, %v1889
        %v3291 = vsel %vm3258, %v3242, %v1891
        %v3292 = vsel %vm3258, %v3243, %v1893
        %v3293 = vsel %vm3258, %v3244, %v1895
        %v3294 = vsel %vm3258, %v3245, %v1897
        %v3295 = vsel %vm3258, %v3246, %v1899
        %v3296 = vsel %vm3258, %v3247, %v1901
        %v3297 = vsel %vm3258, %v3248, %v1903
        %v3298 = vsel %vm3258, %v3249, %v1905
        %v3299 = vsel %vm3258, %v3250, %v1907
        %v3300 = vsel %vm3258, %v3251, %v1909
        %v3301 = vsel %vm3258, %v3252, %v1911
        %v3302 = vsel %vm3258, %v3253, %v1913
        %v3303 = vsel %vm3258, %v3254, %v1915
        %v3304 = vsel %vm3258, %v3255, %v1917
        %v3305 = vsel %vm3258, %v3256, %v1919
        %v3306 = vsel %vm3258, %v3257, %v1921
        %vm3307 = vcmask 80896
        %v3308 = vsel %vm3307, %v3259, %v1975
        %v3309 = vsel %vm3307, %v3260, %v1977
        %v3310 = vsel %vm3307, %v3261, %v1979
        %v3311 = vsel %vm3307, %v3262, %v1981
        %v3312 = vsel %vm3307, %v3263, %v1983
        %v3313 = vsel %vm3307, %v3264, %v1985
        %v3314 = vsel %vm3307, %v3265, %v1987
        %v3315 = vsel %vm3307, %v3266, %v1989
        %v3316 = vsel %vm3307, %v3267, %v1991
        %v3317 = vsel %vm3307, %v3268, %v1993
        %v3318 = vsel %vm3307, %v3269, %v1995
        %v3319 = vsel %vm3307, %v3270, %v1997
        %v3320 = vsel %vm3307, %v3271, %v1999
        %v3321 = vsel %vm3307, %v3272, %v2001
        %v3322 = vsel %vm3307, %v3273, %v2003
        %v3323 = vsel %vm3307, %v3274, %v2005
        %v3324 = vsel %vm3307, %v3275, %v2007
        %v3325 = vsel %vm3307, %v3276, %v2009
        %v3326 = vsel %vm3307, %v3277, %v2011
        %v3327 = vsel %vm3307, %v3278, %v2013
        %v3328 = vsel %vm3307, %v3279, %v2015
        %v3329 = vsel %vm3307, %v3280, %v2017
        %v3330 = vsel %vm3307, %v3281, %v2019
        %v3331 = vsel %vm3307, %v3282, %v2021
        %v3332 = vsel %vm3307, %v3283, %v2023
        %v3333 = vsel %vm3307, %v3284, %v2025
        %v3334 = vsel %vm3307, %v3285, %v2027
        %v3335 = vsel %vm3307, %v3286, %v2029
        %v3336 = vsel %vm3307, %v3287, %v2031
        %v3337 = vsel %vm3307, %v3288, %v2033
        %v3338 = vsel %vm3307, %v3289, %v2035
        %v3339 = vsel %vm3307, %v3290, %v2037
        %v3340 = vsel %vm3307, %v3291, %v2039
        %v3341 = vsel %vm3307, %v3292, %v2041
        %v3342 = vsel %vm3307, %v3293, %v2043
        %v3343 = vsel %vm3307, %v3294, %v2045
        %v3344 = vsel %vm3307, %v3295, %v2047
        %v3345 = vsel %vm3307, %v3296, %v2049
        %v3346 = vsel %vm3307, %v3297, %v2051
        %v3347 = vsel %vm3307, %v3298, %v2053
        %v3348 = vsel %vm3307, %v3299, %v2055
        %v3349 = vsel %vm3307, %v3300, %v2057
        %v3350 = vsel %vm3307, %v3301, %v2059
        %v3351 = vsel %vm3307, %v3302, %v2061
        %v3352 = vsel %vm3307, %v3303, %v2063
        %v3353 = vsel %vm3307, %v3304, %v2065
        %v3354 = vsel %vm3307, %v3305, %v2067
        %v3355 = vsel %vm3307, %v3306, %v2069
        %vm3356 = vcmask 89088
        %v3357 = vsel %vm3356, %v3308, %v2125
        %v3358 = vsel %vm3356, %v3309, %v2127
        %v3359 = vsel %vm3356, %v3310, %v2129
        %v3360 = vsel %vm3356, %v3311, %v2131
        %v3361 = vsel %vm3356, %v3312, %v2133
        %v3362 = vsel %vm3356, %v3313, %v2135
        %v3363 = vsel %vm3356, %v3314, %v2137
        %v3364 = vsel %vm3356, %v3315, %v2139
        %v3365 = vsel %vm3356, %v3316, %v2141
        %v3366 = vsel %vm3356, %v3317, %v2143
        %v3367 = vsel %vm3356, %v3318, %v2145
        %v3368 = vsel %vm3356, %v3319, %v2147
        %v3369 = vsel %vm3356, %v3320, %v2149
        %v3370 = vsel %vm3356, %v3321, %v2151
        %v3371 = vsel %vm3356, %v3322, %v2153
        %v3372 = vsel %vm3356, %v3323, %v2155
        %v3373 = vsel %vm3356, %v3324, %v2157
        %v3374 = vsel %vm3356, %v3325, %v2159
        %v3375 = vsel %vm3356, %v3326, %v2161
        %v3376 = vsel %vm3356, %v3327, %v2163
        %v3377 = vsel %vm3356, %v3328, %v2165
        %v3378 = vsel %vm3356, %v3329, %v2167
        %v3379 = vsel %vm3356, %v3330, %v2169
        %v3380 = vsel %vm3356, %v3331, %v2171
        %v3381 = vsel %vm3356, %v3332, %v2173
        %v3382 = vsel %vm3356, %v3333, %v2175
        %v3383 = vsel %vm3356, %v3334, %v2177
        %v3384 = vsel %vm3356, %v3335, %v2179
        %v3385 = vsel %vm3356, %v3336, %v2181
        %v3386 = vsel %vm3356, %v3337, %v2183
        %v3387 = vsel %vm3356, %v3338, %v2185
        %v3388 = vsel %vm3356, %v3339, %v2187
        %v3389 = vsel %vm3356, %v3340, %v2189
        %v3390 = vsel %vm3356, %v3341, %v2191
        %v3391 = vsel %vm3356, %v3342, %v2193
        %v3392 = vsel %vm3356, %v3343, %v2195
        %v3393 = vsel %vm3356, %v3344, %v2197
        %v3394 = vsel %vm3356, %v3345, %v2199
        %v3395 = vsel %vm3356, %v3346, %v2201
        %v3396 = vsel %vm3356, %v3347, %v2203
        %v3397 = vsel %vm3356, %v3348, %v2205
        %v3398 = vsel %vm3356, %v3349, %v2207
        %v3399 = vsel %vm3356, %v3350, %v2209
        %v3400 = vsel %vm3356, %v3351, %v2211
        %v3401 = vsel %vm3356, %v3352, %v2213
        %v3402 = vsel %vm3356, %v3353, %v2215
        %v3403 = vsel %vm3356, %v3354, %v2217
        %v3404 = vsel %vm3356, %v3355, %v2219
        %vm3405 = vcmask 97280
        %v3406 = vsel %vm3405, %v3357, %v2275
        %v3407 = vsel %vm3405, %v3358, %v2277
        %v3408 = vsel %vm3405, %v3359, %v2279
        %v3409 = vsel %vm3405, %v3360, %v2281
        %v3410 = vsel %vm3405, %v3361, %v2283
        %v3411 = vsel %vm3405, %v3362, %v2285
        %v3412 = vsel %vm3405, %v3363, %v2287
        %v3413 = vsel %vm3405, %v3364, %v2289
        %v3414 = vsel %vm3405, %v3365, %v2291
        %v3415 = vsel %vm3405, %v3366, %v2293
        %v3416 = vsel %vm3405, %v3367, %v2295
        %v3417 = vsel %vm3405, %v3368, %v2297
        %v3418 = vsel %vm3405, %v3369, %v2299
        %v3419 = vsel %vm3405, %v3370, %v2301
        %v3420 = vsel %vm3405, %v3371, %v2303
        %v3421 = vsel %vm3405, %v3372, %v2305
        %v3422 = vsel %vm3405, %v3373, %v2307
        %v3423 = vsel %vm3405, %v3374, %v2309
        %v3424 = vsel %vm3405, %v3375, %v2311
        %v3425 = vsel %vm3405, %v3376, %v2313
        %v3426 = vsel %vm3405, %v3377, %v2315
        %v3427 = vsel %vm3405, %v3378, %v2317
        %v3428 = vsel %vm3405, %v3379, %v2319
        %v3429 = vsel %vm3405, %v3380, %v2321
        %v3430 = vsel %vm3405, %v3381, %v2323
        %v3431 = vsel %vm3405, %v3382, %v2325
        %v3432 = vsel %vm3405, %v3383, %v2327
        %v3433 = vsel %vm3405, %v3384, %v2329
        %v3434 = vsel %vm3405, %v3385, %v2331
        %v3435 = vsel %vm3405, %v3386, %v2333
        %v3436 = vsel %vm3405, %v3387, %v2335
        %v3437 = vsel %vm3405, %v3388, %v2337
        %v3438 = vsel %vm3405, %v3389, %v2339
        %v3439 = vsel %vm3405, %v3390, %v2341
        %v3440 = vsel %vm3405, %v3391, %v2343
        %v3441 = vsel %vm3405, %v3392, %v2345
        %v3442 = vsel %vm3405, %v3393, %v2347
        %v3443 = vsel %vm3405, %v3394, %v2349
        %v3444 = vsel %vm3405, %v3395, %v2351
        %v3445 = vsel %vm3405, %v3396, %v2353
        %v3446 = vsel %vm3405, %v3397, %v2355
        %v3447 = vsel %vm3405, %v3398, %v2357
        %v3448 = vsel %vm3405, %v3399, %v2359
        %v3449 = vsel %vm3405, %v3400, %v2361
        %v3450 = vsel %vm3405, %v3401, %v2363
        %v3451 = vsel %vm3405, %v3402, %v2365
        %v3452 = vsel %vm3405, %v3403, %v2367
        %v3453 = vsel %vm3405, %v3404, %v2369
        %vm3454 = vcmask 105472
        %v3455 = vsel %vm3454, %v3406, %v2425
        %v3456 = vsel %vm3454, %v3407, %v2427
        %v3457 = vsel %vm3454, %v3408, %v2429
        %v3458 = vsel %vm3454, %v3409, %v2431
        %v3459 = vsel %vm3454, %v3410, %v2433
        %v3460 = vsel %vm3454, %v3411, %v2435
        %v3461 = vsel %vm3454, %v3412, %v2437
        %v3462 = vsel %vm3454, %v3413, %v2439
        %v3463 = vsel %vm3454, %v3414, %v2441
        %v3464 = vsel %vm3454, %v3415, %v2443
        %v3465 = vsel %vm3454, %v3416, %v2445
        %v3466 = vsel %vm3454, %v3417, %v2447
        %v3467 = vsel %vm3454, %v3418, %v2449
        %v3468 = vsel %vm3454, %v3419, %v2451
        %v3469 = vsel %vm3454, %v3420, %v2453
        %v3470 = vsel %vm3454, %v3421, %v2455
        %v3471 = vsel %vm3454, %v3422, %v2457
        %v3472 = vsel %vm3454, %v3423, %v2459
        %v3473 = vsel %vm3454, %v3424, %v2461
        %v3474 = vsel %vm3454, %v3425, %v2463
        %v3475 = vsel %vm3454, %v3426, %v2465
        %v3476 = vsel %vm3454, %v3427, %v2467
        %v3477 = vsel %vm3454, %v3428, %v2469
        %v3478 = vsel %vm3454, %v3429, %v2471
        %v3479 = vsel %vm3454, %v3430, %v2473
        %v3480 = vsel %vm3454, %v3431, %v2475
        %v3481 = vsel %vm3454, %v3432, %v2477
        %v3482 = vsel %vm3454, %v3433, %v2479
        %v3483 = vsel %vm3454, %v3434, %v2481
        %v3484 = vsel %vm3454, %v3435, %v2483
        %v3485 = vsel %vm3454, %v3436, %v2485
        %v3486 = vsel %vm3454, %v3437, %v2487
        %v3487 = vsel %vm3454, %v3438, %v2489
        %v3488 = vsel %vm3454, %v3439, %v2491
        %v3489 = vsel %vm3454, %v3440, %v2493
        %v3490 = vsel %vm3454, %v3441, %v2495
        %v3491 = vsel %vm3454, %v3442, %v2497
        %v3492 = vsel %vm3454, %v3443, %v2499
        %v3493 = vsel %vm3454, %v3444, %v2501
        %v3494 = vsel %vm3454, %v3445, %v2503
        %v3495 = vsel %vm3454, %v3446, %v2505
        %v3496 = vsel %vm3454, %v3447, %v2507
        %v3497 = vsel %vm3454, %v3448, %v2509
        %v3498 = vsel %vm3454, %v3449, %v2511
        %v3499 = vsel %vm3454, %v3450, %v2513
        %v3500 = vsel %vm3454, %v3451, %v2515
        %v3501 = vsel %vm3454, %v3452, %v2517
        %v3502 = vsel %vm3454, %v3453, %v2519
        %vm3503 = vcmask 113664
        %v3504 = vsel %vm3503, %v3455, %v2575
        %v3505 = vsel %vm3503, %v3456, %v2577
        %v3506 = vsel %vm3503, %v3457, %v2579
        %v3507 = vsel %vm3503, %v3458, %v2581
        %v3508 = vsel %vm3503, %v3459, %v2583
        %v3509 = vsel %vm3503, %v3460, %v2585
        %v3510 = vsel %vm3503, %v3461, %v2587
        %v3511 = vsel %vm3503, %v3462, %v2589
        %v3512 = vsel %vm3503, %v3463, %v2591
        %v3513 = vsel %vm3503, %v3464, %v2593
        %v3514 = vsel %vm3503, %v3465, %v2595
        %v3515 = vsel %vm3503, %v3466, %v2597
        %v3516 = vsel %vm3503, %v3467, %v2599
        %v3517 = vsel %vm3503, %v3468, %v2601
        %v3518 = vsel %vm3503, %v3469, %v2603
        %v3519 = vsel %vm3503, %v3470, %v2605
        %v3520 = vsel %vm3503, %v3471, %v2607
        %v3521 = vsel %vm3503, %v3472, %v2609
        %v3522 = vsel %vm3503, %v3473, %v2611
        %v3523 = vsel %vm3503, %v3474, %v2613
        %v3524 = vsel %vm3503, %v3475, %v2615
        %v3525 = vsel %vm3503, %v3476, %v2617
        %v3526 = vsel %vm3503, %v3477, %v2619
        %v3527 = vsel %vm3503, %v3478, %v2621
        %v3528 = vsel %vm3503, %v3479, %v2623
        %v3529 = vsel %vm3503, %v3480, %v2625
        %v3530 = vsel %vm3503, %v3481, %v2627
        %v3531 = vsel %vm3503, %v3482, %v2629
        %v3532 = vsel %vm3503, %v3483, %v2631
        %v3533 = vsel %vm3503, %v3484, %v2633
        %v3534 = vsel %vm3503, %v3485, %v2635
        %v3535 = vsel %vm3503, %v3486, %v2637
        %v3536 = vsel %vm3503, %v3487, %v2639
        %v3537 = vsel %vm3503, %v3488, %v2641
        %v3538 = vsel %vm3503, %v3489, %v2643
        %v3539 = vsel %vm3503, %v3490, %v2645
        %v3540 = vsel %vm3503, %v3491, %v2647
        %v3541 = vsel %vm3503, %v3492, %v2649
        %v3542 = vsel %vm3503, %v3493, %v2651
        %v3543 = vsel %vm3503, %v3494, %v2653
        %v3544 = vsel %vm3503, %v3495, %v2655
        %v3545 = vsel %vm3503, %v3496, %v2657
        %v3546 = vsel %vm3503, %v3497, %v2659
        %v3547 = vsel %vm3503, %v3498, %v2661
        %v3548 = vsel %vm3503, %v3499, %v2663
        %v3549 = vsel %vm3503, %v3500, %v2665
        %v3550 = vsel %vm3503, %v3501, %v2667
        %v3551 = vsel %vm3503, %v3502, %v2669
        %vm3552 = vcmask 121856
        %v3553 = vsel %vm3552, %v3504, %v2723
        %v3554 = vsel %vm3552, %v3505, %v2725
        %v3555 = vsel %vm3552, %v3506, %v2727
        %v3556 = vsel %vm3552, %v3507, %v2729
        %v3557 = vsel %vm3552, %v3508, %v2731
        %v3558 = vsel %vm3552, %v3509, %v2733
        %v3559 = vsel %vm3552, %v3510, %v2735
        %v3560 = vsel %vm3552, %v3511, %v2737
        %v3561 = vsel %vm3552, %v3512, %v2739
        %v3562 = vsel %vm3552, %v3513, %v2741
        %v3563 = vsel %vm3552, %v3514, %v2743
        %v3564 = vsel %vm3552, %v3515, %v2745
        %v3565 = vsel %vm3552, %v3516, %v2747
        %v3566 = vsel %vm3552, %v3517, %v2749
        %v3567 = vsel %vm3552, %v3518, %v2751
        %v3568 = vsel %vm3552, %v3519, %v2753
        %v3569 = vsel %vm3552, %v3520, %v2755
        %v3570 = vsel %vm3552, %v3521, %v2757
        %v3571 = vsel %vm3552, %v3522, %v2759
        %v3572 = vsel %vm3552, %v3523, %v2761
        %v3573 = vsel %vm3552, %v3524, %v2763
        %v3574 = vsel %vm3552, %v3525, %v2765
        %v3575 = vsel %vm3552, %v3526, %v2767
        %v3576 = vsel %vm3552, %v3527, %v2769
        %v3577 = vsel %vm3552, %v3528, %v2771
        %v3578 = vsel %vm3552, %v3529, %v2773
        %v3579 = vsel %vm3552, %v3530, %v2775
        %v3580 = vsel %vm3552, %v3531, %v2777
        %v3581 = vsel %vm3552, %v3532, %v2779
        %v3582 = vsel %vm3552, %v3533, %v2781
        %v3583 = vsel %vm3552, %v3534, %v2783
        %v3584 = vsel %vm3552, %v3535, %v2785
        %v3585 = vsel %vm3552, %v3536, %v2787
        %v3586 = vsel %vm3552, %v3537, %v2789
        %v3587 = vsel %vm3552, %v3538, %v2791
        %v3588 = vsel %vm3552, %v3539, %v2793
        %v3589 = vsel %vm3552, %v3540, %v2795
        %v3590 = vsel %vm3552, %v3541, %v2797
        %v3591 = vsel %vm3552, %v3542, %v2799
        %v3592 = vsel %vm3552, %v3543, %v2801
        %v3593 = vsel %vm3552, %v3544, %v2803
        %v3594 = vsel %vm3552, %v3545, %v2805
        %v3595 = vsel %vm3552, %v3546, %v2807
        %v3596 = vsel %vm3552, %v3547, %v2809
        %v3597 = vsel %vm3552, %v3548, %v2811
        %v3598 = vsel %vm3552, %v3549, %v2813
        %v3599 = vsel %vm3552, %v3550, %v2815
        %v3600 = vsel %vm3552, %v3551, %v2817
        %v3601 = vrot.slane %v203, 1
        %v3602 = vrot.slane %v204, 1
        %v3603 = vsel %vm354, %v3601, %v3602
        %v3604 = vrot.slane %v235, 1
        %v3605 = vrot.slane %v236, 1
        %v3606 = vsel %vm354, %v3604, %v3605
        %3607 = vrot.lane.b32.xlu0 %v1372, 1
        %v3608 = vpop.permute.xlu0 %3607
        %3609 = vrot.lane.b32.xlu0 %v1371, 1
        %v3610 = vpop.permute.xlu0 %3609
        %3611 = vrot.lane.b32.xlu0 %v2120, 1
        %v3612 = vpop.permute.xlu0 %3611
        %3613 = vrot.lane.b32.xlu0 %v2119, 1
        %v3614 = vpop.permute.xlu0 %3613
        %3615 = vrot.lane.b32.xlu0 %v3603, 1
        %v3616 = vpop.permute.xlu0 %3615
        %3617 = vrot.lane.b32.xlu0 %v3602, 1
        %v3618 = vpop.permute.xlu0 %3617
        %3619 = vrot.lane.b32.xlu0 %v1375, 1
        %v3620 = vpop.permute.xlu0 %3619
        %3621 = vrot.lane.b32.xlu0 %v1374, 1
        %v3622 = vpop.permute.xlu0 %3621
        %3623 = vrot.lane.b32.xlu0 %v2123, 1
        %v3624 = vpop.permute.xlu0 %3623
        %3625 = vrot.lane.b32.xlu0 %v2122, 1
        %v3626 = vpop.permute.xlu0 %3625
        %3627 = vrot.lane.b32.xlu0 %v3606, 1
        %v3628 = vpop.permute.xlu0 %3627
        %3629 = vrot.lane.b32.xlu0 %v3605, 1
        %v3630 = vpop.permute.xlu0 %3629
        %v3643 = vrot.slane %v203, 2
        %v3644 = vrot.slane %v204, 2
        %v3645 = vsel %vm571, %v3643, %v3644
        %v3646 = vrot.slane %v235, 2
        %v3647 = vrot.slane %v236, 2
        %v3648 = vsel %vm571, %v3646, %v3647
        %3649 = vrot.lane.b32.xlu0 %v1522, 2
        %v3650 = vpop.permute.xlu0 %3649
        %3651 = vrot.lane.b32.xlu0 %v1521, 2
        %v3652 = vpop.permute.xlu0 %3651
        %3653 = vrot.lane.b32.xlu0 %v2270, 2
        %v3654 = vpop.permute.xlu0 %3653
        %3655 = vrot.lane.b32.xlu0 %v2269, 2
        %v3656 = vpop.permute.xlu0 %3655
        %3657 = vrot.lane.b32.xlu0 %v3645, 2
        %v3658 = vpop.permute.xlu0 %3657
        %3659 = vrot.lane.b32.xlu0 %v3644, 2
        %v3660 = vpop.permute.xlu0 %3659
        %3661 = vrot.lane.b32.xlu0 %v1525, 2
        %v3662 = vpop.permute.xlu0 %3661
        %3663 = vrot.lane.b32.xlu0 %v1524, 2
        %v3664 = vpop.permute.xlu0 %3663
        %3665 = vrot.lane.b32.xlu0 %v2273, 2
        %v3666 = vpop.permute.xlu0 %3665
        %3667 = vrot.lane.b32.xlu0 %v2272, 2
        %v3668 = vpop.permute.xlu0 %3667
        %3669 = vrot.lane.b32.xlu0 %v3648, 2
        %v3670 = vpop.permute.xlu0 %3669
        %3671 = vrot.lane.b32.xlu0 %v3647, 2
        %v3672 = vpop.permute.xlu0 %3671
        %v3685 = vrot.slane %v203, 3
        %v3686 = vrot.slane %v204, 3
        %v3687 = vsel %vm788, %v3685, %v3686
        %v3688 = vrot.slane %v235, 3
        %v3689 = vrot.slane %v236, 3
        %v3690 = vsel %vm788, %v3688, %v3689
        %3691 = vrot.lane.b32.xlu0 %v1672, 3
        %v3692 = vpop.permute.xlu0 %3691
        %3693 = vrot.lane.b32.xlu0 %v1671, 3
        %v3694 = vpop.permute.xlu0 %3693
        %3695 = vrot.lane.b32.xlu0 %v2420, 3
        %v3696 = vpop.permute.xlu0 %3695
        %3697 = vrot.lane.b32.xlu0 %v2419, 3
        %v3698 = vpop.permute.xlu0 %3697
        %3699 = vrot.lane.b32.xlu0 %v3687, 3
        %v3700 = vpop.permute.xlu0 %3699
        %3701 = vrot.lane.b32.xlu0 %v3686, 3
        %v3702 = vpop.permute.xlu0 %3701
        %3703 = vrot.lane.b32.xlu0 %v1675, 3
        %v3704 = vpop.permute.xlu0 %3703
        %3705 = vrot.lane.b32.xlu0 %v1674, 3
        %v3706 = vpop.permute.xlu0 %3705
        %3707 = vrot.lane.b32.xlu0 %v2423, 3
        %v3708 = vpop.permute.xlu0 %3707
        %3709 = vrot.lane.b32.xlu0 %v2422, 3
        %v3710 = vpop.permute.xlu0 %3709
        %3711 = vrot.lane.b32.xlu0 %v3690, 3
        %v3712 = vpop.permute.xlu0 %3711
        %3713 = vrot.lane.b32.xlu0 %v3689, 3
        %v3714 = vpop.permute.xlu0 %3713
        %vm3731 = vcmask 1040384
        %v3732 = vrot.slane %v183, 7
        %v3733 = vrot.slane %v184, 7
        %v3734 = vsel %vm3731, %v3732, %v3733
        %v3735 = vrot.slane %v185, 7
        %v3736 = vrot.slane %v186, 7
        %v3737 = vsel %vm3731, %v3735, %v3736
        %v3738 = vrot.slane %v187, 7
        %v3739 = vrot.slane %v188, 7
        %v3740 = vsel %vm3731, %v3738, %v3739
        %v3741 = vrot.slane %v189, 7
        %v3742 = vrot.slane %v190, 7
        %v3743 = vsel %vm3731, %v3741, %v3742
        %v3744 = vrot.slane %v191, 7
        %v3745 = vrot.slane %v192, 7
        %v3746 = vsel %vm3731, %v3744, %v3745
        %v3747 = vrot.slane %v193, 7
        %v3748 = vrot.slane %v194, 7
        %v3749 = vsel %vm3731, %v3747, %v3748
        %v3750 = vrot.slane %v195, 7
        %v3751 = vrot.slane %v196, 7
        %v3752 = vsel %vm3731, %v3750, %v3751
        %v3753 = vrot.slane %v197, 7
        %v3754 = vrot.slane %v198, 7
        %v3755 = vsel %vm3731, %v3753, %v3754
        %v3756 = vrot.slane %v199, 7
        %v3757 = vrot.slane %v200, 7
        %v3758 = vsel %vm3731, %v3756, %v3757
        %v3759 = vrot.slane %v201, 7
        %v3760 = vrot.slane %v202, 7
        %v3761 = vsel %vm3731, %v3759, %v3760
        %v3762 = vrot.slane %v203, 7
        %v3763 = vrot.slane %v204, 7
        %v3764 = vsel %vm3731, %v3762, %v3763
        %v3765 = vrot.slane %v205, 7
        %v3766 = vrot.slane %v206, 7
        %v3767 = vsel %vm3731, %v3765, %v3766
        %v3768 = vrot.slane %v215, 7
        %v3769 = vrot.slane %v216, 7
        %v3770 = vsel %vm3731, %v3768, %v3769
        %v3771 = vrot.slane %v217, 7
        %v3772 = vrot.slane %v218, 7
        %v3773 = vsel %vm3731, %v3771, %v3772
        %v3774 = vrot.slane %v219, 7
        %v3775 = vrot.slane %v220, 7
        %v3776 = vsel %vm3731, %v3774, %v3775
        %v3777 = vrot.slane %v221, 7
        %v3778 = vrot.slane %v222, 7
        %v3779 = vsel %vm3731, %v3777, %v3778
        %v3780 = vrot.slane %v223, 7
        %v3781 = vrot.slane %v224, 7
        %v3782 = vsel %vm3731, %v3780, %v3781
        %v3783 = vrot.slane %v225, 7
        %v3784 = vrot.slane %v226, 7
        %v3785 = vsel %vm3731, %v3783, %v3784
        %v3786 = vrot.slane %v227, 7
        %v3787 = vrot.slane %v228, 7
        %v3788 = vsel %vm3731, %v3786, %v3787
        %v3789 = vrot.slane %v229, 7
        %v3790 = vrot.slane %v230, 7
        %v3791 = vsel %vm3731, %v3789, %v3790
        %v3792 = vrot.slane %v231, 7
        %v3793 = vrot.slane %v232, 7
        %v3794 = vsel %vm3731, %v3792, %v3793
        %v3795 = vrot.slane %v233, 7
        %v3796 = vrot.slane %v234, 7
        %v3797 = vsel %vm3731, %v3795, %v3796
        %v3798 = vrot.slane %v235, 7
        %v3799 = vrot.slane %v236, 7
        %v3800 = vsel %vm3731, %v3798, %v3799
        %v3801 = vrot.slane %v237, 7
        %v3802 = vrot.slane %v238, 7
        %v3803 = vsel %vm3731, %v3801, %v3802
        %3804 = vrot.lane.b32.xlu0 %v3732, 4
        %v3805 = vpop.permute.xlu0 %3804
        %3806 = vrot.lane.b32.xlu0 %v3734, 4
        %v3807 = vpop.permute.xlu0 %3806
        %3808 = vrot.lane.b32.xlu0 %v3735, 4
        %v3809 = vpop.permute.xlu0 %3808
        %3810 = vrot.lane.b32.xlu0 %v3737, 4
        %v3811 = vpop.permute.xlu0 %3810
        %3812 = vrot.lane.b32.xlu0 %v3738, 4
        %v3813 = vpop.permute.xlu0 %3812
        %3814 = vrot.lane.b32.xlu0 %v3740, 4
        %v3815 = vpop.permute.xlu0 %3814
        %3816 = vrot.lane.b32.xlu0 %v3741, 4
        %v3817 = vpop.permute.xlu0 %3816
        %3818 = vrot.lane.b32.xlu0 %v3743, 4
        %v3819 = vpop.permute.xlu0 %3818
        %3820 = vrot.lane.b32.xlu0 %v3744, 4
        %v3821 = vpop.permute.xlu0 %3820
        %3822 = vrot.lane.b32.xlu0 %v3746, 4
        %v3823 = vpop.permute.xlu0 %3822
        %3824 = vrot.lane.b32.xlu0 %v3747, 4
        %v3825 = vpop.permute.xlu0 %3824
        %3826 = vrot.lane.b32.xlu0 %v3749, 4
        %v3827 = vpop.permute.xlu0 %3826
        %3828 = vrot.lane.b32.xlu0 %v3750, 4
        %v3829 = vpop.permute.xlu0 %3828
        %3830 = vrot.lane.b32.xlu0 %v3752, 4
        %v3831 = vpop.permute.xlu0 %3830
        %3832 = vrot.lane.b32.xlu0 %v3753, 4
        %v3833 = vpop.permute.xlu0 %3832
        %3834 = vrot.lane.b32.xlu0 %v3755, 4
        %v3835 = vpop.permute.xlu0 %3834
        %3836 = vrot.lane.b32.xlu0 %v3756, 4
        %v3837 = vpop.permute.xlu0 %3836
        %3838 = vrot.lane.b32.xlu0 %v3758, 4
        %v3839 = vpop.permute.xlu0 %3838
        %3840 = vrot.lane.b32.xlu0 %v3759, 4
        %v3841 = vpop.permute.xlu0 %3840
        %3842 = vrot.lane.b32.xlu0 %v3761, 4
        %v3843 = vpop.permute.xlu0 %3842
        %3844 = vrot.lane.b32.xlu0 %v3762, 4
        %v3845 = vpop.permute.xlu0 %3844
        %3846 = vrot.lane.b32.xlu0 %v3764, 4
        %v3847 = vpop.permute.xlu0 %3846
        %3848 = vrot.lane.b32.xlu0 %v3765, 4
        %v3849 = vpop.permute.xlu0 %3848
        %3850 = vrot.lane.b32.xlu0 %v3767, 4
        %v3851 = vpop.permute.xlu0 %3850
        %3852 = vrot.lane.b32.xlu0 %v3768, 4
        %v3853 = vpop.permute.xlu0 %3852
        %3854 = vrot.lane.b32.xlu0 %v3770, 4
        %v3855 = vpop.permute.xlu0 %3854
        %3856 = vrot.lane.b32.xlu0 %v3771, 4
        %v3857 = vpop.permute.xlu0 %3856
        %3858 = vrot.lane.b32.xlu0 %v3773, 4
        %v3859 = vpop.permute.xlu0 %3858
        %3860 = vrot.lane.b32.xlu0 %v3774, 4
        %v3861 = vpop.permute.xlu0 %3860
        %3862 = vrot.lane.b32.xlu0 %v3776, 4
        %v3863 = vpop.permute.xlu0 %3862
        %3864 = vrot.lane.b32.xlu0 %v3777, 4
        %v3865 = vpop.permute.xlu0 %3864
        %3866 = vrot.lane.b32.xlu0 %v3779, 4
        %v3867 = vpop.permute.xlu0 %3866
        %3868 = vrot.lane.b32.xlu0 %v3780, 4
        %v3869 = vpop.permute.xlu0 %3868
        %3870 = vrot.lane.b32.xlu0 %v3782, 4
        %v3871 = vpop.permute.xlu0 %3870
        %3872 = vrot.lane.b32.xlu0 %v3783, 4
        %v3873 = vpop.permute.xlu0 %3872
        %3874 = vrot.lane.b32.xlu0 %v3785, 4
        %v3875 = vpop.permute.xlu0 %3874
        %3876 = vrot.lane.b32.xlu0 %v3786, 4
        %v3877 = vpop.permute.xlu0 %3876
        %3878 = vrot.lane.b32.xlu0 %v3788, 4
        %v3879 = vpop.permute.xlu0 %3878
        %3880 = vrot.lane.b32.xlu0 %v3789, 4
        %v3881 = vpop.permute.xlu0 %3880
        %3882 = vrot.lane.b32.xlu0 %v3791, 4
        %v3883 = vpop.permute.xlu0 %3882
        %3884 = vrot.lane.b32.xlu0 %v3792, 4
        %v3885 = vpop.permute.xlu0 %3884
        %3886 = vrot.lane.b32.xlu0 %v3794, 4
        %v3887 = vpop.permute.xlu0 %3886
        %3888 = vrot.lane.b32.xlu0 %v3795, 4
        %v3889 = vpop.permute.xlu0 %3888
        %3890 = vrot.lane.b32.xlu0 %v3797, 4
        %v3891 = vpop.permute.xlu0 %3890
        %3892 = vrot.lane.b32.xlu0 %v3798, 4
        %v3893 = vpop.permute.xlu0 %3892
        %3894 = vrot.lane.b32.xlu0 %v3800, 4
        %v3895 = vpop.permute.xlu0 %3894
        %3896 = vrot.lane.b32.xlu0 %v3801, 4
        %v3897 = vpop.permute.xlu0 %3896
        %3898 = vrot.lane.b32.xlu0 %v3803, 4
        %v3899 = vpop.permute.xlu0 %3898
        %3948 = vrot.lane.b32.xlu0 %v201, 5
        %v3949 = vpop.permute.xlu0 %3948
        %3950 = vrot.lane.b32.xlu0 %v202, 5
        %v3951 = vpop.permute.xlu0 %3950
        %3952 = vrot.lane.b32.xlu0 %v203, 5
        %v3953 = vpop.permute.xlu0 %3952
        %3954 = vrot.lane.b32.xlu0 %v204, 5
        %v3955 = vpop.permute.xlu0 %3954
        %3956 = vrot.lane.b32.xlu0 %v205, 5
        %v3957 = vpop.permute.xlu0 %3956
        %3958 = vrot.lane.b32.xlu0 %v206, 5
        %v3959 = vpop.permute.xlu0 %3958
        %3960 = vrot.lane.b32.xlu0 %v233, 5
        %v3961 = vpop.permute.xlu0 %3960
        %3962 = vrot.lane.b32.xlu0 %v234, 5
        %v3963 = vpop.permute.xlu0 %3962
        %3964 = vrot.lane.b32.xlu0 %v235, 5
        %v3965 = vpop.permute.xlu0 %3964
        %3966 = vrot.lane.b32.xlu0 %v236, 5
        %v3967 = vpop.permute.xlu0 %3966
        %3968 = vrot.lane.b32.xlu0 %v237, 5
        %v3969 = vpop.permute.xlu0 %3968
        %3970 = vrot.lane.b32.xlu0 %v238, 5
        %v3971 = vpop.permute.xlu0 %3970
        %v3984 = vrot.slane %v205, 1
        %v3985 = vrot.slane %v206, 1
        %v3986 = vsel %vm354, %v3984, %v3985
        %v3987 = vrot.slane %v237, 1
        %v3988 = vrot.slane %v238, 1
        %v3989 = vsel %vm354, %v3987, %v3988
        %3990 = vrot.lane.b32.xlu0 %v2120, 6
        %v3991 = vpop.permute.xlu0 %3990
        %3992 = vrot.lane.b32.xlu0 %v2119, 6
        %v3993 = vpop.permute.xlu0 %3992
        %3994 = vrot.lane.b32.xlu0 %v3603, 6
        %v3995 = vpop.permute.xlu0 %3994
        %3996 = vrot.lane.b32.xlu0 %v3602, 6
        %v3997 = vpop.permute.xlu0 %3996
        %3998 = vrot.lane.b32.xlu0 %v3986, 6
        %v3999 = vpop.permute.xlu0 %3998
        %4000 = vrot.lane.b32.xlu0 %v3985, 6
        %v4001 = vpop.permute.xlu0 %4000
        %4002 = vrot.lane.b32.xlu0 %v2123, 6
        %v4003 = vpop.permute.xlu0 %4002
        %4004 = vrot.lane.b32.xlu0 %v2122, 6
        %v4005 = vpop.permute.xlu0 %4004
        %4006 = vrot.lane.b32.xlu0 %v3606, 6
        %v4007 = vpop.permute.xlu0 %4006
        %4008 = vrot.lane.b32.xlu0 %v3605, 6
        %v4009 = vpop.permute.xlu0 %4008
        %4010 = vrot.lane.b32.xlu0 %v3989, 6
        %v4011 = vpop.permute.xlu0 %4010
        %4012 = vrot.lane.b32.xlu0 %v3988, 6
        %v4013 = vpop.permute.xlu0 %4012
        %v4026 = vrot.slane %v205, 2
        %v4027 = vrot.slane %v206, 2
        %v4028 = vsel %vm571, %v4026, %v4027
        %v4029 = vrot.slane %v237, 2
        %v4030 = vrot.slane %v238, 2
        %v4031 = vsel %vm571, %v4029, %v4030
        %4032 = vrot.lane.b32.xlu0 %v2270, 7
        %v4033 = vpop.permute.xlu0 %4032
        %4034 = vrot.lane.b32.xlu0 %v2269, 7
        %v4035 = vpop.permute.xlu0 %4034
        %4036 = vrot.lane.b32.xlu0 %v3645, 7
        %v4037 = vpop.permute.xlu0 %4036
        %4038 = vrot.lane.b32.xlu0 %v3644, 7
        %v4039 = vpop.permute.xlu0 %4038
        %4040 = vrot.lane.b32.xlu0 %v4028, 7
        %v4041 = vpop.permute.xlu0 %4040
        %4042 = vrot.lane.b32.xlu0 %v4027, 7
        %v4043 = vpop.permute.xlu0 %4042
        %4044 = vrot.lane.b32.xlu0 %v2273, 7
        %v4045 = vpop.permute.xlu0 %4044
        %4046 = vrot.lane.b32.xlu0 %v2272, 7
        %v4047 = vpop.permute.xlu0 %4046
        %4048 = vrot.lane.b32.xlu0 %v3648, 7
        %v4049 = vpop.permute.xlu0 %4048
        %4050 = vrot.lane.b32.xlu0 %v3647, 7
        %v4051 = vpop.permute.xlu0 %4050
        %4052 = vrot.lane.b32.xlu0 %v4031, 7
        %v4053 = vpop.permute.xlu0 %4052
        %4054 = vrot.lane.b32.xlu0 %v4030, 7
        %v4055 = vpop.permute.xlu0 %4054
        %v4068 = vrot.slane %v205, 3
        %v4069 = vrot.slane %v206, 3
        %v4070 = vsel %vm788, %v4068, %v4069
        %v4071 = vrot.slane %v237, 3
        %v4072 = vrot.slane %v238, 3
        %v4073 = vsel %vm788, %v4071, %v4072
        %4074 = vrot.lane.b32.xlu0 %v2420, 8
        %v4075 = vpop.permute.xlu0 %4074
        %4076 = vrot.lane.b32.xlu0 %v2419, 8
        %v4077 = vpop.permute.xlu0 %4076
        %4078 = vrot.lane.b32.xlu0 %v3687, 8
        %v4079 = vpop.permute.xlu0 %4078
        %4080 = vrot.lane.b32.xlu0 %v3686, 8
        %v4081 = vpop.permute.xlu0 %4080
        %4082 = vrot.lane.b32.xlu0 %v4070, 8
        %v4083 = vpop.permute.xlu0 %4082
        %4084 = vrot.lane.b32.xlu0 %v4069, 8
        %v4085 = vpop.permute.xlu0 %4084
        %4086 = vrot.lane.b32.xlu0 %v2423, 8
        %v4087 = vpop.permute.xlu0 %4086
        %4088 = vrot.lane.b32.xlu0 %v2422, 8
        %v4089 = vpop.permute.xlu0 %4088
        %4090 = vrot.lane.b32.xlu0 %v3690, 8
        %v4091 = vpop.permute.xlu0 %4090
        %4092 = vrot.lane.b32.xlu0 %v3689, 8
        %v4093 = vpop.permute.xlu0 %4092
        %4094 = vrot.lane.b32.xlu0 %v4073, 8
        %v4095 = vpop.permute.xlu0 %4094
        %4096 = vrot.lane.b32.xlu0 %v4072, 8
        %v4097 = vpop.permute.xlu0 %4096
        %v4110 = vsel %vm2866, %v199, %v3608
        %v4111 = vsel %vm2866, %v200, %v3610
        %v4112 = vsel %vm2866, %v201, %v3612
        %v4113 = vsel %vm2866, %v202, %v3614
        %v4114 = vsel %vm2866, %v203, %v3616
        %v4115 = vsel %vm2866, %v204, %v3618
        %v4116 = vsel %vm2866, %v231, %v3620
        %v4117 = vsel %vm2866, %v232, %v3622
        %v4118 = vsel %vm2866, %v233, %v3624
        %v4119 = vsel %vm2866, %v234, %v3626
        %v4120 = vsel %vm2866, %v235, %v3628
        %v4121 = vsel %vm2866, %v236, %v3630
        %v4122 = vsel %vm2915, %v4110, %v3650
        %v4123 = vsel %vm2915, %v4111, %v3652
        %v4124 = vsel %vm2915, %v4112, %v3654
        %v4125 = vsel %vm2915, %v4113, %v3656
        %v4126 = vsel %vm2915, %v4114, %v3658
        %v4127 = vsel %vm2915, %v4115, %v3660
        %v4128 = vsel %vm2915, %v4116, %v3662
        %v4129 = vsel %vm2915, %v4117, %v3664
        %v4130 = vsel %vm2915, %v4118, %v3666
        %v4131 = vsel %vm2915, %v4119, %v3668
        %v4132 = vsel %vm2915, %v4120, %v3670
        %v4133 = vsel %vm2915, %v4121, %v3672
        %v4134 = vsel %vm2964, %v4122, %v3692
        %v4135 = vsel %vm2964, %v4123, %v3694
        %v4136 = vsel %vm2964, %v4124, %v3696
        %v4137 = vsel %vm2964, %v4125, %v3698
        %v4138 = vsel %vm2964, %v4126, %v3700
        %v4139 = vsel %vm2964, %v4127, %v3702
        %v4140 = vsel %vm2964, %v4128, %v3704
        %v4141 = vsel %vm2964, %v4129, %v3706
        %v4142 = vsel %vm2964, %v4130, %v3708
        %v4143 = vsel %vm2964, %v4131, %v3710
        %v4144 = vsel %vm2964, %v4132, %v3712
        %v4145 = vsel %vm2964, %v4133, %v3714
        %v4146 = vsel %vm3013, %v2971, %v3805
        %v4147 = vsel %vm3013, %v2972, %v3807
        %v4148 = vsel %vm3013, %v2973, %v3809
        %v4149 = vsel %vm3013, %v2974, %v3811
        %v4150 = vsel %vm3013, %v2975, %v3813
        %v4151 = vsel %vm3013, %v2976, %v3815
        %v4152 = vsel %vm3013, %v2977, %v3817
        %v4153 = vsel %vm3013, %v2978, %v3819
        %v4154 = vsel %vm3013, %v2979, %v3821
        %v4155 = vsel %vm3013, %v2980, %v3823
        %v4156 = vsel %vm3013, %v2981, %v3825
        %v4157 = vsel %vm3013, %v2982, %v3827
        %v4158 = vsel %vm3013, %v2983, %v3829
        %v4159 = vsel %vm3013, %v2984, %v3831
        %v4160 = vsel %vm3013, %v2985, %v3833
        %v4161 = vsel %vm3013, %v2986, %v3835
        %v4162 = vsel %vm3013, %v2987, %v3837
        %v4163 = vsel %vm3013, %v2988, %v3839
        %v4164 = vsel %vm3013, %v4134, %v3841
        %v4165 = vsel %vm3013, %v4135, %v3843
        %v4166 = vsel %vm3013, %v4136, %v3845
        %v4167 = vsel %vm3013, %v4137, %v3847
        %v4168 = vsel %vm3013, %v4138, %v3849
        %v4169 = vsel %vm3013, %v4139, %v3851
        %v4170 = vsel %vm3013, %v2995, %v3853
        %v4171 = vsel %vm3013, %v2996, %v3855
        %v4172 = vsel %vm3013, %v2997, %v3857
        %v4173 = vsel %vm3013, %v2998, %v3859
        %v4174 = vsel %vm3013, %v2999, %v3861
        %v4175 = vsel %vm3013, %v3000, %v3863
        %v4176 = vsel %vm3013, %v3001, %v3865
        %v4177 = vsel %vm3013, %v3002, %v3867
        %v4178 = vsel %vm3013, %v3003, %v3869
        %v4179 = vsel %vm3013, %v3004, %v3871
        %v4180 = vsel %vm3013, %v3005, %v3873
        %v4181 = vsel %vm3013, %v3006, %v3875
        %v4182 = vsel %vm3013, %v3007, %v3877
        %v4183 = vsel %vm3013, %v3008, %v3879
        %v4184 = vsel %vm3013, %v3009, %v3881
        %v4185 = vsel %vm3013, %v3010, %v3883
        %v4186 = vsel %vm3013, %v3011, %v3885
        %v4187 = vsel %vm3013, %v3012, %v3887
        %v4188 = vsel %vm3013, %v4140, %v3889
        %v4189 = vsel %vm3013, %v4141, %v3891
        %v4190 = vsel %vm3013, %v4142, %v3893
        %v4191 = vsel %vm3013, %v4143, %v3895
        %v4192 = vsel %vm3013, %v4144, %v3897
        %v4193 = vsel %vm3013, %v4145, %v3899
        %v4194 = vsel %vm3062, %v4146, %v1239
        %v4195 = vsel %vm3062, %v4147, %v1241
        %v4196 = vsel %vm3062, %v4148, %v1243
        %v4197 = vsel %vm3062, %v4149, %v1245
        %v4198 = vsel %vm3062, %v4150, %v1247
        %v4199 = vsel %vm3062, %v4151, %v1249
        %v4200 = vsel %vm3062, %v4152, %v1251
        %v4201 = vsel %vm3062, %v4153, %v1253
        %v4202 = vsel %vm3062, %v4154, %v1255
        %v4203 = vsel %vm3062, %v4155, %v1257
        %v4204 = vsel %vm3062, %v4156, %v1259
        %v4205 = vsel %vm3062, %v4157, %v1261
        %v4206 = vsel %vm3062, %v4158, %v1263
        %v4207 = vsel %vm3062, %v4159, %v1265
        %v4208 = vsel %vm3062, %v4160, %v1267
        %v4209 = vsel %vm3062, %v4161, %v1269
        %v4210 = vsel %vm3062, %v4162, %v1271
        %v4211 = vsel %vm3062, %v4163, %v1273
        %v4212 = vsel %vm3062, %v4164, %v3949
        %v4213 = vsel %vm3062, %v4165, %v3951
        %v4214 = vsel %vm3062, %v4166, %v3953
        %v4215 = vsel %vm3062, %v4167, %v3955
        %v4216 = vsel %vm3062, %v4168, %v3957
        %v4217 = vsel %vm3062, %v4169, %v3959
        %v4218 = vsel %vm3062, %v4170, %v1287
        %v4219 = vsel %vm3062, %v4171, %v1289
        %v4220 = vsel %vm3062, %v4172, %v1291
        %v4221 = vsel %vm3062, %v4173, %v1293
        %v4222 = vsel %vm3062, %v4174, %v1295
        %v4223 = vsel %vm3062, %v4175, %v1297
        %v4224 = vsel %vm3062, %v4176, %v1299
        %v4225 = vsel %vm3062, %v4177, %v1301
        %v4226 = vsel %vm3062, %v4178, %v1303
        %v4227 = vsel %vm3062, %v4179, %v1305
        %v4228 = vsel %vm3062, %v4180, %v1307
        %v4229 = vsel %vm3062, %v4181, %v1309
        %v4230 = vsel %vm3062, %v4182, %v1311
        %v4231 = vsel %vm3062, %v4183, %v1313
        %v4232 = vsel %vm3062, %v4184, %v1315
        %v4233 = vsel %vm3062, %v4185, %v1317
        %v4234 = vsel %vm3062, %v4186, %v1319
        %v4235 = vsel %vm3062, %v4187, %v1321
        %v4236 = vsel %vm3062, %v4188, %v3961
        %v4237 = vsel %vm3062, %v4189, %v3963
        %v4238 = vsel %vm3062, %v4190, %v3965
        %v4239 = vsel %vm3062, %v4191, %v3967
        %v4240 = vsel %vm3062, %v4192, %v3969
        %v4241 = vsel %vm3062, %v4193, %v3971
        %v4242 = vsel %vm3111, %v4194, %v1389
        %v4243 = vsel %vm3111, %v4195, %v1391
        %v4244 = vsel %vm3111, %v4196, %v1393
        %v4245 = vsel %vm3111, %v4197, %v1395
        %v4246 = vsel %vm3111, %v4198, %v1397
        %v4247 = vsel %vm3111, %v4199, %v1399
        %v4248 = vsel %vm3111, %v4200, %v1401
        %v4249 = vsel %vm3111, %v4201, %v1403
        %v4250 = vsel %vm3111, %v4202, %v1405
        %v4251 = vsel %vm3111, %v4203, %v1407
        %v4252 = vsel %vm3111, %v4204, %v1409
        %v4253 = vsel %vm3111, %v4205, %v1411
        %v4254 = vsel %vm3111, %v4206, %v1413
        %v4255 = vsel %vm3111, %v4207, %v1415
        %v4256 = vsel %vm3111, %v4208, %v1417
        %v4257 = vsel %vm3111, %v4209, %v1419
        %v4258 = vsel %vm3111, %v4210, %v1421
        %v4259 = vsel %vm3111, %v4211, %v1423
        %v4260 = vsel %vm3111, %v4212, %v3991
        %v4261 = vsel %vm3111, %v4213, %v3993
        %v4262 = vsel %vm3111, %v4214, %v3995
        %v4263 = vsel %vm3111, %v4215, %v3997
        %v4264 = vsel %vm3111, %v4216, %v3999
        %v4265 = vsel %vm3111, %v4217, %v4001
        %v4266 = vsel %vm3111, %v4218, %v1437
        %v4267 = vsel %vm3111, %v4219, %v1439
        %v4268 = vsel %vm3111, %v4220, %v1441
        %v4269 = vsel %vm3111, %v4221, %v1443
        %v4270 = vsel %vm3111, %v4222, %v1445
        %v4271 = vsel %vm3111, %v4223, %v1447
        %v4272 = vsel %vm3111, %v4224, %v1449
        %v4273 = vsel %vm3111, %v4225, %v1451
        %v4274 = vsel %vm3111, %v4226, %v1453
        %v4275 = vsel %vm3111, %v4227, %v1455
        %v4276 = vsel %vm3111, %v4228, %v1457
        %v4277 = vsel %vm3111, %v4229, %v1459
        %v4278 = vsel %vm3111, %v4230, %v1461
        %v4279 = vsel %vm3111, %v4231, %v1463
        %v4280 = vsel %vm3111, %v4232, %v1465
        %v4281 = vsel %vm3111, %v4233, %v1467
        %v4282 = vsel %vm3111, %v4234, %v1469
        %v4283 = vsel %vm3111, %v4235, %v1471
        %v4284 = vsel %vm3111, %v4236, %v4003
        %v4285 = vsel %vm3111, %v4237, %v4005
        %v4286 = vsel %vm3111, %v4238, %v4007
        %v4287 = vsel %vm3111, %v4239, %v4009
        %v4288 = vsel %vm3111, %v4240, %v4011
        %v4289 = vsel %vm3111, %v4241, %v4013
        %v4290 = vsel %vm3160, %v4242, %v1539
        %v4291 = vsel %vm3160, %v4243, %v1541
        %v4292 = vsel %vm3160, %v4244, %v1543
        %v4293 = vsel %vm3160, %v4245, %v1545
        %v4294 = vsel %vm3160, %v4246, %v1547
        %v4295 = vsel %vm3160, %v4247, %v1549
        %v4296 = vsel %vm3160, %v4248, %v1551
        %v4297 = vsel %vm3160, %v4249, %v1553
        %v4298 = vsel %vm3160, %v4250, %v1555
        %v4299 = vsel %vm3160, %v4251, %v1557
        %v4300 = vsel %vm3160, %v4252, %v1559
        %v4301 = vsel %vm3160, %v4253, %v1561
        %v4302 = vsel %vm3160, %v4254, %v1563
        %v4303 = vsel %vm3160, %v4255, %v1565
        %v4304 = vsel %vm3160, %v4256, %v1567
        %v4305 = vsel %vm3160, %v4257, %v1569
        %v4306 = vsel %vm3160, %v4258, %v1571
        %v4307 = vsel %vm3160, %v4259, %v1573
        %v4308 = vsel %vm3160, %v4260, %v4033
        %v4309 = vsel %vm3160, %v4261, %v4035
        %v4310 = vsel %vm3160, %v4262, %v4037
        %v4311 = vsel %vm3160, %v4263, %v4039
        %v4312 = vsel %vm3160, %v4264, %v4041
        %v4313 = vsel %vm3160, %v4265, %v4043
        %v4314 = vsel %vm3160, %v4266, %v1587
        %v4315 = vsel %vm3160, %v4267, %v1589
        %v4316 = vsel %vm3160, %v4268, %v1591
        %v4317 = vsel %vm3160, %v4269, %v1593
        %v4318 = vsel %vm3160, %v4270, %v1595
        %v4319 = vsel %vm3160, %v4271, %v1597
        %v4320 = vsel %vm3160, %v4272, %v1599
        %v4321 = vsel %vm3160, %v4273, %v1601
        %v4322 = vsel %vm3160, %v4274, %v1603
        %v4323 = vsel %vm3160, %v4275, %v1605
        %v4324 = vsel %vm3160, %v4276, %v1607
        %v4325 = vsel %vm3160, %v4277, %v1609
        %v4326 = vsel %vm3160, %v4278, %v1611
        %v4327 = vsel %vm3160, %v4279, %v1613
        %v4328 = vsel %vm3160, %v4280, %v1615
        %v4329 = vsel %vm3160, %v4281, %v1617
        %v4330 = vsel %vm3160, %v4282, %v1619
        %v4331 = vsel %vm3160, %v4283, %v1621
        %v4332 = vsel %vm3160, %v4284, %v4045
        %v4333 = vsel %vm3160, %v4285, %v4047
        %v4334 = vsel %vm3160, %v4286, %v4049
        %v4335 = vsel %vm3160, %v4287, %v4051
        %v4336 = vsel %vm3160, %v4288, %v4053
        %v4337 = vsel %vm3160, %v4289, %v4055
        %v4338 = vsel %vm3209, %v4290, %v1689
        %v4339 = vsel %vm3209, %v4291, %v1691
        %v4340 = vsel %vm3209, %v4292, %v1693
        %v4341 = vsel %vm3209, %v4293, %v1695
        %v4342 = vsel %vm3209, %v4294, %v1697
        %v4343 = vsel %vm3209, %v4295, %v1699
        %v4344 = vsel %vm3209, %v4296, %v1701
        %v4345 = vsel %vm3209, %v4297, %v1703
        %v4346 = vsel %vm3209, %v4298, %v1705
        %v4347 = vsel %vm3209, %v4299, %v1707
        %v4348 = vsel %vm3209, %v4300, %v1709
        %v4349 = vsel %vm3209, %v4301, %v1711
        %v4350 = vsel %vm3209, %v4302, %v1713
        %v4351 = vsel %vm3209, %v4303, %v1715
        %v4352 = vsel %vm3209, %v4304, %v1717
        %v4353 = vsel %vm3209, %v4305, %v1719
        %v4354 = vsel %vm3209, %v4306, %v1721
        %v4355 = vsel %vm3209, %v4307, %v1723
        %v4356 = vsel %vm3209, %v4308, %v4075
        %v4357 = vsel %vm3209, %v4309, %v4077
        %v4358 = vsel %vm3209, %v4310, %v4079
        %v4359 = vsel %vm3209, %v4311, %v4081
        %v4360 = vsel %vm3209, %v4312, %v4083
        %v4361 = vsel %vm3209, %v4313, %v4085
        %v4362 = vsel %vm3209, %v4314, %v1737
        %v4363 = vsel %vm3209, %v4315, %v1739
        %v4364 = vsel %vm3209, %v4316, %v1741
        %v4365 = vsel %vm3209, %v4317, %v1743
        %v4366 = vsel %vm3209, %v4318, %v1745
        %v4367 = vsel %vm3209, %v4319, %v1747
        %v4368 = vsel %vm3209, %v4320, %v1749
        %v4369 = vsel %vm3209, %v4321, %v1751
        %v4370 = vsel %vm3209, %v4322, %v1753
        %v4371 = vsel %vm3209, %v4323, %v1755
        %v4372 = vsel %vm3209, %v4324, %v1757
        %v4373 = vsel %vm3209, %v4325, %v1759
        %v4374 = vsel %vm3209, %v4326, %v1761
        %v4375 = vsel %vm3209, %v4327, %v1763
        %v4376 = vsel %vm3209, %v4328, %v1765
        %v4377 = vsel %vm3209, %v4329, %v1767
        %v4378 = vsel %vm3209, %v4330, %v1769
        %v4379 = vsel %vm3209, %v4331, %v1771
        %v4380 = vsel %vm3209, %v4332, %v4087
        %v4381 = vsel %vm3209, %v4333, %v4089
        %v4382 = vsel %vm3209, %v4334, %v4091
        %v4383 = vsel %vm3209, %v4335, %v4093
        %v4384 = vsel %vm3209, %v4336, %v4095
        %v4385 = vsel %vm3209, %v4337, %v4097
        %v4434 = vrot.slane %v4338, 1
        %v4435 = vrot.slane %v4339, 1
        %v4436 = vsel %vm354, %v4434, %v4435
        %v4437 = vrot.slane %v4340, 1
        %v4438 = vrot.slane %v4341, 1
        %v4439 = vsel %vm354, %v4437, %v4438
        %v4440 = vrot.slane %v4342, 1
        %v4441 = vrot.slane %v4343, 1
        %v4442 = vsel %vm354, %v4440, %v4441
        %v4443 = vrot.slane %v4344, 1
        %v4444 = vrot.slane %v4345, 1
        %v4445 = vsel %vm354, %v4443, %v4444
        %v4446 = vrot.slane %v4346, 1
        %v4447 = vrot.slane %v4347, 1
        %v4448 = vsel %vm354, %v4446, %v4447
        %v4449 = vrot.slane %v4348, 1
        %v4450 = vrot.slane %v4349, 1
        %v4451 = vsel %vm354, %v4449, %v4450
        %v4452 = vrot.slane %v4350, 1
        %v4453 = vrot.slane %v4351, 1
        %v4454 = vsel %vm354, %v4452, %v4453
        %v4455 = vrot.slane %v4352, 1
        %v4456 = vrot.slane %v4353, 1
        %v4457 = vsel %vm354, %v4455, %v4456
        %v4458 = vrot.slane %v4354, 1
        %v4459 = vrot.slane %v4355, 1
        %v4460 = vsel %vm354, %v4458, %v4459
        %v4461 = vrot.slane %v4356, 1
        %v4462 = vrot.slane %v4357, 1
        %v4463 = vsel %vm354, %v4461, %v4462
        %v4464 = vrot.slane %v4358, 1
        %v4465 = vrot.slane %v4359, 1
        %v4466 = vsel %vm354, %v4464, %v4465
        %v4467 = vrot.slane %v4360, 1
        %v4468 = vrot.slane %v4361, 1
        %v4469 = vsel %vm354, %v4467, %v4468
        %v4470 = vrot.slane %v4362, 1
        %v4471 = vrot.slane %v4363, 1
        %v4472 = vsel %vm354, %v4470, %v4471
        %v4473 = vrot.slane %v4364, 1
        %v4474 = vrot.slane %v4365, 1
        %v4475 = vsel %vm354, %v4473, %v4474
        %v4476 = vrot.slane %v4366, 1
        %v4477 = vrot.slane %v4367, 1
        %v4478 = vsel %vm354, %v4476, %v4477
        %v4479 = vrot.slane %v4368, 1
        %v4480 = vrot.slane %v4369, 1
        %v4481 = vsel %vm354, %v4479, %v4480
        %v4482 = vrot.slane %v4370, 1
        %v4483 = vrot.slane %v4371, 1
        %v4484 = vsel %vm354, %v4482, %v4483
        %v4485 = vrot.slane %v4372, 1
        %v4486 = vrot.slane %v4373, 1
        %v4487 = vsel %vm354, %v4485, %v4486
        %v4488 = vrot.slane %v4374, 1
        %v4489 = vrot.slane %v4375, 1
        %v4490 = vsel %vm354, %v4488, %v4489
        %v4491 = vrot.slane %v4376, 1
        %v4492 = vrot.slane %v4377, 1
        %v4493 = vsel %vm354, %v4491, %v4492
        %v4494 = vrot.slane %v4378, 1
        %v4495 = vrot.slane %v4379, 1
        %v4496 = vsel %vm354, %v4494, %v4495
        %v4497 = vrot.slane %v4380, 1
        %v4498 = vrot.slane %v4381, 1
        %v4499 = vsel %vm354, %v4497, %v4498
        %v4500 = vrot.slane %v4382, 1
        %v4501 = vrot.slane %v4383, 1
        %v4502 = vsel %vm354, %v4500, %v4501
        %v4503 = vrot.slane %v4384, 1
        %v4504 = vrot.slane %v4385, 1
        %v4505 = vsel %vm354, %v4503, %v4504
        %4506 = vrot.lane.b32.xlu0 %v4436, 16
        %v4507 = vpop.permute.xlu0 %4506
        %4508 = vrot.lane.b32.xlu0 %v4435, 16
        %v4509 = vpop.permute.xlu0 %4508
        %4510 = vrot.lane.b32.xlu0 %v4439, 16
        %v4511 = vpop.permute.xlu0 %4510
        %4512 = vrot.lane.b32.xlu0 %v4438, 16
        %v4513 = vpop.permute.xlu0 %4512
        %4514 = vrot.lane.b32.xlu0 %v4442, 16
        %v4515 = vpop.permute.xlu0 %4514
        %4516 = vrot.lane.b32.xlu0 %v4441, 16
        %v4517 = vpop.permute.xlu0 %4516
        %4518 = vrot.lane.b32.xlu0 %v4445, 16
        %v4519 = vpop.permute.xlu0 %4518
        %4520 = vrot.lane.b32.xlu0 %v4444, 16
        %v4521 = vpop.permute.xlu0 %4520
        %4522 = vrot.lane.b32.xlu0 %v4448, 16
        %v4523 = vpop.permute.xlu0 %4522
        %4524 = vrot.lane.b32.xlu0 %v4447, 16
        %v4525 = vpop.permute.xlu0 %4524
        %4526 = vrot.lane.b32.xlu0 %v4451, 16
        %v4527 = vpop.permute.xlu0 %4526
        %4528 = vrot.lane.b32.xlu0 %v4450, 16
        %v4529 = vpop.permute.xlu0 %4528
        %4530 = vrot.lane.b32.xlu0 %v4454, 16
        %v4531 = vpop.permute.xlu0 %4530
        %4532 = vrot.lane.b32.xlu0 %v4453, 16
        %v4533 = vpop.permute.xlu0 %4532
        %4534 = vrot.lane.b32.xlu0 %v4457, 16
        %v4535 = vpop.permute.xlu0 %4534
        %4536 = vrot.lane.b32.xlu0 %v4456, 16
        %v4537 = vpop.permute.xlu0 %4536
        %4538 = vrot.lane.b32.xlu0 %v4460, 16
        %v4539 = vpop.permute.xlu0 %4538
        %4540 = vrot.lane.b32.xlu0 %v4459, 16
        %v4541 = vpop.permute.xlu0 %4540
        %4542 = vrot.lane.b32.xlu0 %v4463, 16
        %v4543 = vpop.permute.xlu0 %4542
        %4544 = vrot.lane.b32.xlu0 %v4462, 16
        %v4545 = vpop.permute.xlu0 %4544
        %4546 = vrot.lane.b32.xlu0 %v4466, 16
        %v4547 = vpop.permute.xlu0 %4546
        %4548 = vrot.lane.b32.xlu0 %v4465, 16
        %v4549 = vpop.permute.xlu0 %4548
        %4550 = vrot.lane.b32.xlu0 %v4469, 16
        %v4551 = vpop.permute.xlu0 %4550
        %4552 = vrot.lane.b32.xlu0 %v4468, 16
        %v4553 = vpop.permute.xlu0 %4552
        %4554 = vrot.lane.b32.xlu0 %v4472, 16
        %v4555 = vpop.permute.xlu0 %4554
        %4556 = vrot.lane.b32.xlu0 %v4471, 16
        %v4557 = vpop.permute.xlu0 %4556
        %4558 = vrot.lane.b32.xlu0 %v4475, 16
        %v4559 = vpop.permute.xlu0 %4558
        %4560 = vrot.lane.b32.xlu0 %v4474, 16
        %v4561 = vpop.permute.xlu0 %4560
        %4562 = vrot.lane.b32.xlu0 %v4478, 16
        %v4563 = vpop.permute.xlu0 %4562
        %4564 = vrot.lane.b32.xlu0 %v4477, 16
        %v4565 = vpop.permute.xlu0 %4564
        %4566 = vrot.lane.b32.xlu0 %v4481, 16
        %v4567 = vpop.permute.xlu0 %4566
        %4568 = vrot.lane.b32.xlu0 %v4480, 16
        %v4569 = vpop.permute.xlu0 %4568
        %4570 = vrot.lane.b32.xlu0 %v4484, 16
        %v4571 = vpop.permute.xlu0 %4570
        %4572 = vrot.lane.b32.xlu0 %v4483, 16
        %v4573 = vpop.permute.xlu0 %4572
        %4574 = vrot.lane.b32.xlu0 %v4487, 16
        %v4575 = vpop.permute.xlu0 %4574
        %4576 = vrot.lane.b32.xlu0 %v4486, 16
        %v4577 = vpop.permute.xlu0 %4576
        %4578 = vrot.lane.b32.xlu0 %v4490, 16
        %v4579 = vpop.permute.xlu0 %4578
        %4580 = vrot.lane.b32.xlu0 %v4489, 16
        %v4581 = vpop.permute.xlu0 %4580
        %4582 = vrot.lane.b32.xlu0 %v4493, 16
        %v4583 = vpop.permute.xlu0 %4582
        %4584 = vrot.lane.b32.xlu0 %v4492, 16
        %v4585 = vpop.permute.xlu0 %4584
        %4586 = vrot.lane.b32.xlu0 %v4496, 16
        %v4587 = vpop.permute.xlu0 %4586
        %4588 = vrot.lane.b32.xlu0 %v4495, 16
        %v4589 = vpop.permute.xlu0 %4588
        %4590 = vrot.lane.b32.xlu0 %v4499, 16
        %v4591 = vpop.permute.xlu0 %4590
        %4592 = vrot.lane.b32.xlu0 %v4498, 16
        %v4593 = vpop.permute.xlu0 %4592
        %4594 = vrot.lane.b32.xlu0 %v4502, 16
        %v4595 = vpop.permute.xlu0 %4594
        %4596 = vrot.lane.b32.xlu0 %v4501, 16
        %v4597 = vpop.permute.xlu0 %4596
        %4598 = vrot.lane.b32.xlu0 %v4505, 16
        %v4599 = vpop.permute.xlu0 %4598
        %4600 = vrot.lane.b32.xlu0 %v4504, 16
        %v4601 = vpop.permute.xlu0 %4600
        %vm4650 = vcmask 130048
        %v4651 = vsel %vm4650, %v3553, %v4507
        %v4652 = vsel %vm4650, %v3554, %v4509
        %v4653 = vsel %vm4650, %v3555, %v4511
        %v4654 = vsel %vm4650, %v3556, %v4513
        %v4655 = vsel %vm4650, %v3557, %v4515
        %v4656 = vsel %vm4650, %v3558, %v4517
        %v4657 = vsel %vm4650, %v3559, %v4519
        %v4658 = vsel %vm4650, %v3560, %v4521
        %v4659 = vsel %vm4650, %v3561, %v4523
        %v4660 = vsel %vm4650, %v3562, %v4525
        %v4661 = vsel %vm4650, %v3563, %v4527
        %v4662 = vsel %vm4650, %v3564, %v4529
        %v4663 = vsel %vm4650, %v3565, %v4531
        %v4664 = vsel %vm4650, %v3566, %v4533
        %v4665 = vsel %vm4650, %v3567, %v4535
        %v4666 = vsel %vm4650, %v3568, %v4537
        %v4667 = vsel %vm4650, %v3569, %v4539
        %v4668 = vsel %vm4650, %v3570, %v4541
        %v4669 = vsel %vm4650, %v3571, %v4543
        %v4670 = vsel %vm4650, %v3572, %v4545
        %v4671 = vsel %vm4650, %v3573, %v4547
        %v4672 = vsel %vm4650, %v3574, %v4549
        %v4673 = vsel %vm4650, %v3575, %v4551
        %v4674 = vsel %vm4650, %v3576, %v4553
        %v4675 = vsel %vm4650, %v3577, %v4555
        %v4676 = vsel %vm4650, %v3578, %v4557
        %v4677 = vsel %vm4650, %v3579, %v4559
        %v4678 = vsel %vm4650, %v3580, %v4561
        %v4679 = vsel %vm4650, %v3581, %v4563
        %v4680 = vsel %vm4650, %v3582, %v4565
        %v4681 = vsel %vm4650, %v3583, %v4567
        %v4682 = vsel %vm4650, %v3584, %v4569
        %v4683 = vsel %vm4650, %v3585, %v4571
        %v4684 = vsel %vm4650, %v3586, %v4573
        %v4685 = vsel %vm4650, %v3587, %v4575
        %v4686 = vsel %vm4650, %v3588, %v4577
        %v4687 = vsel %vm4650, %v3589, %v4579
        %v4688 = vsel %vm4650, %v3590, %v4581
        %v4689 = vsel %vm4650, %v3591, %v4583
        %v4690 = vsel %vm4650, %v3592, %v4585
        %v4691 = vsel %vm4650, %v3593, %v4587
        %v4692 = vsel %vm4650, %v3594, %v4589
        %v4693 = vsel %vm4650, %v3595, %v4591
        %v4694 = vsel %vm4650, %v3596, %v4593
        %v4695 = vsel %vm4650, %v3597, %v4595
        %v4696 = vsel %vm4650, %v3598, %v4597
        %v4697 = vsel %vm4650, %v3599, %v4599
        %v4698 = vsel %vm4650, %v3600, %v4601
        %v4747 = vcombine.high %v4651, %v4651
        %v4748 = vcombine.high %v4653, %v4653
        %v4749 = vcombine.high %v4655, %v4655
        %v4750 = vcombine.high %v4657, %v4657
        %v4751 = vcombine.high %v4659, %v4659
        %v4752 = vcombine.high %v4661, %v4661
        %v4753 = vcombine.high %v4663, %v4663
        %v4754 = vcombine.high %v4665, %v4665
        %v4755 = vcombine.high %v4667, %v4667
        %v4756 = vcombine.high %v4669, %v4669
        %v4757 = vcombine.high %v4671, %v4671
        %v4758 = vcombine.high %v4673, %v4673
        %v4759 = vcombine.high %v4675, %v4675
        %v4760 = vcombine.high %v4677, %v4677
        %v4761 = vcombine.high %v4679, %v4679
        %v4762 = vcombine.high %v4681, %v4681
        %v4763 = vcombine.high %v4683, %v4683
        %v4764 = vcombine.high %v4685, %v4685
        %v4765 = vcombine.high %v4687, %v4687
        %v4766 = vcombine.high %v4689, %v4689
        %v4767 = vcombine.high %v4691, %v4691
        %v4768 = vcombine.high %v4693, %v4693
        %v4769 = vcombine.high %v4695, %v4695
        %v4770 = vcombine.high %v4697, %v4697
        %v4771 = vlaneseq
        %v4772 = vshrl.u32 %v4771, 7
        %v4773 = vsub.s32 1, %v4772
        %v4774 = vrot.slane %v242, %v4773
        %v4775 = vcombine.low %v4651, %v4747
        %v4776 = vcombine.low %v4652, %v4653
        %v4777 = vcombine.low %v4748, %v4654
        %v4778 = vcombine.low %v4655, %v4749
        %v4779 = vcombine.low %v4656, %v4657
        %v4780 = vcombine.low %v4750, %v4658
        %v4781 = vcombine.low %v4659, %v4751
        %v4782 = vcombine.low %v4660, %v4661
        %v4783 = vcombine.low %v4752, %v4662
        %v4784 = vcombine.low %v4663, %v4753
        %v4785 = vcombine.low %v4664, %v4665
        %v4786 = vcombine.low %v4754, %v4666
        %v4787 = vcombine.low %v4667, %v4755
        %v4788 = vcombine.low %v4668, %v4669
        %v4789 = vcombine.low %v4756, %v4670
        %v4790 = vcombine.low %v4671, %v4757
        %v4791 = vcombine.low %v4672, %v4673
        %v4792 = vcombine.low %v4758, %v4674
        %v4793 = vcombine.low %v4675, %v4759
        %v4794 = vcombine.low %v4676, %v4677
        %v4795 = vcombine.low %v4760, %v4678
        %v4796 = vcombine.low %v4679, %v4761
        %v4797 = vcombine.low %v4680, %v4681
        %v4798 = vcombine.low %v4762, %v4682
        %v4799 = vcombine.low %v4683, %v4763
        %v4800 = vcombine.low %v4684, %v4685
        %v4801 = vcombine.low %v4764, %v4686
        %v4802 = vcombine.low %v4687, %v4765
        %v4803 = vcombine.low %v4688, %v4689
        %v4804 = vcombine.low %v4766, %v4690
        %v4805 = vcombine.low %v4691, %v4767
        %v4806 = vcombine.low %v4692, %v4693
        %v4807 = vcombine.low %v4768, %v4694
        %v4808 = vcombine.low %v4695, %v4769
        %v4809 = vcombine.low %v4696, %v4697
        %v4810 = vcombine.low %v4770, %v4698
        %vm4811 = vcmask 203776
        %v4812 = vsel %vm4811, %v4775, 0
        %v4814 = vsel %vm4811, %v4776, 0
        %v4816 = vsel %vm4811, %v4777, 0
        %v4818 = vsel %vm4811, %v4778, 0
        %v4820 = vsel %vm4811, %v4779, 0
        %v4822 = vsel %vm4811, %v4780, 0
        %v4824 = vsel %vm4811, %v4781, 0
        %v4826 = vsel %vm4811, %v4782, 0
        %v4828 = vsel %vm4811, %v4783, 0
        %v4830 = vsel %vm4811, %v4784, 0
        %v4832 = vsel %vm4811, %v4785, 0
        %v4834 = vsel %vm4811, %v4786, 0
        %v4836 = vsel %vm4811, %v4787, 0
        %v4838 = vsel %vm4811, %v4788, 0
        %v4840 = vsel %vm4811, %v4789, 0
        %v4842 = vsel %vm4811, %v4790, 0
        %v4844 = vsel %vm4811, %v4791, 0
        %v4846 = vsel %vm4811, %v4792, 0
        %v4848 = vsel %vm4811, %v4793, 0
        %v4850 = vsel %vm4811, %v4794, 0
        %v4852 = vsel %vm4811, %v4795, 0
        %v4854 = vsel %vm4811, %v4796, 0
        %v4856 = vsel %vm4811, %v4797, 0
        %v4858 = vsel %vm4811, %v4798, 0
        %v4860 = vsel %vm4811, %v4799, 0
        %v4862 = vsel %vm4811, %v4800, 0
        %v4864 = vsel %vm4811, %v4801, 0
        %v4866 = vsel %vm4811, %v4802, 0
        %v4868 = vsel %vm4811, %v4803, 0
        %v4870 = vsel %vm4811, %v4804, 0
        %v4872 = vsel %vm4811, %v4805, 0
        %v4874 = vsel %vm4811, %v4806, 0
        %v4876 = vsel %vm4811, %v4807, 0
        %v4878 = vsel %vm4811, %v4808, 0
        %v4880 = vsel %vm4811, %v4809, 0
        %v4882 = vsel %vm4811, %v4810, 0
        %v4885 = vsel %vm3731, %v242, 0
        %4887 = vmatprep.subr.mxu0 0.0
        %4888 = vmatpush1.msra.mxu0 %v239
        %4889 = vmatprep.subr.mxu0 0.0
        %4890 = vmatpush1.msra.mxu0 %v240
        %4891 = vmatprep.subr.mxu0 0.0
        %4892 = vmatpush1.msra.mxu0 %v241
        %4893 = vmatprep.subr.mxu0 0.0
        %4894 = vmatpush1.msra.mxu0 %v4885
        %4895 = vmatprep.subr.mxu0 0.0
        %4896 = vmatpush1.msra.mxu0 0.0
        %4897 = vmatprep.subr.mxu0 0.0
        %4898 = vmatpush1.msra.mxu0 0.0
        %4899 = vmatprep.subr.mxu0 0.0
        %4900 = vmatpush1.msra.mxu0 0.0
        %4901 = vmatprep.subr.mxu0 0.0
        %4902 = vmatpush1.msra.mxu0 0.0
        %4903 = vmatprep.subr.mxu0 0.0
        %4904 = vmatpush1.msra.mxu0 0.0
        %4905 = vmatprep.subr.mxu0 0.0
        %4906 = vmatpush1.msra.mxu0 0.0
        %4907 = vmatprep.subr.mxu0 0.0
        %4908 = vmatpush1.msra.mxu0 0.0
        %4909 = vmatprep.subr.mxu0 0.0
        %4910 = vmatpush1.msra.mxu0 0.0
        %4911 = vmatprep.subr.mxu0 0.0
        %4912 = vmatpush1.msra.mxu0 0.0
        %4913 = vmatprep.subr.mxu0 0.0
        %4914 = vmatpush1.msra.mxu0 0.0
        %4915 = vmatprep.subr.mxu0 0.0
        %4916 = vmatpush1.msra.mxu0 0.0
        %4917 = vmatprep.subr.mxu0 0.0
        %4918 = vmatpush1.msra.mxu0 0.0
        %4919 = vmatprep.subr.mxu0 0.0
        %4920 = vmatpush1.msra.mxu0 0.0
        %4921 = vmatprep.subr.mxu0 0.0
        %4922 = vmatpush1.msra.mxu0 0.0
        %4923 = vmatprep.subr.mxu0 0.0
        %4924 = vmatpush1.msra.mxu0 0.0
        %4925 = vmatprep.subr.mxu0 0.0
        %4926 = vmatpush1.msra.mxu0 0.0
        %4927 = vmatprep.subr.mxu0 0.0
        %4928 = vmatpush1.msra.mxu0 0.0
        %4929 = vmatprep.subr.mxu0 0.0
        %4930 = vmatpush1.msra.mxu0 0.0
        %4931 = vmatprep.subr.mxu0 0.0
        %4932 = vmatpush1.msra.mxu0 0.0
        %4933 = vmatprep.subr.mxu0 0.0
        %4934 = vmatpush1.msra.mxu0 0.0
        %4935 = vmatprep.subr.mxu0 0.0
        %4936 = vmatpush1.msra.mxu0 0.0
        %4937 = vmatprep.subr.mxu0 0.0
        %4938 = vmatpush1.msra.mxu0 0.0
        %4939 = vmatprep.subr.mxu0 0.0
        %4940 = vmatpush1.msra.mxu0 0.0
        %4941 = vmatprep.subr.mxu0 0.0
        %4942 = vmatpush1.msra.mxu0 0.0
        %4943 = vmatprep.subr.mxu0 0.0
        %4944 = vmatpush1.msra.mxu0 0.0
        %4945 = vmatprep.subr.mxu0 0.0
        %4946 = vmatpush1.msra.mxu0 0.0
        %4947 = vmatprep.subr.mxu0 0.0
        %4948 = vmatpush1.msra.mxu0 0.0
        %4949 = vmatprep.subr.mxu0 0.0
        %4950 = vmatpush1.msra.mxu0 0.0
        %4951 = vmatprep.mubr.f32.mxu0 0.0
        %4952 = vmatmul.mubr.f32.gmra.mrb[0].mxu0 %v4812
        %v4953 = vpop.f32.mrb[0].mxu0
        %v4954 = vadd.f32 %v4774, %v4953
        %v4955 = vpop.f32.mrb[0].mxu0
        %4956 = vmatprep.mubr.f32.mxu0 0.0
        %4957 = vmatmul.mubr.f32.gmra.mrb[0].mxu0 %v4814
        %v4958 = vpop.f32.mrb[0].mxu0
        %v4959 = vadd.f32 %v4774, %v4958
        %v4960 = vpop.f32.mrb[0].mxu0
        %4961 = vmatprep.mubr.f32.mxu0 0.0
        %4962 = vmatmul.mubr.f32.gmra.mrb[0].mxu0 %v4816
        %v4963 = vpop.f32.mrb[0].mxu0
        %v4964 = vadd.f32 %v4774, %v4963
        %v4965 = vpop.f32.mrb[0].mxu0
        %4966 = vmatprep.mubr.f32.mxu0 0.0
        %4967 = vmatmul.mubr.f32.gmra.mrb[0].mxu0 %v4818
        %v4968 = vpop.f32.mrb[0].mxu0
        %v4969 = vadd.f32 %v4774, %v4968
        %v4970 = vpop.f32.mrb[0].mxu0
        %4971 = vmatprep.mubr.f32.mxu0 0.0
        %4972 = vmatmul.mubr.f32.gmra.mrb[0].mxu0 %v4820
        %v4973 = vpop.f32.mrb[0].mxu0
        %v4974 = vadd.f32 %v4774, %v4973
        %v4975 = vpop.f32.mrb[0].mxu0
        %4976 = vmatprep.mubr.f32.mxu0 0.0
        %4977 = vmatmul.mubr.f32.gmra.mrb[0].mxu0 %v4822
        %v4978 = vpop.f32.mrb[0].mxu0
        %v4979 = vadd.f32 %v4774, %v4978
        %v4980 = vpop.f32.mrb[0].mxu0
        %4981 = vmatprep.mubr.f32.mxu0 0.0
        %4982 = vmatmul.mubr.f32.gmra.mrb[0].mxu0 %v4824
        %v4983 = vpop.f32.mrb[0].mxu0
        %v4984 = vadd.f32 %v4774, %v4983
        %v4985 = vpop.f32.mrb[0].mxu0
        %4986 = vmatprep.mubr.f32.mxu0 0.0
        %4987 = vmatmul.mubr.f32.gmra.mrb[0].mxu0 %v4826
        %v4988 = vpop.f32.mrb[0].mxu0
        %v4989 = vadd.f32 %v4774, %v4988
        %v4990 = vpop.f32.mrb[0].mxu0
        %4991 = vmatprep.mubr.f32.mxu0 0.0
        %4992 = vmatmul.mubr.f32.gmra.mrb[0].mxu0 %v4828
        %v4993 = vpop.f32.mrb[0].mxu0
        %v4994 = vadd.f32 %v4774, %v4993
        %v4995 = vpop.f32.mrb[0].mxu0
        %4996 = vmatprep.mubr.f32.mxu0 0.0
        %4997 = vmatmul.mubr.f32.gmra.mrb[0].mxu0 %v4830
        %v4998 = vpop.f32.mrb[0].mxu0
        %v4999 = vadd.f32 %v4774, %v4998
        %v5000 = vpop.f32.mrb[0].mxu0
        %5001 = vmatprep.mubr.f32.mxu0 0.0
        %5002 = vmatmul.mubr.f32.gmra.mrb[0].mxu0 %v4832
        %v5003 = vpop.f32.mrb[0].mxu0
        %v5004 = vadd.f32 %v4774, %v5003
        %v5005 = vpop.f32.mrb[0].mxu0
        %5006 = vmatprep.mubr.f32.mxu0 0.0
        %5007 = vmatmul.mubr.f32.gmra.mrb[0].mxu0 %v4834
        %v5008 = vpop.f32.mrb[0].mxu0
        %v5009 = vadd.f32 %v4774, %v5008
        %v5010 = vpop.f32.mrb[0].mxu0
        %5011 = vmatprep.mubr.f32.mxu0 0.0
        %5012 = vmatmul.mubr.f32.gmra.mrb[0].mxu0 %v4836
        %v5013 = vpop.f32.mrb[0].mxu0
        %v5014 = vadd.f32 %v4774, %v5013
        %v5015 = vpop.f32.mrb[0].mxu0
        %5016 = vmatprep.mubr.f32.mxu0 0.0
        %5017 = vmatmul.mubr.f32.gmra.mrb[0].mxu0 %v4838
        %v5018 = vpop.f32.mrb[0].mxu0
        %v5019 = vadd.f32 %v4774, %v5018
        %v5020 = vpop.f32.mrb[0].mxu0
        %5021 = vmatprep.mubr.f32.mxu0 0.0
        %5022 = vmatmul.mubr.f32.gmra.mrb[0].mxu0 %v4840
        %v5023 = vpop.f32.mrb[0].mxu0
        %v5024 = vadd.f32 %v4774, %v5023
        %v5025 = vpop.f32.mrb[0].mxu0
        %5026 = vmatprep.mubr.f32.mxu0 0.0
        %5027 = vmatmul.mubr.f32.gmra.mrb[0].mxu0 %v4842
        %v5028 = vpop.f32.mrb[0].mxu0
        %v5029 = vadd.f32 %v4774, %v5028
        %v5030 = vpop.f32.mrb[0].mxu0
        %5031 = vmatprep.mubr.f32.mxu0 0.0
        %5032 = vmatmul.mubr.f32.gmra.mrb[0].mxu0 %v4844
        %v5033 = vpop.f32.mrb[0].mxu0
        %v5034 = vadd.f32 %v4774, %v5033
        %v5035 = vpop.f32.mrb[0].mxu0
        %5036 = vmatprep.mubr.f32.mxu0 0.0
        %5037 = vmatmul.mubr.f32.gmra.mrb[0].mxu0 %v4846
        %v5038 = vpop.f32.mrb[0].mxu0
        %v5039 = vadd.f32 %v4774, %v5038
        %v5040 = vpop.f32.mrb[0].mxu0
        %5041 = vmatprep.mubr.f32.mxu0 0.0
        %5042 = vmatmul.mubr.f32.gmra.mrb[0].mxu0 %v4848
        %v5043 = vpop.f32.mrb[0].mxu0
        %v5044 = vadd.f32 %v4774, %v5043
        %v5045 = vpop.f32.mrb[0].mxu0
        %5046 = vmatprep.mubr.f32.mxu0 0.0
        %5047 = vmatmul.mubr.f32.gmra.mrb[0].mxu0 %v4850
        %v5048 = vpop.f32.mrb[0].mxu0
        %v5049 = vadd.f32 %v4774, %v5048
        %v5050 = vpop.f32.mrb[0].mxu0
        %5051 = vmatprep.mubr.f32.mxu0 0.0
        %5052 = vmatmul.mubr.f32.gmra.mrb[0].mxu0 %v4852
        %v5053 = vpop.f32.mrb[0].mxu0
        %v5054 = vadd.f32 %v4774, %v5053
        %v5055 = vpop.f32.mrb[0].mxu0
        %5056 = vmatprep.mubr.f32.mxu0 0.0
        %5057 = vmatmul.mubr.f32.gmra.mrb[0].mxu0 %v4854
        %v5058 = vpop.f32.mrb[0].mxu0
        %v5059 = vadd.f32 %v4774, %v5058
        %v5060 = vpop.f32.mrb[0].mxu0
        %5061 = vmatprep.mubr.f32.mxu0 0.0
        %5062 = vmatmul.mubr.f32.gmra.mrb[0].mxu0 %v4856
        %v5063 = vpop.f32.mrb[0].mxu0
        %v5064 = vadd.f32 %v4774, %v5063
        %v5065 = vpop.f32.mrb[0].mxu0
        %5066 = vmatprep.mubr.f32.mxu0 0.0
        %5067 = vmatmul.mubr.f32.gmra.mrb[0].mxu0 %v4858
        %v5068 = vpop.f32.mrb[0].mxu0
        %v5069 = vadd.f32 %v4774, %v5068
        %v5070 = vpop.f32.mrb[0].mxu0
        %5071 = vmatprep.mubr.f32.mxu0 0.0
        %5072 = vmatmul.mubr.f32.gmra.mrb[0].mxu0 %v4860
        %v5073 = vpop.f32.mrb[0].mxu0
        %v5074 = vadd.f32 %v4774, %v5073
        %v5075 = vpop.f32.mrb[0].mxu0
        %5076 = vmatprep.mubr.f32.mxu0 0.0
        %5077 = vmatmul.mubr.f32.gmra.mrb[0].mxu0 %v4862
        %v5078 = vpop.f32.mrb[0].mxu0
        %v5079 = vadd.f32 %v4774, %v5078
        %v5080 = vpop.f32.mrb[0].mxu0
        %5081 = vmatprep.mubr.f32.mxu0 0.0
        %5082 = vmatmul.mubr.f32.gmra.mrb[0].mxu0 %v4864
        %v5083 = vpop.f32.mrb[0].mxu0
        %v5084 = vadd.f32 %v4774, %v5083
        %v5085 = vpop.f32.mrb[0].mxu0
        %5086 = vmatprep.mubr.f32.mxu0 0.0
        %5087 = vmatmul.mubr.f32.gmra.mrb[0].mxu0 %v4866
        %v5088 = vpop.f32.mrb[0].mxu0
        %v5089 = vadd.f32 %v4774, %v5088
        %v5090 = vpop.f32.mrb[0].mxu0
        %5091 = vmatprep.mubr.f32.mxu0 0.0
        %5092 = vmatmul.mubr.f32.gmra.mrb[0].mxu0 %v4868
        %v5093 = vpop.f32.mrb[0].mxu0
        %v5094 = vadd.f32 %v4774, %v5093
        %v5095 = vpop.f32.mrb[0].mxu0
        %5096 = vmatprep.mubr.f32.mxu0 0.0
        %5097 = vmatmul.mubr.f32.gmra.mrb[0].mxu0 %v4870
        %v5098 = vpop.f32.mrb[0].mxu0
        %v5099 = vadd.f32 %v4774, %v5098
        %v5100 = vpop.f32.mrb[0].mxu0
        %5101 = vmatprep.mubr.f32.mxu0 0.0
        %5102 = vmatmul.mubr.f32.gmra.mrb[0].mxu0 %v4872
        %v5103 = vpop.f32.mrb[0].mxu0
        %v5104 = vadd.f32 %v4774, %v5103
        %v5105 = vpop.f32.mrb[0].mxu0
        %5106 = vmatprep.mubr.f32.mxu0 0.0
        %5107 = vmatmul.mubr.f32.gmra.mrb[0].mxu0 %v4874
        %v5108 = vpop.f32.mrb[0].mxu0
        %v5109 = vadd.f32 %v4774, %v5108
        %v5110 = vpop.f32.mrb[0].mxu0
        %5111 = vmatprep.mubr.f32.mxu0 0.0
        %5112 = vmatmul.mubr.f32.gmra.mrb[0].mxu0 %v4876
        %v5113 = vpop.f32.mrb[0].mxu0
        %v5114 = vadd.f32 %v4774, %v5113
        %v5115 = vpop.f32.mrb[0].mxu0
        %5116 = vmatprep.mubr.f32.mxu0 0.0
        %5117 = vmatmul.mubr.f32.gmra.mrb[0].mxu0 %v4878
        %v5118 = vpop.f32.mrb[0].mxu0
        %v5119 = vadd.f32 %v4774, %v5118
        %v5120 = vpop.f32.mrb[0].mxu0
        %5121 = vmatprep.mubr.f32.mxu0 0.0
        %5122 = vmatmul.mubr.f32.gmra.mrb[0].mxu0 %v4880
        %v5123 = vpop.f32.mrb[0].mxu0
        %v5124 = vadd.f32 %v4774, %v5123
        %v5125 = vpop.f32.mrb[0].mxu0
        %5126 = vmatprep.mubr.f32.mxu0 0.0
        %5127 = vmatmul.mubr.f32.gmra.mrb[0].mxu0 %v4882
        %v5128 = vpop.f32.mrb[0].mxu0
        %v5129 = vadd.f32 %v4774, %v5128
        %v5130 = vpop.f32.mrb[0].mxu0
        %5131 = vdwg.mxu0
        %v5132 = vmax.f32 %v4954, 0.0
        %v5133 = vmax.f32 %v4959, 0.0
        %v5134 = vmax.f32 %v4964, 0.0
        %v5135 = vmax.f32 %v4969, 0.0
        %v5136 = vmax.f32 %v4974, 0.0
        %v5137 = vmax.f32 %v4979, 0.0
        %v5138 = vmax.f32 %v4984, 0.0
        %v5139 = vmax.f32 %v4989, 0.0
        %v5140 = vmax.f32 %v4994, 0.0
        %v5141 = vmax.f32 %v4999, 0.0
        %v5142 = vmax.f32 %v5004, 0.0
        %v5143 = vmax.f32 %v5009, 0.0
        %v5144 = vmax.f32 %v5014, 0.0
        %v5145 = vmax.f32 %v5019, 0.0
        %v5146 = vmax.f32 %v5024, 0.0
        %v5147 = vmax.f32 %v5029, 0.0
        %v5148 = vmax.f32 %v5034, 0.0
        %v5149 = vmax.f32 %v5039, 0.0
        %v5150 = vmax.f32 %v5044, 0.0
        %v5151 = vmax.f32 %v5049, 0.0
        %v5152 = vmax.f32 %v5054, 0.0
        %v5153 = vmax.f32 %v5059, 0.0
        %v5154 = vmax.f32 %v5064, 0.0
        %v5155 = vmax.f32 %v5069, 0.0
        %v5156 = vmax.f32 %v5074, 0.0
        %v5157 = vmax.f32 %v5079, 0.0
        %v5158 = vmax.f32 %v5084, 0.0
        %v5159 = vmax.f32 %v5089, 0.0
        %v5160 = vmax.f32 %v5094, 0.0
        %v5161 = vmax.f32 %v5099, 0.0
        %v5162 = vmax.f32 %v5104, 0.0
        %v5163 = vmax.f32 %v5109, 0.0
        %v5164 = vmax.f32 %v5114, 0.0
        %v5165 = vmax.f32 %v5119, 0.0
        %v5166 = vmax.f32 %v5124, 0.0
        %v5167 = vmax.f32 %v5129, 0.0
        %v5204 = vcombine.high %v5132, %v5132
        %v5205 = vcombine.high %v5133, %v5133
        %v5206 = vcombine.high %v5134, %v5134
        %v5207 = vcombine.high %v5135, %v5135
        %v5208 = vcombine.high %v5136, %v5136
        %v5209 = vcombine.high %v5137, %v5137
        %v5210 = vcombine.high %v5138, %v5138
        %v5211 = vcombine.high %v5139, %v5139
        %v5212 = vcombine.high %v5140, %v5140
        %v5213 = vcombine.high %v5141, %v5141
        %v5214 = vcombine.high %v5142, %v5142
        %v5215 = vcombine.high %v5143, %v5143
        %v5216 = vcombine.high %v5144, %v5144
        %v5217 = vcombine.high %v5145, %v5145
        %v5218 = vcombine.high %v5146, %v5146
        %v5219 = vcombine.high %v5147, %v5147
        %v5220 = vcombine.high %v5148, %v5148
        %v5221 = vcombine.high %v5149, %v5149
        %v5222 = vcombine.high %v5150, %v5150
        %v5223 = vcombine.high %v5151, %v5151
        %v5224 = vcombine.high %v5152, %v5152
        %v5225 = vcombine.high %v5153, %v5153
        %v5226 = vcombine.high %v5154, %v5154
        %v5227 = vcombine.high %v5155, %v5155
        %v5228 = vcombine.high %v5156, %v5156
        %v5229 = vcombine.high %v5157, %v5157
        %v5230 = vcombine.high %v5158, %v5158
        %v5231 = vcombine.high %v5159, %v5159
        %v5232 = vcombine.high %v5160, %v5160
        %v5233 = vcombine.high %v5161, %v5161
        %v5234 = vcombine.high %v5162, %v5162
        %v5235 = vcombine.high %v5163, %v5163
        %v5236 = vcombine.high %v5164, %v5164
        %v5237 = vcombine.high %v5165, %v5165
        %v5238 = vcombine.high %v5166, %v5166
        %v5239 = vcombine.high %v5167, %v5167
        %v5240 = vlaneseq
        %v5241 = vshrl.u32 %v5240, 7
        %v5242 = vsub.s32 4, %v5241
        %v5243 = vrot.slane %v305, %v5242
        %v5244 = vcombine.low %v5132, %v5204
        %v5245 = vcombine.low %v5205, %v5134
        %v5246 = vcombine.low %v5135, %v5207
        %v5247 = vcombine.low %v5208, %v5137
        %v5248 = vcombine.low %v5138, %v5210
        %v5249 = vcombine.low %v5211, %v5140
        %v5250 = vcombine.low %v5141, %v5213
        %v5251 = vcombine.low %v5214, %v5143
        %v5252 = vcombine.low %v5150, %v5222
        %v5253 = vcombine.low %v5223, %v5152
        %v5254 = vcombine.low %v5153, %v5225
        %v5255 = vcombine.low %v5226, %v5155
        %v5256 = vcombine.low %v5156, %v5228
        %v5257 = vcombine.low %v5229, %v5158
        %v5258 = vcombine.low %v5159, %v5231
        %v5259 = vcombine.low %v5232, %v5161
        %v5276 = vrot.slane %v5244, 1
        %v5277 = vrot.slane %v5133, 1
        %v5278 = vsel %vm354, %v5276, %v5277
        %v5279 = vrot.slane %v5245, 1
        %v5280 = vrot.slane %v5206, 1
        %v5281 = vsel %vm354, %v5279, %v5280
        %v5282 = vrot.slane %v5246, 1
        %v5283 = vrot.slane %v5136, 1
        %v5284 = vsel %vm354, %v5282, %v5283
        %v5285 = vrot.slane %v5247, 1
        %v5286 = vrot.slane %v5209, 1
        %v5287 = vsel %vm354, %v5285, %v5286
        %v5288 = vrot.slane %v5248, 1
        %v5289 = vrot.slane %v5139, 1
        %v5290 = vsel %vm354, %v5288, %v5289
        %v5291 = vrot.slane %v5249, 1
        %v5292 = vrot.slane %v5212, 1
        %v5293 = vsel %vm354, %v5291, %v5292
        %v5294 = vrot.slane %v5250, 1
        %v5295 = vrot.slane %v5142, 1
        %v5296 = vsel %vm354, %v5294, %v5295
        %v5297 = vrot.slane %v5251, 1
        %v5298 = vrot.slane %v5215, 1
        %v5299 = vsel %vm354, %v5297, %v5298
        %v5300 = vrot.slane %v5252, 1
        %v5301 = vrot.slane %v5151, 1
        %v5302 = vsel %vm354, %v5300, %v5301
        %v5303 = vrot.slane %v5253, 1
        %v5304 = vrot.slane %v5224, 1
        %v5305 = vsel %vm354, %v5303, %v5304
        %v5306 = vrot.slane %v5254, 1
        %v5307 = vrot.slane %v5154, 1
        %v5308 = vsel %vm354, %v5306, %v5307
        %v5309 = vrot.slane %v5255, 1
        %v5310 = vrot.slane %v5227, 1
        %v5311 = vsel %vm354, %v5309, %v5310
        %v5312 = vrot.slane %v5256, 1
        %v5313 = vrot.slane %v5157, 1
        %v5314 = vsel %vm354, %v5312, %v5313
        %v5315 = vrot.slane %v5257, 1
        %v5316 = vrot.slane %v5230, 1
        %v5317 = vsel %vm354, %v5315, %v5316
        %v5318 = vrot.slane %v5258, 1
        %v5319 = vrot.slane %v5160, 1
        %v5320 = vsel %vm354, %v5318, %v5319
        %v5321 = vrot.slane %v5259, 1
        %v5322 = vrot.slane %v5233, 1
        %v5323 = vsel %vm354, %v5321, %v5322
        %5324 = vrot.lane.b32.xlu0 %v5278, 20
        %v5325 = vpop.permute.xlu0 %5324
        %5326 = vrot.lane.b32.xlu0 %v5281, 20
        %v5327 = vpop.permute.xlu0 %5326
        %5328 = vrot.lane.b32.xlu0 %v5284, 20
        %v5329 = vpop.permute.xlu0 %5328
        %5330 = vrot.lane.b32.xlu0 %v5287, 20
        %v5331 = vpop.permute.xlu0 %5330
        %5332 = vrot.lane.b32.xlu0 %v5290, 20
        %v5333 = vpop.permute.xlu0 %5332
        %5334 = vrot.lane.b32.xlu0 %v5293, 20
        %v5335 = vpop.permute.xlu0 %5334
        %5336 = vrot.lane.b32.xlu0 %v5296, 20
        %v5337 = vpop.permute.xlu0 %5336
        %5338 = vrot.lane.b32.xlu0 %v5299, 20
        %v5339 = vpop.permute.xlu0 %5338
        %5340 = vrot.lane.b32.xlu0 %v5302, 20
        %v5341 = vpop.permute.xlu0 %5340
        %5342 = vrot.lane.b32.xlu0 %v5305, 20
        %v5343 = vpop.permute.xlu0 %5342
        %5344 = vrot.lane.b32.xlu0 %v5308, 20
        %v5345 = vpop.permute.xlu0 %5344
        %5346 = vrot.lane.b32.xlu0 %v5311, 20
        %v5347 = vpop.permute.xlu0 %5346
        %5348 = vrot.lane.b32.xlu0 %v5314, 20
        %v5349 = vpop.permute.xlu0 %5348
        %5350 = vrot.lane.b32.xlu0 %v5317, 20
        %v5351 = vpop.permute.xlu0 %5350
        %5352 = vrot.lane.b32.xlu0 %v5320, 20
        %v5353 = vpop.permute.xlu0 %5352
        %5354 = vrot.lane.b32.xlu0 %v5323, 20
        %v5355 = vpop.permute.xlu0 %5354
        %v5372 = vrot.slane %v5244, 2
        %v5373 = vrot.slane %v5133, 2
        %v5374 = vsel %vm571, %v5372, %v5373
        %v5375 = vrot.slane %v5245, 2
        %v5376 = vrot.slane %v5206, 2
        %v5377 = vsel %vm571, %v5375, %v5376
        %v5378 = vrot.slane %v5246, 2
        %v5379 = vrot.slane %v5136, 2
        %v5380 = vsel %vm571, %v5378, %v5379
        %v5381 = vrot.slane %v5247, 2
        %v5382 = vrot.slane %v5209, 2
        %v5383 = vsel %vm571, %v5381, %v5382
        %v5384 = vrot.slane %v5248, 2
        %v5385 = vrot.slane %v5139, 2
        %v5386 = vsel %vm571, %v5384, %v5385
        %v5387 = vrot.slane %v5249, 2
        %v5388 = vrot.slane %v5212, 2
        %v5389 = vsel %vm571, %v5387, %v5388
        %v5390 = vrot.slane %v5250, 2
        %v5391 = vrot.slane %v5142, 2
        %v5392 = vsel %vm571, %v5390, %v5391
        %v5393 = vrot.slane %v5251, 2
        %v5394 = vrot.slane %v5215, 2
        %v5395 = vsel %vm571, %v5393, %v5394
        %v5396 = vrot.slane %v5252, 2
        %v5397 = vrot.slane %v5151, 2
        %v5398 = vsel %vm571, %v5396, %v5397
        %v5399 = vrot.slane %v5253, 2
        %v5400 = vrot.slane %v5224, 2
        %v5401 = vsel %vm571, %v5399, %v5400
        %v5402 = vrot.slane %v5254, 2
        %v5403 = vrot.slane %v5154, 2
        %v5404 = vsel %vm571, %v5402, %v5403
        %v5405 = vrot.slane %v5255, 2
        %v5406 = vrot.slane %v5227, 2
        %v5407 = vsel %vm571, %v5405, %v5406
        %v5408 = vrot.slane %v5256, 2
        %v5409 = vrot.slane %v5157, 2
        %v5410 = vsel %vm571, %v5408, %v5409
        %v5411 = vrot.slane %v5257, 2
        %v5412 = vrot.slane %v5230, 2
        %v5413 = vsel %vm571, %v5411, %v5412
        %v5414 = vrot.slane %v5258, 2
        %v5415 = vrot.slane %v5160, 2
        %v5416 = vsel %vm571, %v5414, %v5415
        %v5417 = vrot.slane %v5259, 2
        %v5418 = vrot.slane %v5233, 2
        %v5419 = vsel %vm571, %v5417, %v5418
        %5420 = vrot.lane.b32.xlu0 %v5374, 40
        %v5421 = vpop.permute.xlu0 %5420
        %5422 = vrot.lane.b32.xlu0 %v5377, 40
        %v5423 = vpop.permute.xlu0 %5422
        %5424 = vrot.lane.b32.xlu0 %v5380, 40
        %v5425 = vpop.permute.xlu0 %5424
        %5426 = vrot.lane.b32.xlu0 %v5383, 40
        %v5427 = vpop.permute.xlu0 %5426
        %5428 = vrot.lane.b32.xlu0 %v5386, 40
        %v5429 = vpop.permute.xlu0 %5428
        %5430 = vrot.lane.b32.xlu0 %v5389, 40
        %v5431 = vpop.permute.xlu0 %5430
        %5432 = vrot.lane.b32.xlu0 %v5392, 40
        %v5433 = vpop.permute.xlu0 %5432
        %5434 = vrot.lane.b32.xlu0 %v5395, 40
        %v5435 = vpop.permute.xlu0 %5434
        %5436 = vrot.lane.b32.xlu0 %v5398, 40
        %v5437 = vpop.permute.xlu0 %5436
        %5438 = vrot.lane.b32.xlu0 %v5401, 40
        %v5439 = vpop.permute.xlu0 %5438
        %5440 = vrot.lane.b32.xlu0 %v5404, 40
        %v5441 = vpop.permute.xlu0 %5440
        %5442 = vrot.lane.b32.xlu0 %v5407, 40
        %v5443 = vpop.permute.xlu0 %5442
        %5444 = vrot.lane.b32.xlu0 %v5410, 40
        %v5445 = vpop.permute.xlu0 %5444
        %5446 = vrot.lane.b32.xlu0 %v5413, 40
        %v5447 = vpop.permute.xlu0 %5446
        %5448 = vrot.lane.b32.xlu0 %v5416, 40
        %v5449 = vpop.permute.xlu0 %5448
        %5450 = vrot.lane.b32.xlu0 %v5419, 40
        %v5451 = vpop.permute.xlu0 %5450
        %v5468 = vrot.slane %v5244, 3
        %v5469 = vrot.slane %v5133, 3
        %v5470 = vsel %vm788, %v5468, %v5469
        %v5471 = vrot.slane %v5245, 3
        %v5472 = vrot.slane %v5206, 3
        %v5473 = vsel %vm788, %v5471, %v5472
        %v5474 = vrot.slane %v5246, 3
        %v5475 = vrot.slane %v5136, 3
        %v5476 = vsel %vm788, %v5474, %v5475
        %v5477 = vrot.slane %v5247, 3
        %v5478 = vrot.slane %v5209, 3
        %v5479 = vsel %vm788, %v5477, %v5478
        %v5480 = vrot.slane %v5248, 3
        %v5481 = vrot.slane %v5139, 3
        %v5482 = vsel %vm788, %v5480, %v5481
        %v5483 = vrot.slane %v5249, 3
        %v5484 = vrot.slane %v5212, 3
        %v5485 = vsel %vm788, %v5483, %v5484
        %v5486 = vrot.slane %v5250, 3
        %v5487 = vrot.slane %v5142, 3
        %v5488 = vsel %vm788, %v5486, %v5487
        %v5489 = vrot.slane %v5251, 3
        %v5490 = vrot.slane %v5215, 3
        %v5491 = vsel %vm788, %v5489, %v5490
        %v5492 = vrot.slane %v5252, 3
        %v5493 = vrot.slane %v5151, 3
        %v5494 = vsel %vm788, %v5492, %v5493
        %v5495 = vrot.slane %v5253, 3
        %v5496 = vrot.slane %v5224, 3
        %v5497 = vsel %vm788, %v5495, %v5496
        %v5498 = vrot.slane %v5254, 3
        %v5499 = vrot.slane %v5154, 3
        %v5500 = vsel %vm788, %v5498, %v5499
        %v5501 = vrot.slane %v5255, 3
        %v5502 = vrot.slane %v5227, 3
        %v5503 = vsel %vm788, %v5501, %v5502
        %v5504 = vrot.slane %v5256, 3
        %v5505 = vrot.slane %v5157, 3
        %v5506 = vsel %vm788, %v5504, %v5505
        %v5507 = vrot.slane %v5257, 3
        %v5508 = vrot.slane %v5230, 3
        %v5509 = vsel %vm788, %v5507, %v5508
        %v5510 = vrot.slane %v5258, 3
        %v5511 = vrot.slane %v5160, 3
        %v5512 = vsel %vm788, %v5510, %v5511
        %v5513 = vrot.slane %v5259, 3
        %v5514 = vrot.slane %v5233, 3
        %v5515 = vsel %vm788, %v5513, %v5514
        %5516 = vrot.lane.b32.xlu0 %v5470, 60
        %v5517 = vpop.permute.xlu0 %5516
        %5518 = vrot.lane.b32.xlu0 %v5473, 60
        %v5519 = vpop.permute.xlu0 %5518
        %5520 = vrot.lane.b32.xlu0 %v5476, 60
        %v5521 = vpop.permute.xlu0 %5520
        %5522 = vrot.lane.b32.xlu0 %v5479, 60
        %v5523 = vpop.permute.xlu0 %5522
        %5524 = vrot.lane.b32.xlu0 %v5482, 60
        %v5525 = vpop.permute.xlu0 %5524
        %5526 = vrot.lane.b32.xlu0 %v5485, 60
        %v5527 = vpop.permute.xlu0 %5526
        %5528 = vrot.lane.b32.xlu0 %v5488, 60
        %v5529 = vpop.permute.xlu0 %5528
        %5530 = vrot.lane.b32.xlu0 %v5491, 60
        %v5531 = vpop.permute.xlu0 %5530
        %5532 = vrot.lane.b32.xlu0 %v5494, 60
        %v5533 = vpop.permute.xlu0 %5532
        %5534 = vrot.lane.b32.xlu0 %v5497, 60
        %v5535 = vpop.permute.xlu0 %5534
        %5536 = vrot.lane.b32.xlu0 %v5500, 60
        %v5537 = vpop.permute.xlu0 %5536
        %5538 = vrot.lane.b32.xlu0 %v5503, 60
        %v5539 = vpop.permute.xlu0 %5538
        %5540 = vrot.lane.b32.xlu0 %v5506, 60
        %v5541 = vpop.permute.xlu0 %5540
        %5542 = vrot.lane.b32.xlu0 %v5509, 60
        %v5543 = vpop.permute.xlu0 %5542
        %5544 = vrot.lane.b32.xlu0 %v5512, 60
        %v5545 = vpop.permute.xlu0 %5544
        %5546 = vrot.lane.b32.xlu0 %v5515, 60
        %v5547 = vpop.permute.xlu0 %5546
        %v5564 = vcombine.low %v5204, %v5133
        %v5565 = vcombine.low %v5134, %v5206
        %v5566 = vcombine.low %v5207, %v5136
        %v5567 = vcombine.low %v5137, %v5209
        %v5568 = vcombine.low %v5210, %v5139
        %v5569 = vcombine.low %v5140, %v5212
        %v5570 = vcombine.low %v5213, %v5142
        %v5571 = vcombine.low %v5143, %v5215
        %v5572 = vcombine.low %v5222, %v5151
        %v5573 = vcombine.low %v5152, %v5224
        %v5574 = vcombine.low %v5225, %v5154
        %v5575 = vcombine.low %v5155, %v5227
        %v5576 = vcombine.low %v5228, %v5157
        %v5577 = vcombine.low %v5158, %v5230
        %v5578 = vcombine.low %v5231, %v5160
        %v5579 = vcombine.low %v5161, %v5233
        %5580 = vrot.lane.b32.xlu0 %v5564, 80
        %v5581 = vpop.permute.xlu0 %5580
        %5582 = vrot.lane.b32.xlu0 %v5565, 80
        %v5583 = vpop.permute.xlu0 %5582
        %5584 = vrot.lane.b32.xlu0 %v5566, 80
        %v5585 = vpop.permute.xlu0 %5584
        %5586 = vrot.lane.b32.xlu0 %v5567, 80
        %v5587 = vpop.permute.xlu0 %5586
        %5588 = vrot.lane.b32.xlu0 %v5568, 80
        %v5589 = vpop.permute.xlu0 %5588
        %5590 = vrot.lane.b32.xlu0 %v5569, 80
        %v5591 = vpop.permute.xlu0 %5590
        %5592 = vrot.lane.b32.xlu0 %v5570, 80
        %v5593 = vpop.permute.xlu0 %5592
        %5594 = vrot.lane.b32.xlu0 %v5571, 80
        %v5595 = vpop.permute.xlu0 %5594
        %5596 = vrot.lane.b32.xlu0 %v5572, 80
        %v5597 = vpop.permute.xlu0 %5596
        %5598 = vrot.lane.b32.xlu0 %v5573, 80
        %v5599 = vpop.permute.xlu0 %5598
        %5600 = vrot.lane.b32.xlu0 %v5574, 80
        %v5601 = vpop.permute.xlu0 %5600
        %5602 = vrot.lane.b32.xlu0 %v5575, 80
        %v5603 = vpop.permute.xlu0 %5602
        %5604 = vrot.lane.b32.xlu0 %v5576, 80
        %v5605 = vpop.permute.xlu0 %5604
        %5606 = vrot.lane.b32.xlu0 %v5577, 80
        %v5607 = vpop.permute.xlu0 %5606
        %5608 = vrot.lane.b32.xlu0 %v5578, 80
        %v5609 = vpop.permute.xlu0 %5608
        %5610 = vrot.lane.b32.xlu0 %v5579, 80
        %v5611 = vpop.permute.xlu0 %5610
        %vm5628 = vcmask 162816
        %v5629 = vsel %vm5628, %v5244, %v5325
        %v5630 = vsel %vm5628, %v5245, %v5327
        %v5631 = vsel %vm5628, %v5246, %v5329
        %v5632 = vsel %vm5628, %v5247, %v5331
        %v5633 = vsel %vm5628, %v5248, %v5333
        %v5634 = vsel %vm5628, %v5249, %v5335
        %v5635 = vsel %vm5628, %v5250, %v5337
        %v5636 = vsel %vm5628, %v5251, %v5339
        %v5637 = vsel %vm5628, %v5252, %v5341
        %v5638 = vsel %vm5628, %v5253, %v5343
        %v5639 = vsel %vm5628, %v5254, %v5345
        %v5640 = vsel %vm5628, %v5255, %v5347
        %v5641 = vsel %vm5628, %v5256, %v5349
        %v5642 = vsel %vm5628, %v5257, %v5351
        %v5643 = vsel %vm5628, %v5258, %v5353
        %v5644 = vsel %vm5628, %v5259, %v5355
        %vm5645 = vcmask 326656
        %v5646 = vsel %vm5645, %v5629, %v5421
        %v5647 = vsel %vm5645, %v5630, %v5423
        %v5648 = vsel %vm5645, %v5631, %v5425
        %v5649 = vsel %vm5645, %v5632, %v5427
        %v5650 = vsel %vm5645, %v5633, %v5429
        %v5651 = vsel %vm5645, %v5634, %v5431
        %v5652 = vsel %vm5645, %v5635, %v5433
        %v5653 = vsel %vm5645, %v5636, %v5435
        %v5654 = vsel %vm5645, %v5637, %v5437
        %v5655 = vsel %vm5645, %v5638, %v5439
        %v5656 = vsel %vm5645, %v5639, %v5441
        %v5657 = vsel %vm5645, %v5640, %v5443
        %v5658 = vsel %vm5645, %v5641, %v5445
        %v5659 = vsel %vm5645, %v5642, %v5447
        %v5660 = vsel %vm5645, %v5643, %v5449
        %v5661 = vsel %vm5645, %v5644, %v5451
        %vm5662 = vcmask 490496
        %v5663 = vsel %vm5662, %v5646, %v5517
        %v5664 = vsel %vm5662, %v5647, %v5519
        %v5665 = vsel %vm5662, %v5648, %v5521
        %v5666 = vsel %vm5662, %v5649, %v5523
        %v5667 = vsel %vm5662, %v5650, %v5525
        %v5668 = vsel %vm5662, %v5651, %v5527
        %v5669 = vsel %vm5662, %v5652, %v5529
        %v5670 = vsel %vm5662, %v5653, %v5531
        %v5671 = vsel %vm5662, %v5654, %v5533
        %v5672 = vsel %vm5662, %v5655, %v5535
        %v5673 = vsel %vm5662, %v5656, %v5537
        %v5674 = vsel %vm5662, %v5657, %v5539
        %v5675 = vsel %vm5662, %v5658, %v5541
        %v5676 = vsel %vm5662, %v5659, %v5543
        %v5677 = vsel %vm5662, %v5660, %v5545
        %v5678 = vsel %vm5662, %v5661, %v5547
        %vm5679 = vcmask 654336
        %v5680 = vsel %vm5679, %v5663, %v5581
        %v5681 = vsel %vm5679, %v5664, %v5583
        %v5682 = vsel %vm5679, %v5665, %v5585
        %v5683 = vsel %vm5679, %v5666, %v5587
        %v5684 = vsel %vm5679, %v5667, %v5589
        %v5685 = vsel %vm5679, %v5668, %v5591
        %v5686 = vsel %vm5679, %v5669, %v5593
        %v5687 = vsel %vm5679, %v5670, %v5595
        %v5688 = vsel %vm5679, %v5671, %v5597
        %v5689 = vsel %vm5679, %v5672, %v5599
        %v5690 = vsel %vm5679, %v5673, %v5601
        %v5691 = vsel %vm5679, %v5674, %v5603
        %v5692 = vsel %vm5679, %v5675, %v5605
        %v5693 = vsel %vm5679, %v5676, %v5607
        %v5694 = vsel %vm5679, %v5677, %v5609
        %v5695 = vsel %vm5679, %v5678, %v5611
        %vm5696 = vcmask 818176
        %v5698 = vsel %vm5696, %v5680, 0
        %v5701 = vsel %vm5696, %v5681, 0
        %v5704 = vsel %vm5696, %v5682, 0
        %v5707 = vsel %vm5696, %v5683, 0
        %v5710 = vsel %vm5696, %v5684, 0
        %v5713 = vsel %vm5696, %v5685, 0
        %v5716 = vsel %vm5696, %v5686, 0
        %v5719 = vsel %vm5696, %v5687, 0
        %v5722 = vsel %vm5696, %v5688, 0
        %v5725 = vsel %vm5696, %v5689, 0
        %v5728 = vsel %vm5696, %v5690, 0
        %v5731 = vsel %vm5696, %v5691, 0
        %v5734 = vsel %vm5696, %v5692, 0
        %v5737 = vsel %vm5696, %v5693, 0
        %v5740 = vsel %vm5696, %v5694, 0
        %v5743 = vsel %vm5696, %v5695, 0
        %v5746 = vsel %vm1005, %v255, 0
        %5748 = vmatprep.subr.mxu0 0.0
        %5749 = vmatpush1.msra.mxu0 %v243
        %5750 = vmatprep.subr.mxu0 0.0
        %5751 = vmatpush1.msra.mxu0 %v244
        %5752 = vmatprep.subr.mxu0 0.0
        %5753 = vmatpush1.msra.mxu0 %v245
        %5754 = vmatprep.subr.mxu0 0.0
        %5755 = vmatpush1.msra.mxu0 %v246
        %5756 = vmatprep.subr.mxu0 0.0
        %5757 = vmatpush1.msra.mxu0 %v247
        %5758 = vmatprep.subr.mxu0 0.0
        %5759 = vmatpush1.msra.mxu0 %v248
        %5760 = vmatprep.subr.mxu0 0.0
        %5761 = vmatpush1.msra.mxu0 %v249
        %5762 = vmatprep.subr.mxu0 0.0
        %5763 = vmatpush1.msra.mxu0 %v250
        %5764 = vmatprep.subr.mxu0 0.0
        %5765 = vmatpush1.msra.mxu0 %v251
        %5766 = vmatprep.subr.mxu0 0.0
        %5767 = vmatpush1.msra.mxu0 %v252
        %5768 = vmatprep.subr.mxu0 0.0
        %5769 = vmatpush1.msra.mxu0 %v253
        %5770 = vmatprep.subr.mxu0 0.0
        %5771 = vmatpush1.msra.mxu0 %v254
        %5772 = vmatprep.subr.mxu0 0.0
        %5773 = vmatpush1.msra.mxu0 %v5746
        %5774 = vmatprep.subr.mxu0 0.0
        %5775 = vmatpush1.msra.mxu0 0.0
        %5776 = vmatprep.subr.mxu0 0.0
        %5777 = vmatpush1.msra.mxu0 0.0
        %5778 = vmatprep.subr.mxu0 0.0
        %5779 = vmatpush1.msra.mxu0 0.0
        %5780 = vmatprep.subr.mxu0 0.0
        %5781 = vmatpush1.msra.mxu0 0.0
        %5782 = vmatprep.subr.mxu0 0.0
        %5783 = vmatpush1.msra.mxu0 0.0
        %5784 = vmatprep.subr.mxu0 0.0
        %5785 = vmatpush1.msra.mxu0 0.0
        %5786 = vmatprep.subr.mxu0 0.0
        %5787 = vmatpush1.msra.mxu0 0.0
        %5788 = vmatprep.subr.mxu0 0.0
        %5789 = vmatpush1.msra.mxu0 0.0
        %5790 = vmatprep.subr.mxu0 0.0
        %5791 = vmatpush1.msra.mxu0 0.0
        %5792 = vmatprep.subr.mxu0 0.0
        %5793 = vmatpush1.msra.mxu0 0.0
        %5794 = vmatprep.subr.mxu0 0.0
        %5795 = vmatpush1.msra.mxu0 0.0
        %5796 = vmatprep.subr.mxu0 0.0
        %5797 = vmatpush1.msra.mxu0 0.0
        %5798 = vmatprep.subr.mxu0 0.0
        %5799 = vmatpush1.msra.mxu0 0.0
        %5800 = vmatprep.subr.mxu0 0.0
        %5801 = vmatpush1.msra.mxu0 0.0
        %5802 = vmatprep.subr.mxu0 0.0
        %5803 = vmatpush1.msra.mxu0 0.0
        %5804 = vmatprep.subr.mxu0 0.0
        %5805 = vmatpush1.msra.mxu0 0.0
        %5806 = vmatprep.subr.mxu0 0.0
        %5807 = vmatpush1.msra.mxu0 0.0
        %5808 = vmatprep.subr.mxu0 0.0
        %5809 = vmatpush1.msra.mxu0 0.0
        %5810 = vmatprep.subr.mxu0 0.0
        %5811 = vmatpush1.msra.mxu0 0.0
        %5812 = vmatprep.mubr.f32.mxu0 0.0
        %5813 = vmatmul.mubr.f32.gmra.mrb[0].mxu0 %v5698
        %v5814 = vpop.f32.mrb[0].mxu0
        %v5815 = vadd.f32 0.0, %v5814
        %v5816 = vpop.f32.mrb[0].mxu0
        %5817 = vmatprep.mubr.f32.mxu0 0.0
        %5818 = vmatmul.mubr.f32.gmra.mrb[0].mxu0 %v5701
        %v5819 = vpop.f32.mrb[0].mxu0
        %v5820 = vadd.f32 0.0, %v5819
        %v5821 = vpop.f32.mrb[0].mxu0
        %5822 = vmatprep.mubr.f32.mxu0 0.0
        %5823 = vmatmul.mubr.f32.gmra.mrb[0].mxu0 %v5704
        %v5824 = vpop.f32.mrb[0].mxu0
        %v5825 = vadd.f32 0.0, %v5824
        %v5826 = vpop.f32.mrb[0].mxu0
        %5827 = vmatprep.mubr.f32.mxu0 0.0
        %5828 = vmatmul.mubr.f32.gmra.mrb[0].mxu0 %v5707
        %v5829 = vpop.f32.mrb[0].mxu0
        %v5830 = vadd.f32 0.0, %v5829
        %v5831 = vpop.f32.mrb[0].mxu0
        %5832 = vmatprep.mubr.f32.mxu0 0.0
        %5833 = vmatmul.mubr.f32.gmra.mrb[0].mxu0 %v5710
        %v5834 = vpop.f32.mrb[0].mxu0
        %v5835 = vadd.f32 0.0, %v5834
        %v5836 = vpop.f32.mrb[0].mxu0
        %5837 = vmatprep.mubr.f32.mxu0 0.0
        %5838 = vmatmul.mubr.f32.gmra.mrb[0].mxu0 %v5713
        %v5839 = vpop.f32.mrb[0].mxu0
        %v5840 = vadd.f32 0.0, %v5839
        %v5841 = vpop.f32.mrb[0].mxu0
        %5842 = vmatprep.mubr.f32.mxu0 0.0
        %5843 = vmatmul.mubr.f32.gmra.mrb[0].mxu0 %v5716
        %v5844 = vpop.f32.mrb[0].mxu0
        %v5845 = vadd.f32 0.0, %v5844
        %v5846 = vpop.f32.mrb[0].mxu0
        %5847 = vmatprep.mubr.f32.mxu0 0.0
        %5848 = vmatmul.mubr.f32.gmra.mrb[0].mxu0 %v5719
        %v5849 = vpop.f32.mrb[0].mxu0
        %v5850 = vadd.f32 0.0, %v5849
        %v5851 = vpop.f32.mrb[0].mxu0
        %5852 = vmatprep.mubr.f32.mxu0 0.0
        %5853 = vmatmul.mubr.f32.gmra.mrb[0].mxu0 %v5722
        %v5854 = vpop.f32.mrb[0].mxu0
        %v5855 = vadd.f32 0.0, %v5854
        %v5856 = vpop.f32.mrb[0].mxu0
        %5857 = vmatprep.mubr.f32.mxu0 0.0
        %5858 = vmatmul.mubr.f32.gmra.mrb[0].mxu0 %v5725
        %v5859 = vpop.f32.mrb[0].mxu0
        %v5860 = vadd.f32 0.0, %v5859
        %v5861 = vpop.f32.mrb[0].mxu0
        %5862 = vmatprep.mubr.f32.mxu0 0.0
        %5863 = vmatmul.mubr.f32.gmra.mrb[0].mxu0 %v5728
        %v5864 = vpop.f32.mrb[0].mxu0
        %v5865 = vadd.f32 0.0, %v5864
        %v5866 = vpop.f32.mrb[0].mxu0
        %5867 = vmatprep.mubr.f32.mxu0 0.0
        %5868 = vmatmul.mubr.f32.gmra.mrb[0].mxu0 %v5731
        %v5869 = vpop.f32.mrb[0].mxu0
        %v5870 = vadd.f32 0.0, %v5869
        %v5871 = vpop.f32.mrb[0].mxu0
        %5872 = vmatprep.mubr.f32.mxu0 0.0
        %5873 = vmatmul.mubr.f32.gmra.mrb[0].mxu0 %v5734
        %v5874 = vpop.f32.mrb[0].mxu0
        %v5875 = vadd.f32 0.0, %v5874
        %v5876 = vpop.f32.mrb[0].mxu0
        %5877 = vmatprep.mubr.f32.mxu0 0.0
        %5878 = vmatmul.mubr.f32.gmra.mrb[0].mxu0 %v5737
        %v5879 = vpop.f32.mrb[0].mxu0
        %v5880 = vadd.f32 0.0, %v5879
        %v5881 = vpop.f32.mrb[0].mxu0
        %5882 = vmatprep.mubr.f32.mxu0 0.0
        %5883 = vmatmul.mubr.f32.gmra.mrb[0].mxu0 %v5740
        %v5884 = vpop.f32.mrb[0].mxu0
        %v5885 = vadd.f32 0.0, %v5884
        %v5886 = vpop.f32.mrb[0].mxu0
        %5887 = vmatprep.mubr.f32.mxu0 0.0
        %5888 = vmatmul.mubr.f32.gmra.mrb[0].mxu0 %v5743
        %v5889 = vpop.f32.mrb[0].mxu0
        %v5890 = vadd.f32 0.0, %v5889
        %v5891 = vpop.f32.mrb[0].mxu0
        %5892 = vdwg.mxu0
        %v5893 = vadd.f32 %v5243, %v5815
        %v5894 = vadd.f32 %v5243, %v5820
        %v5895 = vadd.f32 %v5243, %v5825
        %v5896 = vadd.f32 %v5243, %v5830
        %v5897 = vadd.f32 %v5243, %v5835
        %v5898 = vadd.f32 %v5243, %v5840
        %v5899 = vadd.f32 %v5243, %v5845
        %v5900 = vadd.f32 %v5243, %v5850
        %v5901 = vadd.f32 %v5243, %v5855
        %v5902 = vadd.f32 %v5243, %v5860
        %v5903 = vadd.f32 %v5243, %v5865
        %v5904 = vadd.f32 %v5243, %v5870
        %v5905 = vadd.f32 %v5243, %v5875
        %v5906 = vadd.f32 %v5243, %v5880
        %v5907 = vadd.f32 %v5243, %v5885
        %v5908 = vadd.f32 %v5243, %v5890
        %v5909 = vcombine.low %v5144, %v5216
        %v5910 = vcombine.low %v5162, %v5234
        %v5913 = vrot.slane %v5909, 1
        %v5914 = vrot.slane %v5145, 1
        %v5915 = vsel %vm354, %v5913, %v5914
        %v5916 = vrot.slane %v5910, 1
        %v5917 = vrot.slane %v5163, 1
        %v5918 = vsel %vm354, %v5916, %v5917
        %5919 = vrot.lane.b32.xlu0 %v5915, 20
        %v5920 = vpop.permute.xlu0 %5919
        %5921 = vrot.lane.b32.xlu0 %v5918, 20
        %v5922 = vpop.permute.xlu0 %5921
        %v5925 = vrot.slane %v5909, 2
        %v5926 = vrot.slane %v5145, 2
        %v5927 = vsel %vm571, %v5925, %v5926
        %v5928 = vrot.slane %v5910, 2
        %v5929 = vrot.slane %v5163, 2
        %v5930 = vsel %vm571, %v5928, %v5929
        %5931 = vrot.lane.b32.xlu0 %v5927, 40
        %v5932 = vpop.permute.xlu0 %5931
        %5933 = vrot.lane.b32.xlu0 %v5930, 40
        %v5934 = vpop.permute.xlu0 %5933
        %v5937 = vrot.slane %v5909, 3
        %v5938 = vrot.slane %v5145, 3
        %v5939 = vsel %vm788, %v5937, %v5938
        %v5940 = vrot.slane %v5910, 3
        %v5941 = vrot.slane %v5163, 3
        %v5942 = vsel %vm788, %v5940, %v5941
        %5943 = vrot.lane.b32.xlu0 %v5939, 60
        %v5944 = vpop.permute.xlu0 %5943
        %5945 = vrot.lane.b32.xlu0 %v5942, 60
        %v5946 = vpop.permute.xlu0 %5945
        %v5949 = vcombine.low %v5216, %v5145
        %v5950 = vcombine.low %v5234, %v5163
        %5951 = vrot.lane.b32.xlu0 %v5949, 80
        %v5952 = vpop.permute.xlu0 %5951
        %5953 = vrot.lane.b32.xlu0 %v5950, 80
        %v5954 = vpop.permute.xlu0 %5953
        %v5957 = vsel %vm5628, %v5909, %v5920
        %v5958 = vsel %vm5628, %v5910, %v5922
        %v5959 = vsel %vm5645, %v5957, %v5932
        %v5960 = vsel %vm5645, %v5958, %v5934
        %v5961 = vsel %vm5662, %v5959, %v5944
        %v5962 = vsel %vm5662, %v5960, %v5946
        %v5963 = vsel %vm5679, %v5961, %v5952
        %v5964 = vsel %vm5679, %v5962, %v5954
        %v5977 = vrot.slane %v255, 4
        %v5978 = vrot.slane %v256, 4
        %v5979 = vsel %vm1005, %v5977, %v5978
        %v5980 = vrot.slane %v257, 4
        %v5981 = vsel %vm1005, %v5978, %v5980
        %v5982 = vrot.slane %v258, 4
        %v5983 = vsel %vm1005, %v5980, %v5982
        %v5984 = vrot.slane %v259, 4
        %v5985 = vsel %vm1005, %v5982, %v5984
        %v5986 = vrot.slane %v260, 4
        %v5987 = vsel %vm1005, %v5984, %v5986
        %v5988 = vrot.slane %v261, 4
        %v5989 = vsel %vm1005, %v5986, %v5988
        %v5990 = vrot.slane %v262, 4
        %v5991 = vsel %vm1005, %v5988, %v5990
        %v5992 = vrot.slane %v263, 4
        %v5993 = vsel %vm1005, %v5990, %v5992
        %v5994 = vrot.slane %v264, 4
        %v5995 = vsel %vm1005, %v5992, %v5994
        %v5996 = vrot.slane %v265, 4
        %v5997 = vsel %vm1005, %v5994, %v5996
        %v5998 = vrot.slane %v266, 4
        %v5999 = vsel %vm1005, %v5996, %v5998
        %v6000 = vrot.slane %v267, 4
        %v6001 = vsel %vm1005, %v5998, %v6000
        %v6015 = vsel %vm5696, %v5963, 0
        %v6018 = vsel %vm5696, %v5964, 0
        %v6020 = vsel %vm1005, %v6000, 0
        %6022 = vmatprep.subr.mxu0 0.0
        %6023 = vmatpush1.msra.mxu0 %v5979
        %6024 = vmatprep.subr.mxu0 0.0
        %6025 = vmatpush1.msra.mxu0 %v5981
        %6026 = vmatprep.subr.mxu0 0.0
        %6027 = vmatpush1.msra.mxu0 %v5983
        %6028 = vmatprep.subr.mxu0 0.0
        %6029 = vmatpush1.msra.mxu0 %v5985
        %6030 = vmatprep.subr.mxu0 0.0
        %6031 = vmatpush1.msra.mxu0 %v5987
        %6032 = vmatprep.subr.mxu0 0.0
        %6033 = vmatpush1.msra.mxu0 %v5989
        %6034 = vmatprep.subr.mxu0 0.0
        %6035 = vmatpush1.msra.mxu0 %v5991
        %6036 = vmatprep.subr.mxu0 0.0
        %6037 = vmatpush1.msra.mxu0 %v5993
        %6038 = vmatprep.subr.mxu0 0.0
        %6039 = vmatpush1.msra.mxu0 %v5995
        %6040 = vmatprep.subr.mxu0 0.0
        %6041 = vmatpush1.msra.mxu0 %v5997
        %6042 = vmatprep.subr.mxu0 0.0
        %6043 = vmatpush1.msra.mxu0 %v5999
        %6044 = vmatprep.subr.mxu0 0.0
        %6045 = vmatpush1.msra.mxu0 %v6001
        %6046 = vmatprep.subr.mxu0 0.0
        %6047 = vmatpush1.msra.mxu0 %v6020
        %6048 = vmatprep.subr.mxu0 0.0
        %6049 = vmatpush1.msra.mxu0 0.0
        %6050 = vmatprep.subr.mxu0 0.0
        %6051 = vmatpush1.msra.mxu0 0.0
        %6052 = vmatprep.subr.mxu0 0.0
        %6053 = vmatpush1.msra.mxu0 0.0
        %6054 = vmatprep.subr.mxu0 0.0
        %6055 = vmatpush1.msra.mxu0 0.0
        %6056 = vmatprep.subr.mxu0 0.0
        %6057 = vmatpush1.msra.mxu0 0.0
        %6058 = vmatprep.subr.mxu0 0.0
        %6059 = vmatpush1.msra.mxu0 0.0
        %6060 = vmatprep.subr.mxu0 0.0
        %6061 = vmatpush1.msra.mxu0 0.0
        %6062 = vmatprep.subr.mxu0 0.0
        %6063 = vmatpush1.msra.mxu0 0.0
        %6064 = vmatprep.subr.mxu0 0.0
        %6065 = vmatpush1.msra.mxu0 0.0
        %6066 = vmatprep.subr.mxu0 0.0
        %6067 = vmatpush1.msra.mxu0 0.0
        %6068 = vmatprep.subr.mxu0 0.0
        %6069 = vmatpush1.msra.mxu0 0.0
        %6070 = vmatprep.subr.mxu0 0.0
        %6071 = vmatpush1.msra.mxu0 0.0
        %6072 = vmatprep.subr.mxu0 0.0
        %6073 = vmatpush1.msra.mxu0 0.0
        %6074 = vmatprep.subr.mxu0 0.0
        %6075 = vmatpush1.msra.mxu0 0.0
        %6076 = vmatprep.subr.mxu0 0.0
        %6077 = vmatpush1.msra.mxu0 0.0
        %6078 = vmatprep.subr.mxu0 0.0
        %6079 = vmatpush1.msra.mxu0 0.0
        %6080 = vmatprep.subr.mxu0 0.0
        %6081 = vmatpush1.msra.mxu0 0.0
        %6082 = vmatprep.subr.mxu0 0.0
        %6083 = vmatpush1.msra.mxu0 0.0
        %6084 = vmatprep.subr.mxu0 0.0
        %6085 = vmatpush1.msra.mxu0 0.0
        %6086 = vmatprep.mubr.f32.mxu0 0.0
        %6087 = vmatmul.mubr.f32.gmra.mrb[0].mxu0 %v5701
        %v6088 = vpop.f32.mrb[0].mxu0
        %v6089 = vadd.f32 0.0, %v6088
        %v6090 = vpop.f32.mrb[0].mxu0
        %6091 = vmatprep.mubr.f32.mxu0 0.0
        %6092 = vmatmul.mubr.f32.gmra.mrb[0].mxu0 %v5704
        %v6093 = vpop.f32.mrb[0].mxu0
        %v6094 = vadd.f32 0.0, %v6093
        %v6095 = vpop.f32.mrb[0].mxu0
        %6096 = vmatprep.mubr.f32.mxu0 0.0
        %6097 = vmatmul.mubr.f32.gmra.mrb[0].mxu0 %v5707
        %v6098 = vpop.f32.mrb[0].mxu0
        %v6099 = vadd.f32 0.0, %v6098
        %v6100 = vpop.f32.mrb[0].mxu0
        %6101 = vmatprep.mubr.f32.mxu0 0.0
        %6102 = vmatmul.mubr.f32.gmra.mrb[0].mxu0 %v5710
        %v6103 = vpop.f32.mrb[0].mxu0
        %v6104 = vadd.f32 0.0, %v6103
        %v6105 = vpop.f32.mrb[0].mxu0
        %6106 = vmatprep.mubr.f32.mxu0 0.0
        %6107 = vmatmul.mubr.f32.gmra.mrb[0].mxu0 %v5713
        %v6108 = vpop.f32.mrb[0].mxu0
        %v6109 = vadd.f32 0.0, %v6108
        %v6110 = vpop.f32.mrb[0].mxu0
        %6111 = vmatprep.mubr.f32.mxu0 0.0
        %6112 = vmatmul.mubr.f32.gmra.mrb[0].mxu0 %v5716
        %v6113 = vpop.f32.mrb[0].mxu0
        %v6114 = vadd.f32 0.0, %v6113
        %v6115 = vpop.f32.mrb[0].mxu0
        %6116 = vmatprep.mubr.f32.mxu0 0.0
        %6117 = vmatmul.mubr.f32.gmra.mrb[0].mxu0 %v5719
        %v6118 = vpop.f32.mrb[0].mxu0
        %v6119 = vadd.f32 0.0, %v6118
        %v6120 = vpop.f32.mrb[0].mxu0
        %6121 = vmatprep.mubr.f32.mxu0 0.0
        %6122 = vmatmul.mubr.f32.gmra.mrb[0].mxu0 %v6015
        %v6123 = vpop.f32.mrb[0].mxu0
        %v6124 = vadd.f32 0.0, %v6123
        %v6125 = vpop.f32.mrb[0].mxu0
        %6126 = vmatprep.mubr.f32.mxu0 0.0
        %6127 = vmatmul.mubr.f32.gmra.mrb[0].mxu0 %v5725
        %v6128 = vpop.f32.mrb[0].mxu0
        %v6129 = vadd.f32 0.0, %v6128
        %v6130 = vpop.f32.mrb[0].mxu0
        %6131 = vmatprep.mubr.f32.mxu0 0.0
        %6132 = vmatmul.mubr.f32.gmra.mrb[0].mxu0 %v5728
        %v6133 = vpop.f32.mrb[0].mxu0
        %v6134 = vadd.f32 0.0, %v6133
        %v6135 = vpop.f32.mrb[0].mxu0
        %6136 = vmatprep.mubr.f32.mxu0 0.0
        %6137 = vmatmul.mubr.f32.gmra.mrb[0].mxu0 %v5731
        %v6138 = vpop.f32.mrb[0].mxu0
        %v6139 = vadd.f32 0.0, %v6138
        %v6140 = vpop.f32.mrb[0].mxu0
        %6141 = vmatprep.mubr.f32.mxu0 0.0
        %6142 = vmatmul.mubr.f32.gmra.mrb[0].mxu0 %v5734
        %v6143 = vpop.f32.mrb[0].mxu0
        %v6144 = vadd.f32 0.0, %v6143
        %v6145 = vpop.f32.mrb[0].mxu0
        %6146 = vmatprep.mubr.f32.mxu0 0.0
        %6147 = vmatmul.mubr.f32.gmra.mrb[0].mxu0 %v5737
        %v6148 = vpop.f32.mrb[0].mxu0
        %v6149 = vadd.f32 0.0, %v6148
        %v6150 = vpop.f32.mrb[0].mxu0
        %6151 = vmatprep.mubr.f32.mxu0 0.0
        %6152 = vmatmul.mubr.f32.gmra.mrb[0].mxu0 %v5740
        %v6153 = vpop.f32.mrb[0].mxu0
        %v6154 = vadd.f32 0.0, %v6153
        %v6155 = vpop.f32.mrb[0].mxu0
        %6156 = vmatprep.mubr.f32.mxu0 0.0
        %6157 = vmatmul.mubr.f32.gmra.mrb[0].mxu0 %v5743
        %v6158 = vpop.f32.mrb[0].mxu0
        %v6159 = vadd.f32 0.0, %v6158
        %v6160 = vpop.f32.mrb[0].mxu0
        %6161 = vmatprep.mubr.f32.mxu0 0.0
        %6162 = vmatmul.mubr.f32.gmra.mrb[0].mxu0 %v6018
        %v6163 = vpop.f32.mrb[0].mxu0
        %v6164 = vadd.f32 0.0, %v6163
        %v6165 = vpop.f32.mrb[0].mxu0
        %6166 = vdwg.mxu0
        %v6167 = vadd.f32 %v5893, %v6089
        %v6168 = vadd.f32 %v5894, %v6094
        %v6169 = vadd.f32 %v5895, %v6099
        %v6170 = vadd.f32 %v5896, %v6104
        %v6171 = vadd.f32 %v5897, %v6109
        %v6172 = vadd.f32 %v5898, %v6114
        %v6173 = vadd.f32 %v5899, %v6119
        %v6174 = vadd.f32 %v5900, %v6124
        %v6175 = vadd.f32 %v5901, %v6129
        %v6176 = vadd.f32 %v5902, %v6134
        %v6177 = vadd.f32 %v5903, %v6139
        %v6178 = vadd.f32 %v5904, %v6144
        %v6179 = vadd.f32 %v5905, %v6149
        %v6180 = vadd.f32 %v5906, %v6154
        %v6181 = vadd.f32 %v5907, %v6159
        %v6182 = vadd.f32 %v5908, %v6164
        %v6183 = vcombine.low %v5217, %v5146
        %v6184 = vcombine.low %v5235, %v5164
        %v6187 = vrot.slane %v6183, 1
        %v6188 = vrot.slane %v5218, 1
        %v6189 = vsel %vm354, %v6187, %v6188
        %v6190 = vrot.slane %v6184, 1
        %v6191 = vrot.slane %v5236, 1
        %v6192 = vsel %vm354, %v6190, %v6191
        %6193 = vrot.lane.b32.xlu0 %v6189, 20
        %v6194 = vpop.permute.xlu0 %6193
        %6195 = vrot.lane.b32.xlu0 %v6192, 20
        %v6196 = vpop.permute.xlu0 %6195
        %v6199 = vrot.slane %v6183, 2
        %v6200 = vrot.slane %v5218, 2
        %v6201 = vsel %vm571, %v6199, %v6200
        %v6202 = vrot.slane %v6184, 2
        %v6203 = vrot.slane %v5236, 2
        %v6204 = vsel %vm571, %v6202, %v6203
        %6205 = vrot.lane.b32.xlu0 %v6201, 40
        %v6206 = vpop.permute.xlu0 %6205
        %6207 = vrot.lane.b32.xlu0 %v6204, 40
        %v6208 = vpop.permute.xlu0 %6207
        %v6211 = vrot.slane %v6183, 3
        %v6212 = vrot.slane %v5218, 3
        %v6213 = vsel %vm788, %v6211, %v6212
        %v6214 = vrot.slane %v6184, 3
        %v6215 = vrot.slane %v5236, 3
        %v6216 = vsel %vm788, %v6214, %v6215
        %6217 = vrot.lane.b32.xlu0 %v6213, 60
        %v6218 = vpop.permute.xlu0 %6217
        %6219 = vrot.lane.b32.xlu0 %v6216, 60
        %v6220 = vpop.permute.xlu0 %6219
        %v6223 = vcombine.low %v5146, %v5218
        %v6224 = vcombine.low %v5164, %v5236
        %6225 = vrot.lane.b32.xlu0 %v6223, 80
        %v6226 = vpop.permute.xlu0 %6225
        %6227 = vrot.lane.b32.xlu0 %v6224, 80
        %v6228 = vpop.permute.xlu0 %6227
        %v6231 = vsel %vm5628, %v6183, %v6194
        %v6232 = vsel %vm5628, %v6184, %v6196
        %v6233 = vsel %vm5645, %v6231, %v6206
        %v6234 = vsel %vm5645, %v6232, %v6208
        %v6235 = vsel %vm5662, %v6233, %v6218
        %v6236 = vsel %vm5662, %v6234, %v6220
        %v6237 = vsel %vm5679, %v6235, %v6226
        %v6238 = vsel %vm5679, %v6236, %v6228
        %v6240 = vsel %vm5696, %v6237, 0
        %v6243 = vsel %vm5696, %v6238, 0
        %v6246 = vsel %vm1005, %v280, 0
        %6248 = vmatprep.subr.mxu0 0.0
        %6249 = vmatpush1.msra.mxu0 %v268
        %6250 = vmatprep.subr.mxu0 0.0
        %6251 = vmatpush1.msra.mxu0 %v269
        %6252 = vmatprep.subr.mxu0 0.0
        %6253 = vmatpush1.msra.mxu0 %v270
        %6254 = vmatprep.subr.mxu0 0.0
        %6255 = vmatpush1.msra.mxu0 %v271
        %6256 = vmatprep.subr.mxu0 0.0
        %6257 = vmatpush1.msra.mxu0 %v272
        %6258 = vmatprep.subr.mxu0 0.0
        %6259 = vmatpush1.msra.mxu0 %v273
        %6260 = vmatprep.subr.mxu0 0.0
        %6261 = vmatpush1.msra.mxu0 %v274
        %6262 = vmatprep.subr.mxu0 0.0
        %6263 = vmatpush1.msra.mxu0 %v275
        %6264 = vmatprep.subr.mxu0 0.0
        %6265 = vmatpush1.msra.mxu0 %v276
        %6266 = vmatprep.subr.mxu0 0.0
        %6267 = vmatpush1.msra.mxu0 %v277
        %6268 = vmatprep.subr.mxu0 0.0
        %6269 = vmatpush1.msra.mxu0 %v278
        %6270 = vmatprep.subr.mxu0 0.0
        %6271 = vmatpush1.msra.mxu0 %v279
        %6272 = vmatprep.subr.mxu0 0.0
        %6273 = vmatpush1.msra.mxu0 %v6246
        %6274 = vmatprep.subr.mxu0 0.0
        %6275 = vmatpush1.msra.mxu0 0.0
        %6276 = vmatprep.subr.mxu0 0.0
        %6277 = vmatpush1.msra.mxu0 0.0
        %6278 = vmatprep.subr.mxu0 0.0
        %6279 = vmatpush1.msra.mxu0 0.0
        %6280 = vmatprep.subr.mxu0 0.0
        %6281 = vmatpush1.msra.mxu0 0.0
        %6282 = vmatprep.subr.mxu0 0.0
        %6283 = vmatpush1.msra.mxu0 0.0
        %6284 = vmatprep.subr.mxu0 0.0
        %6285 = vmatpush1.msra.mxu0 0.0
        %6286 = vmatprep.subr.mxu0 0.0
        %6287 = vmatpush1.msra.mxu0 0.0
        %6288 = vmatprep.subr.mxu0 0.0
        %6289 = vmatpush1.msra.mxu0 0.0
        %6290 = vmatprep.subr.mxu0 0.0
        %6291 = vmatpush1.msra.mxu0 0.0
        %6292 = vmatprep.subr.mxu0 0.0
        %6293 = vmatpush1.msra.mxu0 0.0
        %6294 = vmatprep.subr.mxu0 0.0
        %6295 = vmatpush1.msra.mxu0 0.0
        %6296 = vmatprep.subr.mxu0 0.0
        %6297 = vmatpush1.msra.mxu0 0.0
        %6298 = vmatprep.subr.mxu0 0.0
        %6299 = vmatpush1.msra.mxu0 0.0
        %6300 = vmatprep.subr.mxu0 0.0
        %6301 = vmatpush1.msra.mxu0 0.0
        %6302 = vmatprep.subr.mxu0 0.0
        %6303 = vmatpush1.msra.mxu0 0.0
        %6304 = vmatprep.subr.mxu0 0.0
        %6305 = vmatpush1.msra.mxu0 0.0
        %6306 = vmatprep.subr.mxu0 0.0
        %6307 = vmatpush1.msra.mxu0 0.0
        %6308 = vmatprep.subr.mxu0 0.0
        %6309 = vmatpush1.msra.mxu0 0.0
        %6310 = vmatprep.subr.mxu0 0.0
        %6311 = vmatpush1.msra.mxu0 0.0
        %6312 = vmatprep.mubr.f32.mxu0 0.0
        %6313 = vmatmul.mubr.f32.gmra.mrb[0].mxu0 %v5704
        %v6314 = vpop.f32.mrb[0].mxu0
        %v6315 = vadd.f32 0.0, %v6314
        %v6316 = vpop.f32.mrb[0].mxu0
        %6317 = vmatprep.mubr.f32.mxu0 0.0
        %6318 = vmatmul.mubr.f32.gmra.mrb[0].mxu0 %v5707
        %v6319 = vpop.f32.mrb[0].mxu0
        %v6320 = vadd.f32 0.0, %v6319
        %v6321 = vpop.f32.mrb[0].mxu0
        %6322 = vmatprep.mubr.f32.mxu0 0.0
        %6323 = vmatmul.mubr.f32.gmra.mrb[0].mxu0 %v5710
        %v6324 = vpop.f32.mrb[0].mxu0
        %v6325 = vadd.f32 0.0, %v6324
        %v6326 = vpop.f32.mrb[0].mxu0
        %6327 = vmatprep.mubr.f32.mxu0 0.0
        %6328 = vmatmul.mubr.f32.gmra.mrb[0].mxu0 %v5713
        %v6329 = vpop.f32.mrb[0].mxu0
        %v6330 = vadd.f32 0.0, %v6329
        %v6331 = vpop.f32.mrb[0].mxu0
        %6332 = vmatprep.mubr.f32.mxu0 0.0
        %6333 = vmatmul.mubr.f32.gmra.mrb[0].mxu0 %v5716
        %v6334 = vpop.f32.mrb[0].mxu0
        %v6335 = vadd.f32 0.0, %v6334
        %v6336 = vpop.f32.mrb[0].mxu0
        %6337 = vmatprep.mubr.f32.mxu0 0.0
        %6338 = vmatmul.mubr.f32.gmra.mrb[0].mxu0 %v5719
        %v6339 = vpop.f32.mrb[0].mxu0
        %v6340 = vadd.f32 0.0, %v6339
        %v6341 = vpop.f32.mrb[0].mxu0
        %6342 = vmatprep.mubr.f32.mxu0 0.0
        %6343 = vmatmul.mubr.f32.gmra.mrb[0].mxu0 %v6015
        %v6344 = vpop.f32.mrb[0].mxu0
        %v6345 = vadd.f32 0.0, %v6344
        %v6346 = vpop.f32.mrb[0].mxu0
        %6347 = vmatprep.mubr.f32.mxu0 0.0
        %6348 = vmatmul.mubr.f32.gmra.mrb[0].mxu0 %v6240
        %v6349 = vpop.f32.mrb[0].mxu0
        %v6350 = vadd.f32 0.0, %v6349
        %v6351 = vpop.f32.mrb[0].mxu0
        %6352 = vmatprep.mubr.f32.mxu0 0.0
        %6353 = vmatmul.mubr.f32.gmra.mrb[0].mxu0 %v5728
        %v6354 = vpop.f32.mrb[0].mxu0
        %v6355 = vadd.f32 0.0, %v6354
        %v6356 = vpop.f32.mrb[0].mxu0
        %6357 = vmatprep.mubr.f32.mxu0 0.0
        %6358 = vmatmul.mubr.f32.gmra.mrb[0].mxu0 %v5731
        %v6359 = vpop.f32.mrb[0].mxu0
        %v6360 = vadd.f32 0.0, %v6359
        %v6361 = vpop.f32.mrb[0].mxu0
        %6362 = vmatprep.mubr.f32.mxu0 0.0
        %6363 = vmatmul.mubr.f32.gmra.mrb[0].mxu0 %v5734
        %v6364 = vpop.f32.mrb[0].mxu0
        %v6365 = vadd.f32 0.0, %v6364
        %v6366 = vpop.f32.mrb[0].mxu0
        %6367 = vmatprep.mubr.f32.mxu0 0.0
        %6368 = vmatmul.mubr.f32.gmra.mrb[0].mxu0 %v5737
        %v6369 = vpop.f32.mrb[0].mxu0
        %v6370 = vadd.f32 0.0, %v6369
        %v6371 = vpop.f32.mrb[0].mxu0
        %6372 = vmatprep.mubr.f32.mxu0 0.0
        %6373 = vmatmul.mubr.f32.gmra.mrb[0].mxu0 %v5740
        %v6374 = vpop.f32.mrb[0].mxu0
        %v6375 = vadd.f32 0.0, %v6374
        %v6376 = vpop.f32.mrb[0].mxu0
        %6377 = vmatprep.mubr.f32.mxu0 0.0
        %6378 = vmatmul.mubr.f32.gmra.mrb[0].mxu0 %v5743
        %v6379 = vpop.f32.mrb[0].mxu0
        %v6380 = vadd.f32 0.0, %v6379
        %v6381 = vpop.f32.mrb[0].mxu0
        %6382 = vmatprep.mubr.f32.mxu0 0.0
        %6383 = vmatmul.mubr.f32.gmra.mrb[0].mxu0 %v6018
        %v6384 = vpop.f32.mrb[0].mxu0
        %v6385 = vadd.f32 0.0, %v6384
        %v6386 = vpop.f32.mrb[0].mxu0
        %6387 = vmatprep.mubr.f32.mxu0 0.0
        %6388 = vmatmul.mubr.f32.gmra.mrb[0].mxu0 %v6243
        %v6389 = vpop.f32.mrb[0].mxu0
        %v6390 = vadd.f32 0.0, %v6389
        %v6391 = vpop.f32.mrb[0].mxu0
        %6392 = vdwg.mxu0
        %v6393 = vadd.f32 %v6167, %v6315
        %v6394 = vadd.f32 %v6168, %v6320
        %v6395 = vadd.f32 %v6169, %v6325
        %v6396 = vadd.f32 %v6170, %v6330
        %v6397 = vadd.f32 %v6171, %v6335
        %v6398 = vadd.f32 %v6172, %v6340
        %v6399 = vadd.f32 %v6173, %v6345
        %v6400 = vadd.f32 %v6174, %v6350
        %v6401 = vadd.f32 %v6175, %v6355
        %v6402 = vadd.f32 %v6176, %v6360
        %v6403 = vadd.f32 %v6177, %v6365
        %v6404 = vadd.f32 %v6178, %v6370
        %v6405 = vadd.f32 %v6179, %v6375
        %v6406 = vadd.f32 %v6180, %v6380
        %v6407 = vadd.f32 %v6181, %v6385
        %v6408 = vadd.f32 %v6182, %v6390
        %v6409 = vcombine.low %v5147, %v5219
        %v6410 = vcombine.low %v5165, %v5237
        %v6413 = vrot.slane %v6409, 1
        %v6414 = vrot.slane %v5148, 1
        %v6415 = vsel %vm354, %v6413, %v6414
        %v6416 = vrot.slane %v6410, 1
        %v6417 = vrot.slane %v5166, 1
        %v6418 = vsel %vm354, %v6416, %v6417
        %6419 = vrot.lane.b32.xlu0 %v6415, 20
        %v6420 = vpop.permute.xlu0 %6419
        %6421 = vrot.lane.b32.xlu0 %v6418, 20
        %v6422 = vpop.permute.xlu0 %6421
        %v6425 = vrot.slane %v6409, 2
        %v6426 = vrot.slane %v5148, 2
        %v6427 = vsel %vm571, %v6425, %v6426
        %v6428 = vrot.slane %v6410, 2
        %v6429 = vrot.slane %v5166, 2
        %v6430 = vsel %vm571, %v6428, %v6429
        %6431 = vrot.lane.b32.xlu0 %v6427, 40
        %v6432 = vpop.permute.xlu0 %6431
        %6433 = vrot.lane.b32.xlu0 %v6430, 40
        %v6434 = vpop.permute.xlu0 %6433
        %v6437 = vrot.slane %v6409, 3
        %v6438 = vrot.slane %v5148, 3
        %v6439 = vsel %vm788, %v6437, %v6438
        %v6440 = vrot.slane %v6410, 3
        %v6441 = vrot.slane %v5166, 3
        %v6442 = vsel %vm788, %v6440, %v6441
        %6443 = vrot.lane.b32.xlu0 %v6439, 60
        %v6444 = vpop.permute.xlu0 %6443
        %6445 = vrot.lane.b32.xlu0 %v6442, 60
        %v6446 = vpop.permute.xlu0 %6445
        %v6449 = vcombine.low %v5219, %v5148
        %v6450 = vcombine.low %v5237, %v5166
        %6451 = vrot.lane.b32.xlu0 %v6449, 80
        %v6452 = vpop.permute.xlu0 %6451
        %6453 = vrot.lane.b32.xlu0 %v6450, 80
        %v6454 = vpop.permute.xlu0 %6453
        %v6457 = vsel %vm5628, %v6409, %v6420
        %v6458 = vsel %vm5628, %v6410, %v6422
        %v6459 = vsel %vm5645, %v6457, %v6432
        %v6460 = vsel %vm5645, %v6458, %v6434
        %v6461 = vsel %vm5662, %v6459, %v6444
        %v6462 = vsel %vm5662, %v6460, %v6446
        %v6463 = vsel %vm5679, %v6461, %v6452
        %v6464 = vsel %vm5679, %v6462, %v6454
        %v6477 = vrot.slane %v280, 4
        %v6478 = vrot.slane %v281, 4
        %v6479 = vsel %vm1005, %v6477, %v6478
        %v6480 = vrot.slane %v282, 4
        %v6481 = vsel %vm1005, %v6478, %v6480
        %v6482 = vrot.slane %v283, 4
        %v6483 = vsel %vm1005, %v6480, %v6482
        %v6484 = vrot.slane %v284, 4
        %v6485 = vsel %vm1005, %v6482, %v6484
        %v6486 = vrot.slane %v285, 4
        %v6487 = vsel %vm1005, %v6484, %v6486
        %v6488 = vrot.slane %v286, 4
        %v6489 = vsel %vm1005, %v6486, %v6488
        %v6490 = vrot.slane %v287, 4
        %v6491 = vsel %vm1005, %v6488, %v6490
        %v6492 = vrot.slane %v288, 4
        %v6493 = vsel %vm1005, %v6490, %v6492
        %v6494 = vrot.slane %v289, 4
        %v6495 = vsel %vm1005, %v6492, %v6494
        %v6496 = vrot.slane %v290, 4
        %v6497 = vsel %vm1005, %v6494, %v6496
        %v6498 = vrot.slane %v291, 4
        %v6499 = vsel %vm1005, %v6496, %v6498
        %v6500 = vrot.slane %v292, 4
        %v6501 = vsel %vm1005, %v6498, %v6500
        %v6515 = vsel %vm5696, %v6463, 0
        %v6518 = vsel %vm5696, %v6464, 0
        %v6520 = vsel %vm1005, %v6500, 0
        %6522 = vmatprep.subr.mxu0 0.0
        %6523 = vmatpush1.msra.mxu0 %v6479
        %6524 = vmatprep.subr.mxu0 0.0
        %6525 = vmatpush1.msra.mxu0 %v6481
        %6526 = vmatprep.subr.mxu0 0.0
        %6527 = vmatpush1.msra.mxu0 %v6483
        %6528 = vmatprep.subr.mxu0 0.0
        %6529 = vmatpush1.msra.mxu0 %v6485
        %6530 = vmatprep.subr.mxu0 0.0
        %6531 = vmatpush1.msra.mxu0 %v6487
        %6532 = vmatprep.subr.mxu0 0.0
        %6533 = vmatpush1.msra.mxu0 %v6489
        %6534 = vmatprep.subr.mxu0 0.0
        %6535 = vmatpush1.msra.mxu0 %v6491
        %6536 = vmatprep.subr.mxu0 0.0
        %6537 = vmatpush1.msra.mxu0 %v6493
        %6538 = vmatprep.subr.mxu0 0.0
        %6539 = vmatpush1.msra.mxu0 %v6495
        %6540 = vmatprep.subr.mxu0 0.0
        %6541 = vmatpush1.msra.mxu0 %v6497
        %6542 = vmatprep.subr.mxu0 0.0
        %6543 = vmatpush1.msra.mxu0 %v6499
        %6544 = vmatprep.subr.mxu0 0.0
        %6545 = vmatpush1.msra.mxu0 %v6501
        %6546 = vmatprep.subr.mxu0 0.0
        %6547 = vmatpush1.msra.mxu0 %v6520
        %6548 = vmatprep.subr.mxu0 0.0
        %6549 = vmatpush1.msra.mxu0 0.0
        %6550 = vmatprep.subr.mxu0 0.0
        %6551 = vmatpush1.msra.mxu0 0.0
        %6552 = vmatprep.subr.mxu0 0.0
        %6553 = vmatpush1.msra.mxu0 0.0
        %6554 = vmatprep.subr.mxu0 0.0
        %6555 = vmatpush1.msra.mxu0 0.0
        %6556 = vmatprep.subr.mxu0 0.0
        %6557 = vmatpush1.msra.mxu0 0.0
        %6558 = vmatprep.subr.mxu0 0.0
        %6559 = vmatpush1.msra.mxu0 0.0
        %6560 = vmatprep.subr.mxu0 0.0
        %6561 = vmatpush1.msra.mxu0 0.0
        %6562 = vmatprep.subr.mxu0 0.0
        %6563 = vmatpush1.msra.mxu0 0.0
        %6564 = vmatprep.subr.mxu0 0.0
        %6565 = vmatpush1.msra.mxu0 0.0
        %6566 = vmatprep.subr.mxu0 0.0
        %6567 = vmatpush1.msra.mxu0 0.0
        %6568 = vmatprep.subr.mxu0 0.0
        %6569 = vmatpush1.msra.mxu0 0.0
        %6570 = vmatprep.subr.mxu0 0.0
        %6571 = vmatpush1.msra.mxu0 0.0
        %6572 = vmatprep.subr.mxu0 0.0
        %6573 = vmatpush1.msra.mxu0 0.0
        %6574 = vmatprep.subr.mxu0 0.0
        %6575 = vmatpush1.msra.mxu0 0.0
        %6576 = vmatprep.subr.mxu0 0.0
        %6577 = vmatpush1.msra.mxu0 0.0
        %6578 = vmatprep.subr.mxu0 0.0
        %6579 = vmatpush1.msra.mxu0 0.0
        %6580 = vmatprep.subr.mxu0 0.0
        %6581 = vmatpush1.msra.mxu0 0.0
        %6582 = vmatprep.subr.mxu0 0.0
        %6583 = vmatpush1.msra.mxu0 0.0
        %6584 = vmatprep.subr.mxu0 0.0
        %6585 = vmatpush1.msra.mxu0 0.0
        %6586 = vmatprep.mubr.f32.mxu0 0.0
        %6587 = vmatmul.mubr.f32.gmra.mrb[0].mxu0 %v5707
        %v6588 = vpop.f32.mrb[0].mxu0
        %v6589 = vadd.f32 0.0, %v6588
        %v6590 = vpop.f32.mrb[0].mxu0
        %6591 = vmatprep.mubr.f32.mxu0 0.0
        %6592 = vmatmul.mubr.f32.gmra.mrb[0].mxu0 %v5710
        %v6593 = vpop.f32.mrb[0].mxu0
        %v6594 = vadd.f32 0.0, %v6593
        %v6595 = vpop.f32.mrb[0].mxu0
        %6596 = vmatprep.mubr.f32.mxu0 0.0
        %6597 = vmatmul.mubr.f32.gmra.mrb[0].mxu0 %v5713
        %v6598 = vpop.f32.mrb[0].mxu0
        %v6599 = vadd.f32 0.0, %v6598
        %v6600 = vpop.f32.mrb[0].mxu0
        %6601 = vmatprep.mubr.f32.mxu0 0.0
        %6602 = vmatmul.mubr.f32.gmra.mrb[0].mxu0 %v5716
        %v6603 = vpop.f32.mrb[0].mxu0
        %v6604 = vadd.f32 0.0, %v6603
        %v6605 = vpop.f32.mrb[0].mxu0
        %6606 = vmatprep.mubr.f32.mxu0 0.0
        %6607 = vmatmul.mubr.f32.gmra.mrb[0].mxu0 %v5719
        %v6608 = vpop.f32.mrb[0].mxu0
        %v6609 = vadd.f32 0.0, %v6608
        %v6610 = vpop.f32.mrb[0].mxu0
        %6611 = vmatprep.mubr.f32.mxu0 0.0
        %6612 = vmatmul.mubr.f32.gmra.mrb[0].mxu0 %v6015
        %v6613 = vpop.f32.mrb[0].mxu0
        %v6614 = vadd.f32 0.0, %v6613
        %v6615 = vpop.f32.mrb[0].mxu0
        %6616 = vmatprep.mubr.f32.mxu0 0.0
        %6617 = vmatmul.mubr.f32.gmra.mrb[0].mxu0 %v6240
        %v6618 = vpop.f32.mrb[0].mxu0
        %v6619 = vadd.f32 0.0, %v6618
        %v6620 = vpop.f32.mrb[0].mxu0
        %6621 = vmatprep.mubr.f32.mxu0 0.0
        %6622 = vmatmul.mubr.f32.gmra.mrb[0].mxu0 %v6515
        %v6623 = vpop.f32.mrb[0].mxu0
        %v6624 = vadd.f32 0.0, %v6623
        %v6625 = vpop.f32.mrb[0].mxu0
        %6626 = vmatprep.mubr.f32.mxu0 0.0
        %6627 = vmatmul.mubr.f32.gmra.mrb[0].mxu0 %v5731
        %v6628 = vpop.f32.mrb[0].mxu0
        %v6629 = vadd.f32 0.0, %v6628
        %v6630 = vpop.f32.mrb[0].mxu0
        %6631 = vmatprep.mubr.f32.mxu0 0.0
        %6632 = vmatmul.mubr.f32.gmra.mrb[0].mxu0 %v5734
        %v6633 = vpop.f32.mrb[0].mxu0
        %v6634 = vadd.f32 0.0, %v6633
        %v6635 = vpop.f32.mrb[0].mxu0
        %6636 = vmatprep.mubr.f32.mxu0 0.0
        %6637 = vmatmul.mubr.f32.gmra.mrb[0].mxu0 %v5737
        %v6638 = vpop.f32.mrb[0].mxu0
        %v6639 = vadd.f32 0.0, %v6638
        %v6640 = vpop.f32.mrb[0].mxu0
        %6641 = vmatprep.mubr.f32.mxu0 0.0
        %6642 = vmatmul.mubr.f32.gmra.mrb[0].mxu0 %v5740
        %v6643 = vpop.f32.mrb[0].mxu0
        %v6644 = vadd.f32 0.0, %v6643
        %v6645 = vpop.f32.mrb[0].mxu0
        %6646 = vmatprep.mubr.f32.mxu0 0.0
        %6647 = vmatmul.mubr.f32.gmra.mrb[0].mxu0 %v5743
        %v6648 = vpop.f32.mrb[0].mxu0
        %v6649 = vadd.f32 0.0, %v6648
        %v6650 = vpop.f32.mrb[0].mxu0
        %6651 = vmatprep.mubr.f32.mxu0 0.0
        %6652 = vmatmul.mubr.f32.gmra.mrb[0].mxu0 %v6018
        %v6653 = vpop.f32.mrb[0].mxu0
        %v6654 = vadd.f32 0.0, %v6653
        %v6655 = vpop.f32.mrb[0].mxu0
        %6656 = vmatprep.mubr.f32.mxu0 0.0
        %6657 = vmatmul.mubr.f32.gmra.mrb[0].mxu0 %v6243
        %v6658 = vpop.f32.mrb[0].mxu0
        %v6659 = vadd.f32 0.0, %v6658
        %v6660 = vpop.f32.mrb[0].mxu0
        %6661 = vmatprep.mubr.f32.mxu0 0.0
        %6662 = vmatmul.mubr.f32.gmra.mrb[0].mxu0 %v6518
        %v6663 = vpop.f32.mrb[0].mxu0
        %v6664 = vadd.f32 0.0, %v6663
        %v6665 = vpop.f32.mrb[0].mxu0
        %6666 = vdwg.mxu0
        %v6667 = vadd.f32 %v6393, %v6589
        %v6668 = vadd.f32 %v6394, %v6594
        %v6669 = vadd.f32 %v6395, %v6599
        %v6670 = vadd.f32 %v6396, %v6604
        %v6671 = vadd.f32 %v6397, %v6609
        %v6672 = vadd.f32 %v6398, %v6614
        %v6673 = vadd.f32 %v6399, %v6619
        %v6674 = vadd.f32 %v6400, %v6624
        %v6675 = vadd.f32 %v6401, %v6629
        %v6676 = vadd.f32 %v6402, %v6634
        %v6677 = vadd.f32 %v6403, %v6639
        %v6678 = vadd.f32 %v6404, %v6644
        %v6679 = vadd.f32 %v6405, %v6649
        %v6680 = vadd.f32 %v6406, %v6654
        %v6681 = vadd.f32 %v6407, %v6659
        %v6682 = vadd.f32 %v6408, %v6664
        %v6683 = vcombine.low %v5220, %v5149
        %v6684 = vcombine.low %v5238, %v5167
        %v6687 = vrot.slane %v6683, 1
        %v6688 = vrot.slane %v5221, 1
        %v6689 = vsel %vm354, %v6687, %v6688
        %v6690 = vrot.slane %v6684, 1
        %v6691 = vrot.slane %v5239, 1
        %v6692 = vsel %vm354, %v6690, %v6691
        %6693 = vrot.lane.b32.xlu0 %v6689, 20
        %v6694 = vpop.permute.xlu0 %6693
        %6695 = vrot.lane.b32.xlu0 %v6692, 20
        %v6696 = vpop.permute.xlu0 %6695
        %v6699 = vrot.slane %v6683, 2
        %v6700 = vrot.slane %v5221, 2
        %v6701 = vsel %vm571, %v6699, %v6700
        %v6702 = vrot.slane %v6684, 2
        %v6703 = vrot.slane %v5239, 2
        %v6704 = vsel %vm571, %v6702, %v6703
        %6705 = vrot.lane.b32.xlu0 %v6701, 40
        %v6706 = vpop.permute.xlu0 %6705
        %6707 = vrot.lane.b32.xlu0 %v6704, 40
        %v6708 = vpop.permute.xlu0 %6707
        %v6711 = vrot.slane %v6683, 3
        %v6712 = vrot.slane %v5221, 3
        %v6713 = vsel %vm788, %v6711, %v6712
        %v6714 = vrot.slane %v6684, 3
        %v6715 = vrot.slane %v5239, 3
        %v6716 = vsel %vm788, %v6714, %v6715
        %6717 = vrot.lane.b32.xlu0 %v6713, 60
        %v6718 = vpop.permute.xlu0 %6717
        %6719 = vrot.lane.b32.xlu0 %v6716, 60
        %v6720 = vpop.permute.xlu0 %6719
        %v6723 = vcombine.low %v5149, %v5221
        %v6724 = vcombine.low %v5167, %v5239
        %6725 = vrot.lane.b32.xlu0 %v6723, 80
        %v6726 = vpop.permute.xlu0 %6725
        %6727 = vrot.lane.b32.xlu0 %v6724, 80
        %v6728 = vpop.permute.xlu0 %6727
        %v6731 = vsel %vm5628, %v6683, %v6694
        %v6732 = vsel %vm5628, %v6684, %v6696
        %v6733 = vsel %vm5645, %v6731, %v6706
        %v6734 = vsel %vm5645, %v6732, %v6708
        %v6735 = vsel %vm5662, %v6733, %v6718
        %v6736 = vsel %vm5662, %v6734, %v6720
        %v6737 = vsel %vm5679, %v6735, %v6726
        %v6738 = vsel %vm5679, %v6736, %v6728
        %v6740 = vsel %vm5696, %v6737, 0
        %v6743 = vsel %vm5696, %v6738, 0
        %v6746 = vsel %vm1005, %v305, 0
        %6748 = vmatprep.subr.mxu0 0.0
        %6749 = vmatpush1.msra.mxu0 %v293
        %6750 = vmatprep.subr.mxu0 0.0
        %6751 = vmatpush1.msra.mxu0 %v294
        %6752 = vmatprep.subr.mxu0 0.0
        %6753 = vmatpush1.msra.mxu0 %v295
        %6754 = vmatprep.subr.mxu0 0.0
        %6755 = vmatpush1.msra.mxu0 %v296
        %6756 = vmatprep.subr.mxu0 0.0
        %6757 = vmatpush1.msra.mxu0 %v297
        %6758 = vmatprep.subr.mxu0 0.0
        %6759 = vmatpush1.msra.mxu0 %v298
        %6760 = vmatprep.subr.mxu0 0.0
        %6761 = vmatpush1.msra.mxu0 %v299
        %6762 = vmatprep.subr.mxu0 0.0
        %6763 = vmatpush1.msra.mxu0 %v300
        %6764 = vmatprep.subr.mxu0 0.0
        %6765 = vmatpush1.msra.mxu0 %v301
        %6766 = vmatprep.subr.mxu0 0.0
        %6767 = vmatpush1.msra.mxu0 %v302
        %6768 = vmatprep.subr.mxu0 0.0
        %6769 = vmatpush1.msra.mxu0 %v303
        %6770 = vmatprep.subr.mxu0 0.0
        %6771 = vmatpush1.msra.mxu0 %v304
        %6772 = vmatprep.subr.mxu0 0.0
        %6773 = vmatpush1.msra.mxu0 %v6746
        %6774 = vmatprep.subr.mxu0 0.0
        %6775 = vmatpush1.msra.mxu0 0.0
        %6776 = vmatprep.subr.mxu0 0.0
        %6777 = vmatpush1.msra.mxu0 0.0
        %6778 = vmatprep.subr.mxu0 0.0
        %6779 = vmatpush1.msra.mxu0 0.0
        %6780 = vmatprep.subr.mxu0 0.0
        %6781 = vmatpush1.msra.mxu0 0.0
        %6782 = vmatprep.subr.mxu0 0.0
        %6783 = vmatpush1.msra.mxu0 0.0
        %6784 = vmatprep.subr.mxu0 0.0
        %6785 = vmatpush1.msra.mxu0 0.0
        %6786 = vmatprep.subr.mxu0 0.0
        %6787 = vmatpush1.msra.mxu0 0.0
        %6788 = vmatprep.subr.mxu0 0.0
        %6789 = vmatpush1.msra.mxu0 0.0
        %6790 = vmatprep.subr.mxu0 0.0
        %6791 = vmatpush1.msra.mxu0 0.0
        %6792 = vmatprep.subr.mxu0 0.0
        %6793 = vmatpush1.msra.mxu0 0.0
        %6794 = vmatprep.subr.mxu0 0.0
        %6795 = vmatpush1.msra.mxu0 0.0
        %6796 = vmatprep.subr.mxu0 0.0
        %6797 = vmatpush1.msra.mxu0 0.0
        %6798 = vmatprep.subr.mxu0 0.0
        %6799 = vmatpush1.msra.mxu0 0.0
        %6800 = vmatprep.subr.mxu0 0.0
        %6801 = vmatpush1.msra.mxu0 0.0
        %6802 = vmatprep.subr.mxu0 0.0
        %6803 = vmatpush1.msra.mxu0 0.0
        %6804 = vmatprep.subr.mxu0 0.0
        %6805 = vmatpush1.msra.mxu0 0.0
        %6806 = vmatprep.subr.mxu0 0.0
        %6807 = vmatpush1.msra.mxu0 0.0
        %6808 = vmatprep.subr.mxu0 0.0
        %6809 = vmatpush1.msra.mxu0 0.0
        %6810 = vmatprep.subr.mxu0 0.0
        %6811 = vmatpush1.msra.mxu0 0.0
        %6812 = vmatprep.mubr.f32.mxu0 0.0
        %6813 = vmatmul.mubr.f32.gmra.mrb[0].mxu0 %v5710
        %v6814 = vpop.f32.mrb[0].mxu0
        %v6815 = vadd.f32 0.0, %v6814
        %v6816 = vpop.f32.mrb[0].mxu0
        %6817 = vmatprep.mubr.f32.mxu0 0.0
        %6818 = vmatmul.mubr.f32.gmra.mrb[0].mxu0 %v5713
        %v6819 = vpop.f32.mrb[0].mxu0
        %v6820 = vadd.f32 0.0, %v6819
        %v6821 = vpop.f32.mrb[0].mxu0
        %6822 = vmatprep.mubr.f32.mxu0 0.0
        %6823 = vmatmul.mubr.f32.gmra.mrb[0].mxu0 %v5716
        %v6824 = vpop.f32.mrb[0].mxu0
        %v6825 = vadd.f32 0.0, %v6824
        %v6826 = vpop.f32.mrb[0].mxu0
        %6827 = vmatprep.mubr.f32.mxu0 0.0
        %6828 = vmatmul.mubr.f32.gmra.mrb[0].mxu0 %v5719
        %v6829 = vpop.f32.mrb[0].mxu0
        %v6830 = vadd.f32 0.0, %v6829
        %v6831 = vpop.f32.mrb[0].mxu0
        %6832 = vmatprep.mubr.f32.mxu0 0.0
        %6833 = vmatmul.mubr.f32.gmra.mrb[0].mxu0 %v6015
        %v6834 = vpop.f32.mrb[0].mxu0
        %v6835 = vadd.f32 0.0, %v6834
        %v6836 = vpop.f32.mrb[0].mxu0
        %6837 = vmatprep.mubr.f32.mxu0 0.0
        %6838 = vmatmul.mubr.f32.gmra.mrb[0].mxu0 %v6240
        %v6839 = vpop.f32.mrb[0].mxu0
        %v6840 = vadd.f32 0.0, %v6839
        %v6841 = vpop.f32.mrb[0].mxu0
        %6842 = vmatprep.mubr.f32.mxu0 0.0
        %6843 = vmatmul.mubr.f32.gmra.mrb[0].mxu0 %v6515
        %v6844 = vpop.f32.mrb[0].mxu0
        %v6845 = vadd.f32 0.0, %v6844
        %v6846 = vpop.f32.mrb[0].mxu0
        %6847 = vmatprep.mubr.f32.mxu0 0.0
        %6848 = vmatmul.mubr.f32.gmra.mrb[0].mxu0 %v6740
        %v6849 = vpop.f32.mrb[0].mxu0
        %v6850 = vadd.f32 0.0, %v6849
        %v6851 = vpop.f32.mrb[0].mxu0
        %6852 = vmatprep.mubr.f32.mxu0 0.0
        %6853 = vmatmul.mubr.f32.gmra.mrb[0].mxu0 %v5734
        %v6854 = vpop.f32.mrb[0].mxu0
        %v6855 = vadd.f32 0.0, %v6854
        %v6856 = vpop.f32.mrb[0].mxu0
        %6857 = vmatprep.mubr.f32.mxu0 0.0
        %6858 = vmatmul.mubr.f32.gmra.mrb[0].mxu0 %v5737
        %v6859 = vpop.f32.mrb[0].mxu0
        %v6860 = vadd.f32 0.0, %v6859
        %v6861 = vpop.f32.mrb[0].mxu0
        %6862 = vmatprep.mubr.f32.mxu0 0.0
        %6863 = vmatmul.mubr.f32.gmra.mrb[0].mxu0 %v5740
        %v6864 = vpop.f32.mrb[0].mxu0
        %v6865 = vadd.f32 0.0, %v6864
        %v6866 = vpop.f32.mrb[0].mxu0
        %6867 = vmatprep.mubr.f32.mxu0 0.0
        %6868 = vmatmul.mubr.f32.gmra.mrb[0].mxu0 %v5743
        %v6869 = vpop.f32.mrb[0].mxu0
        %v6870 = vadd.f32 0.0, %v6869
        %v6871 = vpop.f32.mrb[0].mxu0
        %6872 = vmatprep.mubr.f32.mxu0 0.0
        %6873 = vmatmul.mubr.f32.gmra.mrb[0].mxu0 %v6018
        %v6874 = vpop.f32.mrb[0].mxu0
        %v6875 = vadd.f32 0.0, %v6874
        %v6876 = vpop.f32.mrb[0].mxu0
        %6877 = vmatprep.mubr.f32.mxu0 0.0
        %6878 = vmatmul.mubr.f32.gmra.mrb[0].mxu0 %v6243
        %v6879 = vpop.f32.mrb[0].mxu0
        %v6880 = vadd.f32 0.0, %v6879
        %v6881 = vpop.f32.mrb[0].mxu0
        %6882 = vmatprep.mubr.f32.mxu0 0.0
        %6883 = vmatmul.mubr.f32.gmra.mrb[0].mxu0 %v6518
        %v6884 = vpop.f32.mrb[0].mxu0
        %v6885 = vadd.f32 0.0, %v6884
        %v6886 = vpop.f32.mrb[0].mxu0
        %6887 = vmatprep.mubr.f32.mxu0 0.0
        %6888 = vmatmul.mubr.f32.gmra.mrb[0].mxu0 %v6743
        %v6889 = vpop.f32.mrb[0].mxu0
        %v6890 = vadd.f32 0.0, %v6889
        %v6891 = vpop.f32.mrb[0].mxu0
        %6892 = vdwg.mxu0
        %v6893 = vadd.f32 %v6667, %v6815
        %v6894 = vadd.f32 %v6668, %v6820
        %v6895 = vadd.f32 %v6669, %v6825
        %v6896 = vadd.f32 %v6670, %v6830
        %v6897 = vadd.f32 %v6671, %v6835
        %v6898 = vadd.f32 %v6672, %v6840
        %v6899 = vadd.f32 %v6673, %v6845
        %v6900 = vadd.f32 %v6674, %v6850
        %v6901 = vadd.f32 %v6675, %v6855
        %v6902 = vadd.f32 %v6676, %v6860
        %v6903 = vadd.f32 %v6677, %v6865
        %v6904 = vadd.f32 %v6678, %v6870
        %v6905 = vadd.f32 %v6679, %v6875
        %v6906 = vadd.f32 %v6680, %v6880
        %v6907 = vadd.f32 %v6681, %v6885
        %v6908 = vadd.f32 %v6682, %v6890
        %v6909 = vmax.f32 %v6893, 0.0
        %v6910 = vmax.f32 %v6894, 0.0
        %v6911 = vmax.f32 %v6895, 0.0
        %v6912 = vmax.f32 %v6896, 0.0
        %v6913 = vmax.f32 %v6897, 0.0
        %v6914 = vmax.f32 %v6898, 0.0
        %v6915 = vmax.f32 %v6899, 0.0
        %v6916 = vmax.f32 %v6900, 0.0
        %v6917 = vmax.f32 %v6901, 0.0
        %v6918 = vmax.f32 %v6902, 0.0
        %v6919 = vmax.f32 %v6903, 0.0
        %v6920 = vmax.f32 %v6904, 0.0
        %v6921 = vmax.f32 %v6905, 0.0
        %v6922 = vmax.f32 %v6906, 0.0
        %v6923 = vmax.f32 %v6907, 0.0
        %v6924 = vmax.f32 %v6908, 0.0
        %vm6925 = vcmask 523264
        %6926 = vst.msk [vmem:[%s166] sm:$0xff] %vm6925, %v6909
        %6927 = vst.msk [vmem:[%s166 + $0x8] sm:$0xff] %vm6925, %v6910
        %6928 = vst.msk [vmem:[%s166 + $0x10] sm:$0xff] %vm6925, %v6911
        %6929 = vst.msk [vmem:[%s166 + $0x18] sm:$0xff] %vm6925, %v6912
        %6930 = vst.msk [vmem:[%s166 + $0x20] sm:$0xff] %vm6925, %v6913
        %6931 = vst.msk [vmem:[%s166 + $0x28] sm:$0xff] %vm6925, %v6914
        %6932 = vst.msk [vmem:[%s166 + $0x30] sm:$0xff] %vm6925, %v6915
        %6933 = vst.msk [vmem:[%s166 + $0x38] sm:$0xff] %vm6925, %v6916
        %6934 = vst.msk [vmem:[%s166 + $0x40] sm:$0xff] %vm6925, %v6917
        %6935 = vst.msk [vmem:[%s166 + $0x48] sm:$0xff] %vm6925, %v6918
        %6936 = vst.msk [vmem:[%s166 + $0x50] sm:$0xff] %vm6925, %v6919
        %6937 = vst.msk [vmem:[%s166 + $0x58] sm:$0xff] %vm6925, %v6920
        %6938 = vst.msk [vmem:[%s166 + $0x60] sm:$0xff] %vm6925, %v6921
        %6939 = vst.msk [vmem:[%s166 + $0x68] sm:$0xff] %vm6925, %v6922
        %6940 = vst.msk [vmem:[%s166 + $0x70] sm:$0xff] %vm6925, %v6923
        %6941 = vst.msk [vmem:[%s166 + $0x78] sm:$0xff] %vm6925, %v6924
        %s6942 = sand.u32 %s93, 1
        %s6943 = scalar_lea.sflag [#allocation3], %s6942
        %s6944 = sand.u32 %s93, 1
        %s6945 = smul.addr %s6944, 128
        %s6946 = scalar_lea.vmem [#allocation2], %s6945
        // Predicated region
        $region33: #{sequential_forward.1} parent=31 // pred_check
          %p6947 = pneg %p103
        $region34: #{sequential_forward.1} parent=31 // pred_check_branch
          %6949 = sbr.rel (%p6947) target = $region36
        $region35: #{sequential_forward.1} parent=31 // pred_region
          %s6950 = smul.u32 16, %s17
          %s6952 = ssub.s32 2048, 2048
          %6953 = vsyncadd %s6943, %s6952
          %s6954 = smul.addr %s6950, 128
          %s6955 = scalar_lea.hbm %s3, %s6954
          %s6956 = sshll.u32 %s6946, 4
          %s6957 = int_to_ptr.vmem [resolvable:$true] %s6956
          %6962 = dma.vmem_to_hbm [thread:$0]  %s6957, 2048, %s6955, %s6943, 128, 128, 8
        $region36: #{sequential_forward.1} parent=31 // pred_fallthru
          _
      $region32: #{sequential_forward.1} parent=5 // pred_fallthru
        _
      %p6963 = scmp.le.s32.totalorder 2, %s12
      // Predicated region
      $region37: #{sequential_forward.1} parent=5 // pred_check
        %p6964 = pneg %p6963
      $region38: #{sequential_forward.1} parent=5 // pred_check_branch
        %6966 = sbr.rel (%p6964) target = $region40
      $region39: #{sequential_forward.1} parent=5 // pred_region
        %s6967 = ssub.s32 %s12, 2
        // Predicated region
        $region41: #{sequential_forward.1} parent=39 // pred_check
          %p6968 = pneg %p109
        $region42: #{sequential_forward.1} parent=39 // pred_check_branch
          %6970 = sbr.rel (%p6968) target = $region44
        $region43: #{sequential_forward.1} parent=39 // pred_region
          %s6971 = sand.u32 %s94, 1
          %s6972 = scalar_lea.sflag [#allocation3], %s6971
          %s6973 = sand.u32 %s94, 1
          %s6974 = smul.addr %s6973, 128
          %s6975 = scalar_lea.vmem [#allocation2], %s6974
          %6976 = dma.done %s6972, 2048
        $region44: #{sequential_forward.1} parent=39 // pred_fallthru
          _
      $region40: #{sequential_forward.1} parent=5 // pred_fallthru
        _
    $region6: #{sequential_forward.1} parent=1 // loop_footer
      %s16 = sadd.s32 1, %s12
    $region7: #{sequential_forward.1} parent=1 // loop_footer_branch
      %11 = sbr.rel target = $region3
    $region8: #{sequential_forward.1} parent=1 // loop_exit
      _
    %6977 = vsyncpa [#allocation3], 1
    %s6978 = scalar_lea.sflag [#allocation3], 1
    %6979 = vsyncpa %s6978, 1

</llo_original>
